<compile_context>
chip_gen: v5e
topology: v5e:2x2
jax: 0.10.0
libtpu: 0.0.40
codegen_flags: <defaults>
</compile_context>

<pallas_src>
import functools
import math

import jax
import jax.numpy as jnp
from jax.experimental import pallas as pl
from jax.experimental.pallas import tpu as pltpu


_SQRT_2_OVER_PI = 0.7978845608028654
_NEG_BIG = 1e30


def _gelu_tanh(x):
    # TODO(synk): torch.nn.GELU() is exact-erf; using tanh-approx GELU in-kernel (EUP tanh)
    # until erf lowering on Mosaic is verified.
    return 0.5 * x * (1.0 + jnp.tanh(_SQRT_2_OVER_PI * (x + 0.044715 * x * x * x)))


def _mxu_dot(a, b):
    # bf16 MXU inputs (fast path on v6e/v7x, harmless on v5e), f32 accumulation.
    return jnp.dot(a.astype(jnp.bfloat16), b.astype(jnp.bfloat16),
                   preferred_element_type=jnp.float32)


def _vmem_limit_bytes():
    # 7/8 of the chip's VMEM (v5e/v6e: ~112 MiB, v7x: ~56 MiB); safe fallback 56 MiB.
    cap = 64 * 1024 * 1024
    try:
        cap = int(getattr(pltpu.get_tpu_info(), "vmem_capacity_bytes", cap))
    except Exception:
        pass
    return min((cap * 7) // 8, 112 * 1024 * 1024)


def _row_tile(n):
    # Query-row tile: 128 when it divides N (multi-tile grid -> megacore + adj pipelining),
    # otherwise a single full-height tile (small / irregular N).
    if n > 128 and n % 128 == 0:
        return 128
    return n


def _src_chunk(n, tq, h, budget_bytes=4 * 1024 * 1024):
    # Source-chunk size so the [tq, tk, h] f32 broadcast temp stays under ~4 MiB.
    t = int(max(8, min(n, budget_bytes // (tq * h * 4))))
    if n % t == 0:
        return t
    c = t - (t % 8)
    while c >= 8:
        if n % c == 0:
            return c
        c -= 8
    return n


# ----------------------------- Pallas kernels ------------------------------

def _preprocess_kernel(x_ref, w1_ref, b1_ref, w2_ref, b2_ref, o_ref):
    h1 = _gelu_tanh(_mxu_dot(x_ref[...], w1_ref[...]) + b1_ref[...])
    o_ref[...] = _gelu_tanh(_mxu_dot(h1, w2_ref[...]) + b2_ref[...])


def _gps_layer_kernel(x_ref, adjb_ref, gmk_ref,
                      wsrc_ref, bsrc_ref, wdst_ref, bdst_ref, att_ref, gatb_ref,
                      wo_ref, bo_ref, wm1_ref, bm1_ref, wm2_ref, bm2_ref,
                      bn1s_ref, bn1b_ref, bn2s_ref, bn2b_ref, bn3s_ref, bn3b_ref,
                      o_ref, e_scr, acc_scr, *, hidden, heads, tq, src_chunk):
    n = x_ref.shape[0]
    q0 = pl.multiple_of(pl.program_id(0) * tq, tq)

    x_full = x_ref[...]                                  # [N, h]  resident across row tiles
    x_q = x_ref[pl.ds(q0, tq), :]                        # [Tq, h] this tile's rows

    # source-side packed projection over all N: [gat_l | K | V]
    proj_src = _mxu_dot(x_full, wsrc_ref[...]) + bsrc_ref[...]        # [N, 3h]
    xl = proj_src[:, :hidden]
    k_full = proj_src[:, hidden:2 * hidden]
    v_full = proj_src[:, 2 * hidden:3 * hidden]

    # target/query-side packed projection over the row tile only: [gat_r | Q]
    proj_dst = _mxu_dot(x_q, wdst_ref[...]) + bdst_ref[...]           # [Tq, 2h]
    xr = proj_dst[:, :hidden]
    q_all = proj_dst[:, hidden:2 * hidden]

    # -- local message passing: GATv2 (heads=1) scores, source-chunked ------
    # Each chunk's [Tq, Tk, h] temp is consumed by its store into e_scr, so only one chunk
    # of the O(N^2 h) broadcast is live at a time (no concatenate copy).
    att_row = att_ref[...]                               # [1, h]
    for j0 in range(0, n, src_chunk):
        xl_c = xl[j0:j0 + src_chunk, :]                  # [Tk, h]
        s = xr[:, None, :] + xl_c[None, :, :]            # [Tq, Tk, h]
        s = jnp.maximum(s, 0.2 * s)                      # leaky_relu(0.2) as one vmax
        e_scr[:, j0:j0 + src_chunk] = jnp.sum(s * att_row[None, :, :], axis=-1)

    # edge softmax over sources; mask is an additive -1e30 bias, self loops guarantee
    # at least one live edge per row so exp() of masked entries underflows to exactly 0.
    e = e_scr[...] + adjb_ref[...].astype(jnp.float32)   # [Tq, N]
    m = jnp.max(e, axis=-1, keepdims=True)
    p = jnp.exp(e - m)
    alpha = p * pl.reciprocal(jnp.sum(p, axis=-1, keepdims=True), approx=True)
    gat = _mxu_dot(alpha, xl) + gatb_ref[...]
    h1 = (gat + x_q) * bn1s_ref[...] + bn1b_ref[...]     # dropout(id) + residual + BN1 (eval)

    # -- global attention: 4-head MHA restricted to same-graph keys ---------
    d = hidden // heads
    scale = 1.0 / math.sqrt(d)
    gbias = gmk_ref[...].astype(jnp.float32)             # [Tq, N] block-diagonal graph mask
    wo = wo_ref[...]
    acc_scr[...] = jnp.zeros_like(acc_scr)
    for hh in range(heads):
        qh = q_all[:, hh * d:(hh + 1) * d]
        kh = k_full[:, hh * d:(hh + 1) * d]
        vh = v_full[:, hh * d:(hh + 1) * d]
        sc = jax.lax.dot_general(qh.astype(jnp.bfloat16), kh.astype(jnp.bfloat16),
                                 (((1,), (1,)), ((), ())),
                                 preferred_element_type=jnp.float32) * scale + gbias
        mx = jnp.max(sc, axis=-1, keepdims=True)
        ps = jnp.exp(sc - mx)
        inv = pl.reciprocal(jnp.sum(ps, axis=-1, keepdims=True), approx=True)
        ho = _mxu_dot(ps * inv, vh)                      # [Tq, d]
        # fold this head's slice of the out-projection here: no concat, no masked lane stores,
        # and the ref accumulation bounds each head's [Tq, N] score live range.
        acc_scr[...] += _mxu_dot(ho, wo[hh * d:(hh + 1) * d, :])
    attn = acc_scr[...] + bo_ref[...]
    h2 = (attn + x_q) * bn2s_ref[...] + bn2b_ref[...]    # dropout(id) + residual + BN2 (eval)

    # -- hs sum + MLP + BN3, outer ReLU fused; F.dropout(0.6) identity in eval --
    s2 = h1 + h2
    m1 = jnp.maximum(_mxu_dot(s2, wm1_ref[...]) + bm1_ref[...], 0.0)
    m2 = _mxu_dot(m1, wm2_ref[...]) + bm2_ref[...]
    o_ref[...] = jnp.maximum((s2 + m2) * bn3s_ref[...] + bn3b_ref[...], 0.0)


def _pool_head_kernel(seg_ref, x_ref, w_ref, b_ref, o_ref):
    pooled = _mxu_dot(seg_ref[...], x_ref[...])          # global_mean_pool: row-normalized [G,N] @ [N,h]
    z = _mxu_dot(pooled, w_ref[...]) + b_ref[...]        # final Linear
    m = jnp.max(z, axis=-1, keepdims=True)
    lse = jnp.log(jnp.sum(jnp.exp(z - m), axis=-1, keepdims=True)) + m
    o_ref[...] = z - lse                                 # log_softmax(dim=1)


# ----------------------------- wrappers -------------------------------------

def preprocess(x, w1, b1, w2, b2, *, vmem_limit):
    n = x.shape[0]
    h = w2.shape[1]
    return pl.pallas_call(
        _preprocess_kernel,
        out_shape=jax.ShapeDtypeStruct((n, h), jnp.float32),
        compiler_params=pltpu.CompilerParams(vmem_limit_bytes=vmem_limit),
    )(x, w1, b1, w2, b2)


def gps_layer(x, adj_bias, gmask_bias, lyr, heads, *, vmem_limit):
    n, h = x.shape
    tq = _row_tile(n)
    tk = _src_chunk(n, tq, h)
    kernel = functools.partial(_gps_layer_kernel, hidden=h, heads=heads, tq=tq, src_chunk=tk)
    weights = (lyr["w_src"], lyr["b_src"], lyr["w_dst"], lyr["b_dst"], lyr["att"], lyr["gat_bias"],
               lyr["w_out"], lyr["b_out"], lyr["w_mlp1"], lyr["b_mlp1"], lyr["w_mlp2"], lyr["b_mlp2"],
               lyr["bn1_scale"], lyr["bn1_shift"], lyr["bn2_scale"], lyr["bn2_shift"],
               lyr["bn3_scale"], lyr["bn3_shift"])
    in_specs = ([pl.BlockSpec((n, h), lambda i: (0, 0)),       # x: resident across all row tiles
                 pl.BlockSpec((tq, n), lambda i: (i, 0)),      # GAT mask bias rows (bf16), pipelined
                 pl.BlockSpec((tq, n), lambda i: (i, 0))]      # per-graph MHA mask rows (bf16)
                + [pl.BlockSpec(w.shape, lambda i: (0, 0)) for w in weights])
    return pl.pallas_call(
        kernel,
        out_shape=jax.ShapeDtypeStruct((n, h), jnp.float32),
        grid=(n // tq,),
        in_specs=in_specs,
        out_specs=pl.BlockSpec((tq, h), lambda i: (i, 0)),
        scratch_shapes=[pltpu.VMEM((tq, n), jnp.float32),      # GATv2 score scratch
                        pltpu.VMEM((tq, h), jnp.float32)],     # MHA head-output accumulator
        compiler_params=pltpu.CompilerParams(
            dimension_semantics=("parallel",),                  # both TCs on v7x
            vmem_limit_bytes=vmem_limit),
    )(x, adj_bias, gmask_bias, *weights)


def pool_and_head(seg, x, w, b, *, vmem_limit):
    g = seg.shape[0]
    out_c = w.shape[1]
    return pl.pallas_call(
        _pool_head_kernel,
        out_shape=jax.ShapeDtypeStruct((g, out_c), jnp.float32),
        compiler_params=pltpu.CompilerParams(vmem_limit_bytes=vmem_limit),
    )(seg, x, w, b)


def gps_conv_net_forward(params, x, adj_bias, gmask_bias, seg_mat, mha_heads=4):
    vlim = _vmem_limit_bytes()
    x = preprocess(x, *params["pre"], vmem_limit=vlim)
    for lyr in params["layers"]:
        x = gps_layer(x, adj_bias, gmask_bias, lyr, mha_heads, vmem_limit=vlim)
    return pool_and_head(seg_mat, x, *params["final"], vmem_limit=vlim)


# ----------------------------- parameters ----------------------------------

def init_linear(key, fan_in, fan_out):
    kw, kb = jax.random.split(key)
    lim = 1.0 / math.sqrt(fan_in)
    w = jax.random.uniform(kw, (fan_in, fan_out), jnp.float32, -lim, lim)
    b = jax.random.uniform(kb, (1, fan_out), jnp.float32, -lim, lim)
    return w, b


def init_params(key, in_c, hidden, out_c, n_layers=3):
    keys = iter(jax.random.split(key, 10 * n_layers + 8))
    h = hidden
    bn_scale = jnp.full((1, h), 1.0 / math.sqrt(1.0 + 1e-5), jnp.float32)  # eval-mode BN, fresh stats
    bn_shift = jnp.zeros((1, h), jnp.float32)
    params = {"pre": init_linear(next(keys), in_c, 2 * h) + init_linear(next(keys), 2 * h, h),
              "layers": [], "final": None}
    for _ in range(n_layers):
        w_l, b_l = init_linear(next(keys), h, h)          # GATv2 lin_l (source / value side)
        w_r, b_r = init_linear(next(keys), h, h)          # GATv2 lin_r (target side)
        w_q, b_q = init_linear(next(keys), h, h)          # MHA query
        w_k, b_k = init_linear(next(keys), h, h)          # MHA key
        w_v, b_v = init_linear(next(keys), h, h)          # MHA value
        w_o, b_o = init_linear(next(keys), h, h)          # MHA out_proj
        w_m1, b_m1 = init_linear(next(keys), h, 2 * h)
        w_m2, b_m2 = init_linear(next(keys), 2 * h, h)
        params["layers"].append({
            "w_src": jnp.concatenate([w_l, w_k, w_v], axis=1),   # [h, 3h] full-graph projections
            "b_src": jnp.concatenate([b_l, b_k, b_v], axis=1),
            "w_dst": jnp.concatenate([w_r, w_q], axis=1),        # [h, 2h] row-tile projections
            "b_dst": jnp.concatenate([b_r, b_q], axis=1),
            "att": jax.random.normal(next(keys), (1, h), jnp.float32) * 0.1,
            "gat_bias": jnp.zeros((1, h), jnp.float32),
            "w_out": w_o, "b_out": b_o,
            "w_mlp1": w_m1, "b_mlp1": b_m1, "w_mlp2": w_m2, "b_mlp2": b_m2,
            "bn1_scale": bn_scale, "bn1_shift": bn_shift,
            "bn2_scale": bn_scale, "bn2_shift": bn_shift,
            "bn3_scale": bn_scale, "bn3_shift": bn_shift,
        })
    params["final"] = init_linear(next(keys), h, out_c)
    return params


# ----------------------------- main ------------------------------------------

if __name__ == "__main__":
    key = jax.random.PRNGKey(0)
    in_channels, hidden, out_channels = 8, 64, 4        # hidden_channels = [64, 64, 64]
    nodes_per_graph, num_graphs = 8, 2
    n = nodes_per_graph * num_graphs

    k_x, k_p = jax.random.split(key)
    x = jax.random.normal(k_x, (n, in_channels), jnp.float32)

    # batch vector (graph id per node) and a deterministic undirected ring per graph
    batch = jnp.repeat(jnp.arange(num_graphs), nodes_per_graph)
    src, dst = [], []
    for g in range(num_graphs):
        off = g * nodes_per_graph
        for i in range(nodes_per_graph):
            j = (i + 1) % nodes_per_graph
            src += [off + i, off + j]
            dst += [off + j, off + i]
    edge_index = jnp.array([src, dst], dtype=jnp.int32)  # [2, E]

    # dense binary adjacency for GATv2: adj[target, source] = 1, plus self loops
    adj = jnp.zeros((n, n), jnp.float32)
    adj = adj.at[edge_index[1], edge_index[0]].set(1.0)
    adj = adj.at[jnp.arange(n), jnp.arange(n)].set(1.0)

    # additive masks (bf16, built once, reused across all 3 layers):
    #   adj_bias:  0 on edges / self loops, -1e30 elsewhere (GATv2 edge softmax)
    #   gmask_bias: 0 within the same graph, -1e30 across graphs (per-graph MHA, as in PyG GPSConv)
    adj_bias = ((adj - 1.0) * _NEG_BIG).astype(jnp.bfloat16)
    same_graph = (batch[:, None] == batch[None, :])
    gmask_bias = jnp.where(same_graph, 0.0, -_NEG_BIG).astype(jnp.bfloat16)

    # global_mean_pool as a [num_graphs, N] row-normalized segment matrix
    seg = (batch[None, :] == jnp.arange(num_graphs)[:, None]).astype(jnp.float32)
    seg = seg / jnp.sum(seg, axis=1, keepdims=True)

    params = init_params(k_p, in_channels, hidden, out_channels, n_layers=3)

    fwd = jax.jit(functools.partial(gps_conv_net_forward, mha_heads=4))
    out = jax.block_until_ready(fwd(params, x, adj_bias, gmask_bias, seg))

    assert out.shape == (num_graphs, out_channels)
    assert bool(jnp.all(jnp.isfinite(out)))
    print("KERNEL_OK")
</pallas_src>

<mosaic_0001>
module attributes {stable_mosaic.version = 11 : i64} {
  func.func @_preprocess_kernel(%arg0: memref<16x8xf32, #tpu.memory_space<vmem>>, %arg1: memref<8x128xf32, #tpu.memory_space<vmem>>, %arg2: memref<1x128xf32, #tpu.memory_space<vmem>>, %arg3: memref<128x64xf32, #tpu.memory_space<vmem>>, %arg4: memref<1x64xf32, #tpu.memory_space<vmem>>, %arg5: memref<16x64xf32, #tpu.memory_space<vmem>>) attributes {dimension_semantics = [], scalar_prefetch = 0 : i64, scratch_operands = 0 : i64, tpu.core_type = #tpu.core_type<tc>} {
    %c0 = arith.constant 0 : index
    %c0_0 = arith.constant 0 : index
    %0 = vector.load %arg0[%c0, %c0_0] : memref<16x8xf32, #tpu.memory_space<vmem>>, vector<16x8xf32>
    %c0_1 = arith.constant 0 : index
    %c0_2 = arith.constant 0 : index
    %1 = vector.load %arg1[%c0_1, %c0_2] : memref<8x128xf32, #tpu.memory_space<vmem>>, vector<8x128xf32>
    %2 = arith.truncf %0 : vector<16x8xf32> to vector<16x8xbf16>
    %3 = arith.truncf %1 : vector<8x128xf32> to vector<8x128xbf16>
    %cst = arith.constant dense<0.000000e+00> : vector<16x128xf32>
    %4 = tpu.matmul %2, %3, %cst {dimension_numbers = #tpu.dot_dimension_numbers<[1], [0], [0], [1], [0, 0, 1, 1], [], []>} : vector<16x8xbf16>, vector<8x128xbf16>, vector<16x128xf32> -> vector<16x128xf32>
    %c0_3 = arith.constant 0 : index
    %c0_4 = arith.constant 0 : index
    %5 = vector.load %arg2[%c0_3, %c0_4] : memref<1x128xf32, #tpu.memory_space<vmem>>, vector<1x128xf32>
    %6 = vector.broadcast %5 : vector<1x128xf32> to vector<16x128xf32>
    %7 = arith.addf %4, %6 : vector<16x128xf32>
    %cst_5 = arith.constant 5.000000e-01 : f32
    %8 = vector.broadcast %cst_5 : f32 to vector<16x128xf32>
    %9 = arith.mulf %8, %7 : vector<16x128xf32>
    %cst_6 = arith.constant 4.471500e-02 : f32
    %10 = vector.broadcast %cst_6 : f32 to vector<16x128xf32>
    %11 = arith.mulf %10, %7 : vector<16x128xf32>
    %12 = arith.mulf %11, %7 : vector<16x128xf32>
    %13 = arith.mulf %12, %7 : vector<16x128xf32>
    %14 = arith.addf %7, %13 : vector<16x128xf32>
    %cst_7 = arith.constant 0.797884583 : f32
    %15 = vector.broadcast %cst_7 : f32 to vector<16x128xf32>
    %16 = arith.mulf %15, %14 : vector<16x128xf32>
    %17 = math.tanh %16 : vector<16x128xf32>
    %cst_8 = arith.constant 1.000000e+00 : f32
    %18 = vector.broadcast %cst_8 : f32 to vector<16x128xf32>
    %19 = arith.addf %18, %17 : vector<16x128xf32>
    %20 = arith.mulf %9, %19 : vector<16x128xf32>
    %c0_9 = arith.constant 0 : index
    %c0_10 = arith.constant 0 : index
    %21 = vector.load %arg3[%c0_9, %c0_10] : memref<128x64xf32, #tpu.memory_space<vmem>>, vector<128x64xf32>
    %22 = arith.truncf %20 : vector<16x128xf32> to vector<16x128xbf16>
    %23 = arith.truncf %21 : vector<128x64xf32> to vector<128x64xbf16>
    %cst_11 = arith.constant dense<0.000000e+00> : vector<16x64xf32>
    %24 = tpu.matmul %22, %23, %cst_11 {dimension_numbers = #tpu.dot_dimension_numbers<[1], [0], [0], [1], [0, 0, 1, 1], [], []>} : vector<16x128xbf16>, vector<128x64xbf16>, vector<16x64xf32> -> vector<16x64xf32>
    %c0_12 = arith.constant 0 : index
    %c0_13 = arith.constant 0 : index
    %25 = vector.load %arg4[%c0_12, %c0_13] : memref<1x64xf32, #tpu.memory_space<vmem>>, vector<1x64xf32>
    %26 = vector.broadcast %25 : vector<1x64xf32> to vector<16x64xf32>
    %27 = arith.addf %24, %26 : vector<16x64xf32>
    %cst_14 = arith.constant 5.000000e-01 : f32
    %28 = vector.broadcast %cst_14 : f32 to vector<16x64xf32>
    %29 = arith.mulf %28, %27 : vector<16x64xf32>
    %cst_15 = arith.constant 4.471500e-02 : f32
    %30 = vector.broadcast %cst_15 : f32 to vector<16x64xf32>
    %31 = arith.mulf %30, %27 : vector<16x64xf32>
    %32 = arith.mulf %31, %27 : vector<16x64xf32>
    %33 = arith.mulf %32, %27 : vector<16x64xf32>
    %34 = arith.addf %27, %33 : vector<16x64xf32>
    %cst_16 = arith.constant 0.797884583 : f32
    %35 = vector.broadcast %cst_16 : f32 to vector<16x64xf32>
    %36 = arith.mulf %35, %34 : vector<16x64xf32>
    %37 = math.tanh %36 : vector<16x64xf32>
    %cst_17 = arith.constant 1.000000e+00 : f32
    %38 = vector.broadcast %cst_17 : f32 to vector<16x64xf32>
    %39 = arith.addf %38, %37 : vector<16x64xf32>
    %40 = arith.mulf %29, %39 : vector<16x64xf32>
    %c0_18 = arith.constant 0 : index
    %c0_19 = arith.constant 0 : index
    %41 = vector.load %arg5[%c0_18, %c0_19] : memref<16x64xf32, #tpu.memory_space<vmem>>, vector<16x64xf32>
    tpu.vector_store %arg5[%c0_18, %c0_19], %40 {strides = array<i32>} : memref<16x64xf32, #tpu.memory_space<vmem>>, vector<16x64xf32>,
    return
  }
}

module attributes {stable_mosaic.version = 11 : i64} {
  func.func @_gps_layer_kernel(%arg0: i32, %arg1: memref<16x64xf32, #tpu.memory_space<vmem>>, %arg2: memref<16x16xbf16, #tpu.memory_space<vmem>>, %arg3: memref<16x16xbf16, #tpu.memory_space<vmem>>, %arg4: memref<64x192xf32, #tpu.memory_space<vmem>>, %arg5: memref<1x192xf32, #tpu.memory_space<vmem>>, %arg6: memref<64x128xf32, #tpu.memory_space<vmem>>, %arg7: memref<1x128xf32, #tpu.memory_space<vmem>>, %arg8: memref<1x64xf32, #tpu.memory_space<vmem>>, %arg9: memref<1x64xf32, #tpu.memory_space<vmem>>, %arg10: memref<64x64xf32, #tpu.memory_space<vmem>>, %arg11: memref<1x64xf32, #tpu.memory_space<vmem>>, %arg12: memref<64x128xf32, #tpu.memory_space<vmem>>, %arg13: memref<1x128xf32, #tpu.memory_space<vmem>>, %arg14: memref<128x64xf32, #tpu.memory_space<vmem>>, %arg15: memref<1x64xf32, #tpu.memory_space<vmem>>, %arg16: memref<1x64xf32, #tpu.memory_space<vmem>>, %arg17: memref<1x64xf32, #tpu.memory_space<vmem>>, %arg18: memref<1x64xf32, #tpu.memory_space<vmem>>, %arg19: memref<1x64xf32, #tpu.memory_space<vmem>>, %arg20: memref<1x64xf32, #tpu.memory_space<vmem>>, %arg21: memref<1x64xf32, #tpu.memory_space<vmem>>, %arg22: memref<16x64xf32, #tpu.memory_space<vmem>>, %arg23: memref<16x16xf32, #tpu.memory_space<vmem>>, %arg24: memref<16x64xf32, #tpu.memory_space<vmem>>) attributes {dimension_semantics = [#tpu.dimension_semantics<parallel>], iteration_bounds = array<i64: 1>, scalar_prefetch = 0 : i64, scratch_operands = 2 : i64, tpu.core_type = #tpu.core_type<tc>, window_params = [{pipeline_mode = #tpu.pipeline_mode<synchronous>, transform_indices = @transform_0, window_bounds = array<i64: 16, 64>}, {transform_indices = @transform_1, window_bounds = array<i64: 16, 16>}, {transform_indices = @transform_2, window_bounds = array<i64: 16, 16>}, {pipeline_mode = #tpu.pipeline_mode<synchronous>, transform_indices = @transform_3, window_bounds = array<i64: 64, 192>}, {pipeline_mode = #tpu.pipeline_mode<synchronous>, transform_indices = @transform_4, window_bounds = array<i64: 1, 192>}, {pipeline_mode = #tpu.pipeline_mode<synchronous>, transform_indices = @transform_5, window_bounds = array<i64: 64, 128>}, {pipeline_mode = #tpu.pipeline_mode<synchronous>, transform_indices = @transform_6, window_bounds = array<i64: 1, 128>}, {pipeline_mode = #tpu.pipeline_mode<synchronous>, transform_indices = @transform_7, window_bounds = array<i64: 1, 64>}, {pipeline_mode = #tpu.pipeline_mode<synchronous>, transform_indices = @transform_8, window_bounds = array<i64: 1, 64>}, {pipeline_mode = #tpu.pipeline_mode<synchronous>, transform_indices = @transform_9, window_bounds = array<i64: 64, 64>}, {pipeline_mode = #tpu.pipeline_mode<synchronous>, transform_indices = @transform_10, window_bounds = array<i64: 1, 64>}, {pipeline_mode = #tpu.pipeline_mode<synchronous>, transform_indices = @transform_11, window_bounds = array<i64: 64, 128>}, {pipeline_mode = #tpu.pipeline_mode<synchronous>, transform_indices = @transform_12, window_bounds = array<i64: 1, 128>}, {pipeline_mode = #tpu.pipeline_mode<synchronous>, transform_indices = @transform_13, window_bounds = array<i64: 128, 64>}, {pipeline_mode = #tpu.pipeline_mode<synchronous>, transform_indices = @transform_14, window_bounds = array<i64: 1, 64>}, {pipeline_mode = #tpu.pipeline_mode<synchronous>, transform_indices = @transform_15, window_bounds = array<i64: 1, 64>}, {pipeline_mode = #tpu.pipeline_mode<synchronous>, transform_indices = @transform_16, window_bounds = array<i64: 1, 64>}, {pipeline_mode = #tpu.pipeline_mode<synchronous>, transform_indices = @transform_17, window_bounds = array<i64: 1, 64>}, {pipeline_mode = #tpu.pipeline_mode<synchronous>, transform_indices = @transform_18, window_bounds = array<i64: 1, 64>}, {pipeline_mode = #tpu.pipeline_mode<synchronous>, transform_indices = @transform_19, window_bounds = array<i64: 1, 64>}, {pipeline_mode = #tpu.pipeline_mode<synchronous>, transform_indices = @transform_20, window_bounds = array<i64: 1, 64>}, {transform_indices = @transform_21, window_bounds = array<i64: 16, 64>}]} {
    %c16_i32 = arith.constant 16 : i32
    %0 = arith.muli %arg0, %c16_i32 : i32
    %1 = tpu.assume_multiple %0, 16 : i32
    %c0 = arith.constant 0 : index
    %c0_0 = arith.constant 0 : index
    %2 = vector.load %arg1[%c0, %c0_0] : memref<16x64xf32, #tpu.memory_space<vmem>>, vector<16x64xf32>
    %3 = arith.index_cast %1 : i32 to index
    %c0_1 = arith.constant 0 : index
    %4 = vector.load %arg1[%3, %c0_1] : memref<16x64xf32, #tpu.memory_space<vmem>>, vector<16x64xf32>
    %c0_2 = arith.constant 0 : index
    %c0_3 = arith.constant 0 : index
    %5 = vector.load %arg4[%c0_2, %c0_3] : memref<64x192xf32, #tpu.memory_space<vmem>>, vector<64x192xf32>
    %6 = arith.truncf %2 : vector<16x64xf32> to vector<16x64xbf16>
    %7 = arith.truncf %5 : vector<64x192xf32> to vector<64x192xbf16>
    %cst = arith.constant dense<0.000000e+00> : vector<16x192xf32>
    %8 = tpu.matmul %6, %7, %cst {dimension_numbers = #tpu.dot_dimension_numbers<[1], [0], [0], [1], [0, 0, 1, 1], [], []>} : vector<16x64xbf16>, vector<64x192xbf16>, vector<16x192xf32> -> vector<16x192xf32>
    %c0_4 = arith.constant 0 : index
    %c0_5 = arith.constant 0 : index
    %9 = vector.load %arg5[%c0_4, %c0_5] : memref<1x192xf32, #tpu.memory_space<vmem>>, vector<1x192xf32>
    %10 = vector.broadcast %9 : vector<1x192xf32> to vector<16x192xf32>
    %11 = arith.addf %8, %10 : vector<16x192xf32>
    %12 = vector.extract_strided_slice %11 {offsets = [0, 0], sizes = [16, 64], strides = [1, 1]} : vector<16x192xf32> to vector<16x64xf32>
    %13 = vector.extract_strided_slice %11 {offsets = [0, 64], sizes = [16, 64], strides = [1, 1]} : vector<16x192xf32> to vector<16x64xf32>
    %14 = vector.extract_strided_slice %11 {offsets = [0, 128], sizes = [16, 64], strides = [1, 1]} : vector<16x192xf32> to vector<16x64xf32>
    %c0_6 = arith.constant 0 : index
    %c0_7 = arith.constant 0 : index
    %15 = vector.load %arg6[%c0_6, %c0_7] : memref<64x128xf32, #tpu.memory_space<vmem>>, vector<64x128xf32>
    %16 = arith.truncf %4 : vector<16x64xf32> to vector<16x64xbf16>
    %17 = arith.truncf %15 : vector<64x128xf32> to vector<64x128xbf16>
    %cst_8 = arith.constant dense<0.000000e+00> : vector<16x128xf32>
    %18 = tpu.matmul %16, %17, %cst_8 {dimension_numbers = #tpu.dot_dimension_numbers<[1], [0], [0], [1], [0, 0, 1, 1], [], []>} : vector<16x64xbf16>, vector<64x128xbf16>, vector<16x128xf32> -> vector<16x128xf32>
    %c0_9 = arith.constant 0 : index
    %c0_10 = arith.constant 0 : index
    %19 = vector.load %arg7[%c0_9, %c0_10] : memref<1x128xf32, #tpu.memory_space<vmem>>, vector<1x128xf32>
    %20 = vector.broadcast %19 : vector<1x128xf32> to vector<16x128xf32>
    %21 = arith.addf %18, %20 : vector<16x128xf32>
    %22 = vector.extract_strided_slice %21 {offsets = [0, 0], sizes = [16, 64], strides = [1, 1]} : vector<16x128xf32> to vector<16x64xf32>
    %23 = vector.extract_strided_slice %21 {offsets = [0, 64], sizes = [16, 64], strides = [1, 1]} : vector<16x128xf32> to vector<16x64xf32>
    %c0_11 = arith.constant 0 : index
    %c0_12 = arith.constant 0 : index
    %24 = vector.load %arg8[%c0_11, %c0_12] : memref<1x64xf32, #tpu.memory_space<vmem>>, vector<1x64xf32>
    %25 = vector.shape_cast %22 : vector<16x64xf32> to vector<16x1x64xf32>
    %26 = vector.shape_cast %12 : vector<16x64xf32> to vector<1x16x64xf32>
    %27 = vector.broadcast %25 : vector<16x1x64xf32> to vector<16x16x64xf32>
    %28 = vector.broadcast %26 : vector<1x16x64xf32> to vector<16x16x64xf32>
    %29 = arith.addf %27, %28 : vector<16x16x64xf32>
    %cst_13 = arith.constant 2.000000e-01 : f32
    %30 = vector.broadcast %cst_13 : f32 to vector<16x16x64xf32>
    %31 = arith.mulf %30, %29 : vector<16x16x64xf32>
    %32 = arith.maximumf %29, %31 : vector<16x16x64xf32>
    %33 = vector.shape_cast %24 : vector<1x64xf32> to vector<1x1x64xf32>
    %34 = vector.broadcast %33 : vector<1x1x64xf32> to vector<16x16x64xf32>
    %35 = arith.mulf %32, %34 : vector<16x16x64xf32>
    %cst_14 = arith.constant dense<0.000000e+00> : vector<16x16xf32>
    %36 = vector.multi_reduction <add>, %35, %cst_14 [2] : vector<16x16x64xf32> to vector<16x16xf32>
    %c0_15 = arith.constant 0 : index
    %c0_16 = arith.constant 0 : index
    %37 = vector.load %arg23[%c0_15, %c0_16] : memref<16x16xf32, #tpu.memory_space<vmem>>, vector<16x16xf32>
    tpu.vector_store %arg23[%c0_15, %c0_16], %36 {strides = array<i32>} : memref<16x16xf32, #tpu.memory_space<vmem>>, vector<16x16xf32>,
    %c0_17 = arith.constant 0 : index
    %c0_18 = arith.constant 0 : index
    %38 = vector.load %arg23[%c0_17, %c0_18] : memref<16x16xf32, #tpu.memory_space<vmem>>, vector<16x16xf32>
    %c0_19 = arith.constant 0 : index
    %c0_20 = arith.constant 0 : index
    %39 = vector.load %arg2[%c0_19, %c0_20] : memref<16x16xbf16, #tpu.memory_space<vmem>>, vector<16x16xbf16>
    %40 = arith.extf %39 : vector<16x16xbf16> to vector<16x16xf32>
    %41 = arith.addf %38, %40 : vector<16x16xf32>
    %cst_21 = arith.constant dense<0xFF800000> : vector<16xf32>
    %42 = vector.multi_reduction <maximumf>, %41, %cst_21 [1] : vector<16x16xf32> to vector<16xf32>
    %43 = vector.shape_cast %42 : vector<16xf32> to vector<16x1xf32>
    %44 = vector.broadcast %43 : vector<16x1xf32> to vector<16x16xf32>
    %45 = arith.subf %41, %44 : vector<16x16xf32>
    %46 = math.exp %45 : vector<16x16xf32>
    %cst_22 = arith.constant dense<0.000000e+00> : vector<16xf32>
    %47 = vector.multi_reduction <add>, %46, %cst_22 [1] : vector<16x16xf32> to vector<16xf32>
    %48 = vector.shape_cast %47 : vector<16xf32> to vector<16x1xf32>
    %49 = tpu.reciprocal %48 {approx = true} : vector<16x1xf32> -> vector<16x1xf32>
    %50 = vector.broadcast %49 : vector<16x1xf32> to vector<16x16xf32>
    %51 = arith.mulf %46, %50 : vector<16x16xf32>
    %52 = arith.truncf %51 : vector<16x16xf32> to vector<16x16xbf16>
    %53 = arith.truncf %12 : vector<16x64xf32> to vector<16x64xbf16>
    %cst_23 = arith.constant dense<0.000000e+00> : vector<16x64xf32>
    %54 = tpu.matmul %52, %53, %cst_23 {dimension_numbers = #tpu.dot_dimension_numbers<[1], [0], [0], [1], [0, 0, 1, 1], [], []>} : vector<16x16xbf16>, vector<16x64xbf16>, vector<16x64xf32> -> vector<16x64xf32>
    %c0_24 = arith.constant 0 : index
    %c0_25 = arith.constant 0 : index
    %55 = vector.load %arg9[%c0_24, %c0_25] : memref<1x64xf32, #tpu.memory_space<vmem>>, vector<1x64xf32>
    %56 = vector.broadcast %55 : vector<1x64xf32> to vector<16x64xf32>
    %57 = arith.addf %54, %56 : vector<16x64xf32>
    %58 = arith.addf %57, %4 : vector<16x64xf32>
    %c0_26 = arith.constant 0 : index
    %c0_27 = arith.constant 0 : index
    %59 = vector.load %arg16[%c0_26, %c0_27] : memref<1x64xf32, #tpu.memory_space<vmem>>, vector<1x64xf32>
    %60 = vector.broadcast %59 : vector<1x64xf32> to vector<16x64xf32>
    %61 = arith.mulf %58, %60 : vector<16x64xf32>
    %c0_28 = arith.constant 0 : index
    %c0_29 = arith.constant 0 : index
    %62 = vector.load %arg17[%c0_28, %c0_29] : memref<1x64xf32, #tpu.memory_space<vmem>>, vector<1x64xf32>
    %63 = vector.broadcast %62 : vector<1x64xf32> to vector<16x64xf32>
    %64 = arith.addf %61, %63 : vector<16x64xf32>
    %c0_30 = arith.constant 0 : index
    %c0_31 = arith.constant 0 : index
    %65 = vector.load %arg3[%c0_30, %c0_31] : memref<16x16xbf16, #tpu.memory_space<vmem>>, vector<16x16xbf16>
    %66 = arith.extf %65 : vector<16x16xbf16> to vector<16x16xf32>
    %c0_32 = arith.constant 0 : index
    %c0_33 = arith.constant 0 : index
    %67 = vector.load %arg10[%c0_32, %c0_33] : memref<64x64xf32, #tpu.memory_space<vmem>>, vector<64x64xf32>
    %cst_34 = arith.constant 0.000000e+00 : f32
    %68 = vector.broadcast %cst_34 : f32 to vector<16x64xf32>
    %c0_35 = arith.constant 0 : index
    %c0_36 = arith.constant 0 : index
    %69 = vector.load %arg24[%c0_35, %c0_36] : memref<16x64xf32, #tpu.memory_space<vmem>>, vector<16x64xf32>
    tpu.vector_store %arg24[%c0_35, %c0_36], %68 {strides = array<i32>} : memref<16x64xf32, #tpu.memory_space<vmem>>, vector<16x64xf32>,
    %70 = vector.extract_strided_slice %23 {offsets = [0, 0], sizes = [16, 16], strides = [1, 1]} : vector<16x64xf32> to vector<16x16xf32>
    %71 = vector.extract_strided_slice %13 {offsets = [0, 0], sizes = [16, 16], strides = [1, 1]} : vector<16x64xf32> to vector<16x16xf32>
    %72 = vector.extract_strided_slice %14 {offsets = [0, 0], sizes = [16, 16], strides = [1, 1]} : vector<16x64xf32> to vector<16x16xf32>
    %73 = arith.truncf %70 : vector<16x16xf32> to vector<16x16xbf16>
    %74 = arith.truncf %71 : vector<16x16xf32> to vector<16x16xbf16>
    %cst_37 = arith.constant dense<0.000000e+00> : vector<16x16xf32>
    %75 = tpu.matmul %73, %74, %cst_37 {dimension_numbers = #tpu.dot_dimension_numbers<[1], [1], [0], [0], [0, 0, 1, 0], [], []>} : vector<16x16xbf16>, vector<16x16xbf16>, vector<16x16xf32> -> vector<16x16xf32>
    %cst_38 = arith.constant 2.500000e-01 : f32
    %76 = vector.broadcast %cst_38 : f32 to vector<16x16xf32>
    %77 = arith.mulf %75, %76 : vector<16x16xf32>
    %78 = arith.addf %77, %66 : vector<16x16xf32>
    %cst_39 = arith.constant dense<0xFF800000> : vector<16xf32>
    %79 = vector.multi_reduction <maximumf>, %78, %cst_39 [1] : vector<16x16xf32> to vector<16xf32>
    %80 = vector.shape_cast %79 : vector<16xf32> to vector<16x1xf32>
    %81 = vector.broadcast %80 : vector<16x1xf32> to vector<16x16xf32>
    %82 = arith.subf %78, %81 : vector<16x16xf32>
    %83 = math.exp %82 : vector<16x16xf32>
    %cst_40 = arith.constant dense<0.000000e+00> : vector<16xf32>
    %84 = vector.multi_reduction <add>, %83, %cst_40 [1] : vector<16x16xf32> to vector<16xf32>
    %85 = vector.shape_cast %84 : vector<16xf32> to vector<16x1xf32>
    %86 = tpu.reciprocal %85 {approx = true} : vector<16x1xf32> -> vector<16x1xf32>
    %87 = vector.broadcast %86 : vector<16x1xf32> to vector<16x16xf32>
    %88 = arith.mulf %83, %87 : vector<16x16xf32>
    %89 = arith.truncf %88 : vector<16x16xf32> to vector<16x16xbf16>
    %90 = arith.truncf %72 : vector<16x16xf32> to vector<16x16xbf16>
    %cst_41 = arith.constant dense<0.000000e+00> : vector<16x16xf32>
    %91 = tpu.matmul %89, %90, %cst_41 {dimension_numbers = #tpu.dot_dimension_numbers<[1], [0], [0], [1], [0, 0, 1, 1], [], []>} : vector<16x16xbf16>, vector<16x16xbf16>, vector<16x16xf32> -> vector<16x16xf32>
    %c0_42 = arith.constant 0 : index
    %c0_43 = arith.constant 0 : index
    %92 = vector.load %arg24[%c0_42, %c0_43] : memref<16x64xf32, #tpu.memory_space<vmem>>, vector<16x64xf32>
    %93 = vector.extract_strided_slice %67 {offsets = [0, 0], sizes = [16, 64], strides = [1, 1]} : vector<64x64xf32> to vector<16x64xf32>
    %94 = arith.truncf %91 : vector<16x16xf32> to vector<16x16xbf16>
    %95 = arith.truncf %93 : vector<16x64xf32> to vector<16x64xbf16>
    %cst_44 = arith.constant dense<0.000000e+00> : vector<16x64xf32>
    %96 = tpu.matmul %94, %95, %cst_44 {dimension_numbers = #tpu.dot_dimension_numbers<[1], [0], [0], [1], [0, 0, 1, 1], [], []>} : vector<16x16xbf16>, vector<16x64xbf16>, vector<16x64xf32> -> vector<16x64xf32>
    %97 = arith.addf %92, %96 : vector<16x64xf32>
    %c0_45 = arith.constant 0 : index
    %c0_46 = arith.constant 0 : index
    %98 = vector.load %arg24[%c0_45, %c0_46] : memref<16x64xf32, #tpu.memory_space<vmem>>, vector<16x64xf32>
    tpu.vector_store %arg24[%c0_45, %c0_46], %97 {strides = array<i32>} : memref<16x64xf32, #tpu.memory_space<vmem>>, vector<16x64xf32>,
    %99 = vector.extract_strided_slice %23 {offsets = [0, 16], sizes = [16, 16], strides = [1, 1]} : vector<16x64xf32> to vector<16x16xf32>
    %100 = vector.extract_strided_slice %13 {offsets = [0, 16], sizes = [16, 16], strides = [1, 1]} : vector<16x64xf32> to vector<16x16xf32>
    %101 = vector.extract_strided_slice %14 {offsets = [0, 16], sizes = [16, 16], strides = [1, 1]} : vector<16x64xf32> to vector<16x16xf32>
    %102 = arith.truncf %99 : vector<16x16xf32> to vector<16x16xbf16>
    %103 = arith.truncf %100 : vector<16x16xf32> to vector<16x16xbf16>
    %cst_47 = arith.constant dense<0.000000e+00> : vector<16x16xf32>
    %104 = tpu.matmul %102, %103, %cst_47 {dimension_numbers = #tpu.dot_dimension_numbers<[1], [1], [0], [0], [0, 0, 1, 0], [], []>} : vector<16x16xbf16>, vector<16x16xbf16>, vector<16x16xf32> -> vector<16x16xf32>
    %cst_48 = arith.constant 2.500000e-01 : f32
    %105 = vector.broadcast %cst_48 : f32 to vector<16x16xf32>
    %106 = arith.mulf %104, %105 : vector<16x16xf32>
    %107 = arith.addf %106, %66 : vector<16x16xf32>
    %cst_49 = arith.constant dense<0xFF800000> : vector<16xf32>
    %108 = vector.multi_reduction <maximumf>, %107, %cst_49 [1] : vector<16x16xf32> to vector<16xf32>
    %109 = vector.shape_cast %108 : vector<16xf32> to vector<16x1xf32>
    %110 = vector.broadcast %109 : vector<16x1xf32> to vector<16x16xf32>
    %111 = arith.subf %107, %110 : vector<16x16xf32>
    %112 = math.exp %111 : vector<16x16xf32>
    %cst_50 = arith.constant dense<0.000000e+00> : vector<16xf32>
    %113 = vector.multi_reduction <add>, %112, %cst_50 [1] : vector<16x16xf32> to vector<16xf32>
    %114 = vector.shape_cast %113 : vector<16xf32> to vector<16x1xf32>
    %115 = tpu.reciprocal %114 {approx = true} : vector<16x1xf32> -> vector<16x1xf32>
    %116 = vector.broadcast %115 : vector<16x1xf32> to vector<16x16xf32>
    %117 = arith.mulf %112, %116 : vector<16x16xf32>
    %118 = arith.truncf %117 : vector<16x16xf32> to vector<16x16xbf16>
    %119 = arith.truncf %101 : vector<16x16xf32> to vector<16x16xbf16>
    %cst_51 = arith.constant dense<0.000000e+00> : vector<16x16xf32>
    %120 = tpu.matmul %118, %119, %cst_51 {dimension_numbers = #tpu.dot_dimension_numbers<[1], [0], [0], [1], [0, 0, 1, 1], [], []>} : vector<16x16xbf16>, vector<16x16xbf16>, vector<16x16xf32> -> vector<16x16xf32>
    %c0_52 = arith.constant 0 : index
    %c0_53 = arith.constant 0 : index
    %121 = vector.load %arg24[%c0_52, %c0_53] : memref<16x64xf32, #tpu.memory_space<vmem>>, vector<16x64xf32>
    %122 = vector.extract_strided_slice %67 {offsets = [16, 0], sizes = [16, 64], strides = [1, 1]} : vector<64x64xf32> to vector<16x64xf32>
    %123 = arith.truncf %120 : vector<16x16xf32> to vector<16x16xbf16>
    %124 = arith.truncf %122 : vector<16x64xf32> to vector<16x64xbf16>
    %cst_54 = arith.constant dense<0.000000e+00> : vector<16x64xf32>
    %125 = tpu.matmul %123, %124, %cst_54 {dimension_numbers = #tpu.dot_dimension_numbers<[1], [0], [0], [1], [0, 0, 1, 1], [], []>} : vector<16x16xbf16>, vector<16x64xbf16>, vector<16x64xf32> -> vector<16x64xf32>
    %126 = arith.addf %121, %125 : vector<16x64xf32>
    %c0_55 = arith.constant 0 : index
    %c0_56 = arith.constant 0 : index
    %127 = vector.load %arg24[%c0_55, %c0_56] : memref<16x64xf32, #tpu.memory_space<vmem>>, vector<16x64xf32>
    tpu.vector_store %arg24[%c0_55, %c0_56], %126 {strides = array<i32>} : memref<16x64xf32, #tpu.memory_space<vmem>>, vector<16x64xf32>,
    %128 = vector.extract_strided_slice %23 {offsets = [0, 32], sizes = [16, 16], strides = [1, 1]} : vector<16x64xf32> to vector<16x16xf32>
    %129 = vector.extract_strided_slice %13 {offsets = [0, 32], sizes = [16, 16], strides = [1, 1]} : vector<16x64xf32> to vector<16x16xf32>
    %130 = vector.extract_strided_slice %14 {offsets = [0, 32], sizes = [16, 16], strides = [1, 1]} : vector<16x64xf32> to vector<16x16xf32>
    %131 = arith.truncf %128 : vector<16x16xf32> to vector<16x16xbf16>
    %132 = arith.truncf %129 : vector<16x16xf32> to vector<16x16xbf16>
    %cst_57 = arith.constant dense<0.000000e+00> : vector<16x16xf32>
    %133 = tpu.matmul %131, %132, %cst_57 {dimension_numbers = #tpu.dot_dimension_numbers<[1], [1], [0], [0], [0, 0, 1, 0], [], []>} : vector<16x16xbf16>, vector<16x16xbf16>, vector<16x16xf32> -> vector<16x16xf32>
    %cst_58 = arith.constant 2.500000e-01 : f32
    %134 = vector.broadcast %cst_58 : f32 to vector<16x16xf32>
    %135 = arith.mulf %133, %134 : vector<16x16xf32>
    %136 = arith.addf %135, %66 : vector<16x16xf32>
    %cst_59 = arith.constant dense<0xFF800000> : vector<16xf32>
    %137 = vector.multi_reduction <maximumf>, %136, %cst_59 [1] : vector<16x16xf32> to vector<16xf32>
    %138 = vector.shape_cast %137 : vector<16xf32> to vector<16x1xf32>
    %139 = vector.broadcast %138 : vector<16x1xf32> to vector<16x16xf32>
    %140 = arith.subf %136, %139 : vector<16x16xf32>
    %141 = math.exp %140 : vector<16x16xf32>
    %cst_60 = arith.constant dense<0.000000e+00> : vector<16xf32>
    %142 = vector.multi_reduction <add>, %141, %cst_60 [1] : vector<16x16xf32> to vector<16xf32>
    %143 = vector.shape_cast %142 : vector<16xf32> to vector<16x1xf32>
    %144 = tpu.reciprocal %143 {approx = true} : vector<16x1xf32> -> vector<16x1xf32>
    %145 = vector.broadcast %144 : vector<16x1xf32> to vector<16x16xf32>
    %146 = arith.mulf %141, %145 : vector<16x16xf32>
    %147 = arith.truncf %146 : vector<16x16xf32> to vector<16x16xbf16>
    %148 = arith.truncf %130 : vector<16x16xf32> to vector<16x16xbf16>
    %cst_61 = arith.constant dense<0.000000e+00> : vector<16x16xf32>
    %149 = tpu.matmul %147, %148, %cst_61 {dimension_numbers = #tpu.dot_dimension_numbers<[1], [0], [0], [1], [0, 0, 1, 1], [], []>} : vector<16x16xbf16>, vector<16x16xbf16>, vector<16x16xf32> -> vector<16x16xf32>
    %c0_62 = arith.constant 0 : index
    %c0_63 = arith.constant 0 : index
    %150 = vector.load %arg24[%c0_62, %c0_63] : memref<16x64xf32, #tpu.memory_space<vmem>>, vector<16x64xf32>
    %151 = vector.extract_strided_slice %67 {offsets = [32, 0], sizes = [16, 64], strides = [1, 1]} : vector<64x64xf32> to vector<16x64xf32>
    %152 = arith.truncf %149 : vector<16x16xf32> to vector<16x16xbf16>
    %153 = arith.truncf %151 : vector<16x64xf32> to vector<16x64xbf16>
    %cst_64 = arith.constant dense<0.000000e+00> : vector<16x64xf32>
    %154 = tpu.matmul %152, %153, %cst_64 {dimension_numbers = #tpu.dot_dimension_numbers<[1], [0], [0], [1], [0, 0, 1, 1], [], []>} : vector<16x16xbf16>, vector<16x64xbf16>, vector<16x64xf32> -> vector<16x64xf32>
    %155 = arith.addf %150, %154 : vector<16x64xf32>
    %c0_65 = arith.constant 0 : index
    %c0_66 = arith.constant 0 : index
    %156 = vector.load %arg24[%c0_65, %c0_66] : memref<16x64xf32, #tpu.memory_space<vmem>>, vector<16x64xf32>
    tpu.vector_store %arg24[%c0_65, %c0_66], %155 {strides = array<i32>} : memref<16x64xf32, #tpu.memory_space<vmem>>, vector<16x64xf32>,
    %157 = vector.extract_strided_slice %23 {offsets = [0, 48], sizes = [16, 16], strides = [1, 1]} : vector<16x64xf32> to vector<16x16xf32>
    %158 = vector.extract_strided_slice %13 {offsets = [0, 48], sizes = [16, 16], strides = [1, 1]} : vector<16x64xf32> to vector<16x16xf32>
    %159 = vector.extract_strided_slice %14 {offsets = [0, 48], sizes = [16, 16], strides = [1, 1]} : vector<16x64xf32> to vector<16x16xf32>
    %160 = arith.truncf %157 : vector<16x16xf32> to vector<16x16xbf16>
    %161 = arith.truncf %158 : vector<16x16xf32> to vector<16x16xbf16>
    %cst_67 = arith.constant dense<0.000000e+00> : vector<16x16xf32>
    %162 = tpu.matmul %160, %161, %cst_67 {dimension_numbers = #tpu.dot_dimension_numbers<[1], [1], [0], [0], [0, 0, 1, 0], [], []>} : vector<16x16xbf16>, vector<16x16xbf16>, vector<16x16xf32> -> vector<16x16xf32>
    %cst_68 = arith.constant 2.500000e-01 : f32
    %163 = vector.broadcast %cst_68 : f32 to vector<16x16xf32>
    %164 = arith.mulf %162, %163 : vector<16x16xf32>
    %165 = arith.addf %164, %66 : vector<16x16xf32>
    %cst_69 = arith.constant dense<0xFF800000> : vector<16xf32>
    %166 = vector.multi_reduction <maximumf>, %165, %cst_69 [1] : vector<16x16xf32> to vector<16xf32>
    %167 = vector.shape_cast %166 : vector<16xf32> to vector<16x1xf32>
    %168 = vector.broadcast %167 : vector<16x1xf32> to vector<16x16xf32>
    %169 = arith.subf %165, %168 : vector<16x16xf32>
    %170 = math.exp %169 : vector<16x16xf32>
    %cst_70 = arith.constant dense<0.000000e+00> : vector<16xf32>
    %171 = vector.multi_reduction <add>, %170, %cst_70 [1] : vector<16x16xf32> to vector<16xf32>
    %172 = vector.shape_cast %171 : vector<16xf32> to vector<16x1xf32>
    %173 = tpu.reciprocal %172 {approx = true} : vector<16x1xf32> -> vector<16x1xf32>
    %174 = vector.broadcast %173 : vector<16x1xf32> to vector<16x16xf32>
    %175 = arith.mulf %170, %174 : vector<16x16xf32>
    %176 = arith.truncf %175 : vector<16x16xf32> to vector<16x16xbf16>
    %177 = arith.truncf %159 : vector<16x16xf32> to vector<16x16xbf16>
    %cst_71 = arith.constant dense<0.000000e+00> : vector<16x16xf32>
    %178 = tpu.matmul %176, %177, %cst_71 {dimension_numbers = #tpu.dot_dimension_numbers<[1], [0], [0], [1], [0, 0, 1, 1], [], []>} : vector<16x16xbf16>, vector<16x16xbf16>, vector<16x16xf32> -> vector<16x16xf32>
    %c0_72 = arith.constant 0 : index
    %c0_73 = arith.constant 0 : index
    %179 = vector.load %arg24[%c0_72, %c0_73] : memref<16x64xf32, #tpu.memory_space<vmem>>, vector<16x64xf32>
    %180 = vector.extract_strided_slice %67 {offsets = [48, 0], sizes = [16, 64], strides = [1, 1]} : vector<64x64xf32> to vector<16x64xf32>
    %181 = arith.truncf %178 : vector<16x16xf32> to vector<16x16xbf16>
    %182 = arith.truncf %180 : vector<16x64xf32> to vector<16x64xbf16>
    %cst_74 = arith.constant dense<0.000000e+00> : vector<16x64xf32>
    %183 = tpu.matmul %181, %182, %cst_74 {dimension_numbers = #tpu.dot_dimension_numbers<[1], [0], [0], [1], [0, 0, 1, 1], [], []>} : vector<16x16xbf16>, vector<16x64xbf16>, vector<16x64xf32> -> vector<16x64xf32>
    %184 = arith.addf %179, %183 : vector<16x64xf32>
    %c0_75 = arith.constant 0 : index
    %c0_76 = arith.constant 0 : index
    %185 = vector.load %arg24[%c0_75, %c0_76] : memref<16x64xf32, #tpu.memory_space<vmem>>, vector<16x64xf32>
    tpu.vector_store %arg24[%c0_75, %c0_76], %184 {strides = array<i32>} : memref<16x64xf32, #tpu.memory_space<vmem>>, vector<16x64xf32>,
    %c0_77 = arith.constant 0 : index
    %c0_78 = arith.constant 0 : index
    %186 = vector.load %arg24[%c0_77, %c0_78] : memref<16x64xf32, #tpu.memory_space<vmem>>, vector<16x64xf32>
    %c0_79 = arith.constant 0 : index
    %c0_80 = arith.constant 0 : index
    %187 = vector.load %arg11[%c0_79, %c0_80] : memref<1x64xf32, #tpu.memory_space<vmem>>, vector<1x64xf32>
    %188 = vector.broadcast %187 : vector<1x64xf32> to vector<16x64xf32>
    %189 = arith.addf %186, %188 : vector<16x64xf32>
    %190 = arith.addf %189, %4 : vector<16x64xf32>
    %c0_81 = arith.constant 0 : index
    %c0_82 = arith.constant 0 : index
    %191 = vector.load %arg18[%c0_81, %c0_82] : memref<1x64xf32, #tpu.memory_space<vmem>>, vector<1x64xf32>
    %192 = vector.broadcast %191 : vector<1x64xf32> to vector<16x64xf32>
    %193 = arith.mulf %190, %192 : vector<16x64xf32>
    %c0_83 = arith.constant 0 : index
    %c0_84 = arith.constant 0 : index
    %194 = vector.load %arg19[%c0_83, %c0_84] : memref<1x64xf32, #tpu.memory_space<vmem>>, vector<1x64xf32>
    %195 = vector.broadcast %194 : vector<1x64xf32> to vector<16x64xf32>
    %196 = arith.addf %193, %195 : vector<16x64xf32>
    %197 = arith.addf %64, %196 : vector<16x64xf32>
    %c0_85 = arith.constant 0 : index
    %c0_86 = arith.constant 0 : index
    %198 = vector.load %arg12[%c0_85, %c0_86] : memref<64x128xf32, #tpu.memory_space<vmem>>, vector<64x128xf32>
    %199 = arith.truncf %197 : vector<16x64xf32> to vector<16x64xbf16>
    %200 = arith.truncf %198 : vector<64x128xf32> to vector<64x128xbf16>
    %cst_87 = arith.constant dense<0.000000e+00> : vector<16x128xf32>
    %201 = tpu.matmul %199, %200, %cst_87 {dimension_numbers = #tpu.dot_dimension_numbers<[1], [0], [0], [1], [0, 0, 1, 1], [], []>} : vector<16x64xbf16>, vector<64x128xbf16>, vector<16x128xf32> -> vector<16x128xf32>
    %c0_88 = arith.constant 0 : index
    %c0_89 = arith.constant 0 : index
    %202 = vector.load %arg13[%c0_88, %c0_89] : memref<1x128xf32, #tpu.memory_space<vmem>>, vector<1x128xf32>
    %203 = vector.broadcast %202 : vector<1x128xf32> to vector<16x128xf32>
    %204 = arith.addf %201, %203 : vector<16x128xf32>
    %cst_90 = arith.constant 0.000000e+00 : f32
    %205 = vector.broadcast %cst_90 : f32 to vector<16x128xf32>
    %206 = arith.maximumf %204, %205 : vector<16x128xf32>
    %c0_91 = arith.constant 0 : index
    %c0_92 = arith.constant 0 : index
    %207 = vector.load %arg14[%c0_91, %c0_92] : memref<128x64xf32, #tpu.memory_space<vmem>>, vector<128x64xf32>
    %208 = arith.truncf %206 : vector<16x128xf32> to vector<16x128xbf16>
    %209 = arith.truncf %207 : vector<128x64xf32> to vector<128x64xbf16>
    %cst_93 = arith.constant dense<0.000000e+00> : vector<16x64xf32>
    %210 = tpu.matmul %208, %209, %cst_93 {dimension_numbers = #tpu.dot_dimension_numbers<[1], [0], [0], [1], [0, 0, 1, 1], [], []>} : vector<16x128xbf16>, vector<128x64xbf16>, vector<16x64xf32> -> vector<16x64xf32>
    %c0_94 = arith.constant 0 : index
    %c0_95 = arith.constant 0 : index
    %211 = vector.load %arg15[%c0_94, %c0_95] : memref<1x64xf32, #tpu.memory_space<vmem>>, vector<1x64xf32>
    %212 = vector.broadcast %211 : vector<1x64xf32> to vector<16x64xf32>
    %213 = arith.addf %210, %212 : vector<16x64xf32>
    %214 = arith.addf %197, %213 : vector<16x64xf32>
    %c0_96 = arith.constant 0 : index
    %c0_97 = arith.constant 0 : index
    %215 = vector.load %arg20[%c0_96, %c0_97] : memref<1x64xf32, #tpu.memory_space<vmem>>, vector<1x64xf32>
    %216 = vector.broadcast %215 : vector<1x64xf32> to vector<16x64xf32>
    %217 = arith.mulf %214, %216 : vector<16x64xf32>
    %c0_98 = arith.constant 0 : index
    %c0_99 = arith.constant 0 : index
    %218 = vector.load %arg21[%c0_98, %c0_99] : memref<1x64xf32, #tpu.memory_space<vmem>>, vector<1x64xf32>
    %219 = vector.broadcast %218 : vector<1x64xf32> to vector<16x64xf32>
    %220 = arith.addf %217, %219 : vector<16x64xf32>
    %cst_100 = arith.constant 0.000000e+00 : f32
    %221 = vector.broadcast %cst_100 : f32 to vector<16x64xf32>
    %222 = arith.maximumf %220, %221 : vector<16x64xf32>
    %c0_101 = arith.constant 0 : index
    %c0_102 = arith.constant 0 : index
    %223 = vector.load %arg22[%c0_101, %c0_102] : memref<16x64xf32, #tpu.memory_space<vmem>>, vector<16x64xf32>
    tpu.vector_store %arg22[%c0_101, %c0_102], %222 {strides = array<i32>} : memref<16x64xf32, #tpu.memory_space<vmem>>, vector<16x64xf32>,
    return
  }
  func.func @transform_0(%arg0: i32) -> (i32, i32) {
    %c0_i32 = arith.constant 0 : i32
    %c0_i32_0 = arith.constant 0 : i32
    %c0_i32_1 = arith.constant 0 : i32
    return %c0_i32, %c0_i32_0 : i32, i32
  }
  func.func @transform_1(%arg0: i32) -> (i32, i32) {
    %c0_i32 = arith.constant 0 : i32
    %c0_i32_0 = arith.constant 0 : i32
    return %arg0, %c0_i32 : i32, i32
  }
  func.func @transform_2(%arg0: i32) -> (i32, i32) {
    %c0_i32 = arith.constant 0 : i32
    %c0_i32_0 = arith.constant 0 : i32
    return %arg0, %c0_i32 : i32, i32
  }
  func.func @transform_3(%arg0: i32) -> (i32, i32) {
    %c0_i32 = arith.constant 0 : i32
    %c0_i32_0 = arith.constant 0 : i32
    %c0_i32_1 = arith.constant 0 : i32
    return %c0_i32, %c0_i32_0 : i32, i32
  }
  func.func @transform_4(%arg0: i32) -> (i32, i32) {
    %c0_i32 = arith.constant 0 : i32
    %c0_i32_0 = arith.constant 0 : i32
    %c0_i32_1 = arith.constant 0 : i32
    return %c0_i32, %c0_i32_0 : i32, i32
  }
  func.func @transform_5(%arg0: i32) -> (i32, i32) {
    %c0_i32 = arith.constant 0 : i32
    %c0_i32_0 = arith.constant 0 : i32
    %c0_i32_1 = arith.constant 0 : i32
    return %c0_i32, %c0_i32_0 : i32, i32
  }
  func.func @transform_6(%arg0: i32) -> (i32, i32) {
    %c0_i32 = arith.constant 0 : i32
    %c0_i32_0 = arith.constant 0 : i32
    %c0_i32_1 = arith.constant 0 : i32
    return %c0_i32, %c0_i32_0 : i32, i32
  }
  func.func @transform_7(%arg0: i32) -> (i32, i32) {
    %c0_i32 = arith.constant 0 : i32
    %c0_i32_0 = arith.constant 0 : i32
    %c0_i32_1 = arith.constant 0 : i32
    return %c0_i32, %c0_i32_0 : i32, i32
  }
  func.func @transform_8(%arg0: i32) -> (i32, i32) {
    %c0_i32 = arith.constant 0 : i32
    %c0_i32_0 = arith.constant 0 : i32
    %c0_i32_1 = arith.constant 0 : i32
    return %c0_i32, %c0_i32_0 : i32, i32
  }
  func.func @transform_9(%arg0: i32) -> (i32, i32) {
    %c0_i32 = arith.constant 0 : i32
    %c0_i32_0 = arith.constant 0 : i32
    %c0_i32_1 = arith.constant 0 : i32
    return %c0_i32, %c0_i32_0 : i32, i32
  }
  func.func @transform_10(%arg0: i32) -> (i32, i32) {
    %c0_i32 = arith.constant 0 : i32
    %c0_i32_0 = arith.constant 0 : i32
    %c0_i32_1 = arith.constant 0 : i32
    return %c0_i32, %c0_i32_0 : i32, i32
  }
  func.func @transform_11(%arg0: i32) -> (i32, i32) {
    %c0_i32 = arith.constant 0 : i32
    %c0_i32_0 = arith.constant 0 : i32
    %c0_i32_1 = arith.constant 0 : i32
    return %c0_i32, %c0_i32_0 : i32, i32
  }
  func.func @transform_12(%arg0: i32) -> (i32, i32) {
    %c0_i32 = arith.constant 0 : i32
    %c0_i32_0 = arith.constant 0 : i32
    %c0_i32_1 = arith.constant 0 : i32
    return %c0_i32, %c0_i32_0 : i32, i32
  }
  func.func @transform_13(%arg0: i32) -> (i32, i32) {
    %c0_i32 = arith.constant 0 : i32
    %c0_i32_0 = arith.constant 0 : i32
    %c0_i32_1 = arith.constant 0 : i32
    return %c0_i32, %c0_i32_0 : i32, i32
  }
  func.func @transform_14(%arg0: i32) -> (i32, i32) {
    %c0_i32 = arith.constant 0 : i32
    %c0_i32_0 = arith.constant 0 : i32
    %c0_i32_1 = arith.constant 0 : i32
    return %c0_i32, %c0_i32_0 : i32, i32
  }
  func.func @transform_15(%arg0: i32) -> (i32, i32) {
    %c0_i32 = arith.constant 0 : i32
    %c0_i32_0 = arith.constant 0 : i32
    %c0_i32_1 = arith.constant 0 : i32
    return %c0_i32, %c0_i32_0 : i32, i32
  }
  func.func @transform_16(%arg0: i32) -> (i32, i32) {
    %c0_i32 = arith.constant 0 : i32
    %c0_i32_0 = arith.constant 0 : i32
    %c0_i32_1 = arith.constant 0 : i32
    return %c0_i32, %c0_i32_0 : i32, i32
  }
  func.func @transform_17(%arg0: i32) -> (i32, i32) {
    %c0_i32 = arith.constant 0 : i32
    %c0_i32_0 = arith.constant 0 : i32
    %c0_i32_1 = arith.constant 0 : i32
    return %c0_i32, %c0_i32_0 : i32, i32
  }
  func.func @transform_18(%arg0: i32) -> (i32, i32) {
    %c0_i32 = arith.constant 0 : i32
    %c0_i32_0 = arith.constant 0 : i32
    %c0_i32_1 = arith.constant 0 : i32
    return %c0_i32, %c0_i32_0 : i32, i32
  }
  func.func @transform_19(%arg0: i32) -> (i32, i32) {
    %c0_i32 = arith.constant 0 : i32
    %c0_i32_0 = arith.constant 0 : i32
    %c0_i32_1 = arith.constant 0 : i32
    return %c0_i32, %c0_i32_0 : i32, i32
  }
  func.func @transform_20(%arg0: i32) -> (i32, i32) {
    %c0_i32 = arith.constant 0 : i32
    %c0_i32_0 = arith.constant 0 : i32
    %c0_i32_1 = arith.constant 0 : i32
    return %c0_i32, %c0_i32_0 : i32, i32
  }
  func.func @transform_21(%arg0: i32) -> (i32, i32) {
    %c0_i32 = arith.constant 0 : i32
    %c0_i32_0 = arith.constant 0 : i32
    return %arg0, %c0_i32 : i32, i32
  }
}

module attributes {stable_mosaic.version = 11 : i64} {
  func.func @_gps_layer_kernel(%arg0: i32, %arg1: memref<16x64xf32, #tpu.memory_space<vmem>>, %arg2: memref<16x16xbf16, #tpu.memory_space<vmem>>, %arg3: memref<16x16xbf16, #tpu.memory_space<vmem>>, %arg4: memref<64x192xf32, #tpu.memory_space<vmem>>, %arg5: memref<1x192xf32, #tpu.memory_space<vmem>>, %arg6: memref<64x128xf32, #tpu.memory_space<vmem>>, %arg7: memref<1x128xf32, #tpu.memory_space<vmem>>, %arg8: memref<1x64xf32, #tpu.memory_space<vmem>>, %arg9: memref<1x64xf32, #tpu.memory_space<vmem>>, %arg10: memref<64x64xf32, #tpu.memory_space<vmem>>, %arg11: memref<1x64xf32, #tpu.memory_space<vmem>>, %arg12: memref<64x128xf32, #tpu.memory_space<vmem>>, %arg13: memref<1x128xf32, #tpu.memory_space<vmem>>, %arg14: memref<128x64xf32, #tpu.memory_space<vmem>>, %arg15: memref<1x64xf32, #tpu.memory_space<vmem>>, %arg16: memref<1x64xf32, #tpu.memory_space<vmem>>, %arg17: memref<1x64xf32, #tpu.memory_space<vmem>>, %arg18: memref<1x64xf32, #tpu.memory_space<vmem>>, %arg19: memref<1x64xf32, #tpu.memory_space<vmem>>, %arg20: memref<1x64xf32, #tpu.memory_space<vmem>>, %arg21: memref<1x64xf32, #tpu.memory_space<vmem>>, %arg22: memref<16x64xf32, #tpu.memory_space<vmem>>, %arg23: memref<16x16xf32, #tpu.memory_space<vmem>>, %arg24: memref<16x64xf32, #tpu.memory_space<vmem>>) attributes {dimension_semantics = [#tpu.dimension_semantics<parallel>], iteration_bounds = array<i64: 1>, scalar_prefetch = 0 : i64, scratch_operands = 2 : i64, tpu.core_type = #tpu.core_type<tc>, window_params = [{pipeline_mode = #tpu.pipeline_mode<synchronous>, transform_indices = @transform_0, window_bounds = array<i64: 16, 64>}, {transform_indices = @transform_1, window_bounds = array<i64: 16, 16>}, {transform_indices = @transform_2, window_bounds = array<i64: 16, 16>}, {pipeline_mode = #tpu.pipeline_mode<synchronous>, transform_indices = @transform_3, window_bounds = array<i64: 64, 192>}, {pipeline_mode = #tpu.pipeline_mode<synchronous>, transform_indices = @transform_4, window_bounds = array<i64: 1, 192>}, {pipeline_mode = #tpu.pipeline_mode<synchronous>, transform_indices = @transform_5, window_bounds = array<i64: 64, 128>}, {pipeline_mode = #tpu.pipeline_mode<synchronous>, transform_indices = @transform_6, window_bounds = array<i64: 1, 128>}, {pipeline_mode = #tpu.pipeline_mode<synchronous>, transform_indices = @transform_7, window_bounds = array<i64: 1, 64>}, {pipeline_mode = #tpu.pipeline_mode<synchronous>, transform_indices = @transform_8, window_bounds = array<i64: 1, 64>}, {pipeline_mode = #tpu.pipeline_mode<synchronous>, transform_indices = @transform_9, window_bounds = array<i64: 64, 64>}, {pipeline_mode = #tpu.pipeline_mode<synchronous>, transform_indices = @transform_10, window_bounds = array<i64: 1, 64>}, {pipeline_mode = #tpu.pipeline_mode<synchronous>, transform_indices = @transform_11, window_bounds = array<i64: 64, 128>}, {pipeline_mode = #tpu.pipeline_mode<synchronous>, transform_indices = @transform_12, window_bounds = array<i64: 1, 128>}, {pipeline_mode = #tpu.pipeline_mode<synchronous>, transform_indices = @transform_13, window_bounds = array<i64: 128, 64>}, {pipeline_mode = #tpu.pipeline_mode<synchronous>, transform_indices = @transform_14, window_bounds = array<i64: 1, 64>}, {pipeline_mode = #tpu.pipeline_mode<synchronous>, transform_indices = @transform_15, window_bounds = array<i64: 1, 64>}, {pipeline_mode = #tpu.pipeline_mode<synchronous>, transform_indices = @transform_16, window_bounds = array<i64: 1, 64>}, {pipeline_mode = #tpu.pipeline_mode<synchronous>, transform_indices = @transform_17, window_bounds = array<i64: 1, 64>}, {pipeline_mode = #tpu.pipeline_mode<synchronous>, transform_indices = @transform_18, window_bounds = array<i64: 1, 64>}, {pipeline_mode = #tpu.pipeline_mode<synchronous>, transform_indices = @transform_19, window_bounds = array<i64: 1, 64>}, {pipeline_mode = #tpu.pipeline_mode<synchronous>, transform_indices = @transform_20, window_bounds = array<i64: 1, 64>}, {transform_indices = @transform_21, window_bounds = array<i64: 16, 64>}]} {
    %c16_i32 = arith.constant 16 : i32
    %0 = arith.muli %arg0, %c16_i32 : i32
    %1 = tpu.assume_multiple %0, 16 : i32
    %c0 = arith.constant 0 : index
    %c0_0 = arith.constant 0 : index
    %2 = vector.load %arg1[%c0, %c0_0] : memref<16x64xf32, #tpu.memory_space<vmem>>, vector<16x64xf32>
    %3 = arith.index_cast %1 : i32 to index
    %c0_1 = arith.constant 0 : index
    %4 = vector.load %arg1[%3, %c0_1] : memref<16x64xf32, #tpu.memory_space<vmem>>, vector<16x64xf32>
    %c0_2 = arith.constant 0 : index
    %c0_3 = arith.constant 0 : index
    %5 = vector.load %arg4[%c0_2, %c0_3] : memref<64x192xf32, #tpu.memory_space<vmem>>, vector<64x192xf32>
    %6 = arith.truncf %2 : vector<16x64xf32> to vector<16x64xbf16>
    %7 = arith.truncf %5 : vector<64x192xf32> to vector<64x192xbf16>
    %cst = arith.constant dense<0.000000e+00> : vector<16x192xf32>
    %8 = tpu.matmul %6, %7, %cst {dimension_numbers = #tpu.dot_dimension_numbers<[1], [0], [0], [1], [0, 0, 1, 1], [], []>} : vector<16x64xbf16>, vector<64x192xbf16>, vector<16x192xf32> -> vector<16x192xf32>
    %c0_4 = arith.constant 0 : index
    %c0_5 = arith.constant 0 : index
    %9 = vector.load %arg5[%c0_4, %c0_5] : memref<1x192xf32, #tpu.memory_space<vmem>>, vector<1x192xf32>
    %10 = vector.broadcast %9 : vector<1x192xf32> to vector<16x192xf32>
    %11 = arith.addf %8, %10 : vector<16x192xf32>
    %12 = vector.extract_strided_slice %11 {offsets = [0, 0], sizes = [16, 64], strides = [1, 1]} : vector<16x192xf32> to vector<16x64xf32>
    %13 = vector.extract_strided_slice %11 {offsets = [0, 64], sizes = [16, 64], strides = [1, 1]} : vector<16x192xf32> to vector<16x64xf32>
    %14 = vector.extract_strided_slice %11 {offsets = [0, 128], sizes = [16, 64], strides = [1, 1]} : vector<16x192xf32> to vector<16x64xf32>
    %c0_6 = arith.constant 0 : index
    %c0_7 = arith.constant 0 : index
    %15 = vector.load %arg6[%c0_6, %c0_7] : memref<64x128xf32, #tpu.memory_space<vmem>>, vector<64x128xf32>
    %16 = arith.truncf %4 : vector<16x64xf32> to vector<16x64xbf16>
    %17 = arith.truncf %15 : vector<64x128xf32> to vector<64x128xbf16>
    %cst_8 = arith.constant dense<0.000000e+00> : vector<16x128xf32>
    %18 = tpu.matmul %16, %17, %cst_8 {dimension_numbers = #tpu.dot_dimension_numbers<[1], [0], [0], [1], [0, 0, 1, 1], [], []>} : vector<16x64xbf16>, vector<64x128xbf16>, vector<16x128xf32> -> vector<16x128xf32>
    %c0_9 = arith.constant 0 : index
    %c0_10 = arith.constant 0 : index
    %19 = vector.load %arg7[%c0_9, %c0_10] : memref<1x128xf32, #tpu.memory_space<vmem>>, vector<1x128xf32>
    %20 = vector.broadcast %19 : vector<1x128xf32> to vector<16x128xf32>
    %21 = arith.addf %18, %20 : vector<16x128xf32>
    %22 = vector.extract_strided_slice %21 {offsets = [0, 0], sizes = [16, 64], strides = [1, 1]} : vector<16x128xf32> to vector<16x64xf32>
    %23 = vector.extract_strided_slice %21 {offsets = [0, 64], sizes = [16, 64], strides = [1, 1]} : vector<16x128xf32> to vector<16x64xf32>
    %c0_11 = arith.constant 0 : index
    %c0_12 = arith.constant 0 : index
    %24 = vector.load %arg8[%c0_11, %c0_12] : memref<1x64xf32, #tpu.memory_space<vmem>>, vector<1x64xf32>
    %25 = vector.shape_cast %22 : vector<16x64xf32> to vector<16x1x64xf32>
    %26 = vector.shape_cast %12 : vector<16x64xf32> to vector<1x16x64xf32>
    %27 = vector.broadcast %25 : vector<16x1x64xf32> to vector<16x16x64xf32>
    %28 = vector.broadcast %26 : vector<1x16x64xf32> to vector<16x16x64xf32>
    %29 = arith.addf %27, %28 : vector<16x16x64xf32>
    %cst_13 = arith.constant 2.000000e-01 : f32
    %30 = vector.broadcast %cst_13 : f32 to vector<16x16x64xf32>
    %31 = arith.mulf %30, %29 : vector<16x16x64xf32>
    %32 = arith.maximumf %29, %31 : vector<16x16x64xf32>
    %33 = vector.shape_cast %24 : vector<1x64xf32> to vector<1x1x64xf32>
    %34 = vector.broadcast %33 : vector<1x1x64xf32> to vector<16x16x64xf32>
    %35 = arith.mulf %32, %34 : vector<16x16x64xf32>
    %cst_14 = arith.constant dense<0.000000e+00> : vector<16x16xf32>
    %36 = vector.multi_reduction <add>, %35, %cst_14 [2] : vector<16x16x64xf32> to vector<16x16xf32>
    %c0_15 = arith.constant 0 : index
    %c0_16 = arith.constant 0 : index
    %37 = vector.load %arg23[%c0_15, %c0_16] : memref<16x16xf32, #tpu.memory_space<vmem>>, vector<16x16xf32>
    tpu.vector_store %arg23[%c0_15, %c0_16], %36 {strides = array<i32>} : memref<16x16xf32, #tpu.memory_space<vmem>>, vector<16x16xf32>,
    %c0_17 = arith.constant 0 : index
    %c0_18 = arith.constant 0 : index
    %38 = vector.load %arg23[%c0_17, %c0_18] : memref<16x16xf32, #tpu.memory_space<vmem>>, vector<16x16xf32>
    %c0_19 = arith.constant 0 : index
    %c0_20 = arith.constant 0 : index
    %39 = vector.load %arg2[%c0_19, %c0_20] : memref<16x16xbf16, #tpu.memory_space<vmem>>, vector<16x16xbf16>
    %40 = arith.extf %39 : vector<16x16xbf16> to vector<16x16xf32>
    %41 = arith.addf %38, %40 : vector<16x16xf32>
    %cst_21 = arith.constant dense<0xFF800000> : vector<16xf32>
    %42 = vector.multi_reduction <maximumf>, %41, %cst_21 [1] : vector<16x16xf32> to vector<16xf32>
    %43 = vector.shape_cast %42 : vector<16xf32> to vector<16x1xf32>
    %44 = vector.broadcast %43 : vector<16x1xf32> to vector<16x16xf32>
    %45 = arith.subf %41, %44 : vector<16x16xf32>
    %46 = math.exp %45 : vector<16x16xf32>
    %cst_22 = arith.constant dense<0.000000e+00> : vector<16xf32>
    %47 = vector.multi_reduction <add>, %46, %cst_22 [1] : vector<16x16xf32> to vector<16xf32>
    %48 = vector.shape_cast %47 : vector<16xf32> to vector<16x1xf32>
    %49 = tpu.reciprocal %48 {approx = true} : vector<16x1xf32> -> vector<16x1xf32>
    %50 = vector.broadcast %49 : vector<16x1xf32> to vector<16x16xf32>
    %51 = arith.mulf %46, %50 : vector<16x16xf32>
    %52 = arith.truncf %51 : vector<16x16xf32> to vector<16x16xbf16>
    %53 = arith.truncf %12 : vector<16x64xf32> to vector<16x64xbf16>
    %cst_23 = arith.constant dense<0.000000e+00> : vector<16x64xf32>
    %54 = tpu.matmul %52, %53, %cst_23 {dimension_numbers = #tpu.dot_dimension_numbers<[1], [0], [0], [1], [0, 0, 1, 1], [], []>} : vector<16x16xbf16>, vector<16x64xbf16>, vector<16x64xf32> -> vector<16x64xf32>
    %c0_24 = arith.constant 0 : index
    %c0_25 = arith.constant 0 : index
    %55 = vector.load %arg9[%c0_24, %c0_25] : memref<1x64xf32, #tpu.memory_space<vmem>>, vector<1x64xf32>
    %56 = vector.broadcast %55 : vector<1x64xf32> to vector<16x64xf32>
    %57 = arith.addf %54, %56 : vector<16x64xf32>
    %58 = arith.addf %57, %4 : vector<16x64xf32>
    %c0_26 = arith.constant 0 : index
    %c0_27 = arith.constant 0 : index
    %59 = vector.load %arg16[%c0_26, %c0_27] : memref<1x64xf32, #tpu.memory_space<vmem>>, vector<1x64xf32>
    %60 = vector.broadcast %59 : vector<1x64xf32> to vector<16x64xf32>
    %61 = arith.mulf %58, %60 : vector<16x64xf32>
    %c0_28 = arith.constant 0 : index
    %c0_29 = arith.constant 0 : index
    %62 = vector.load %arg17[%c0_28, %c0_29] : memref<1x64xf32, #tpu.memory_space<vmem>>, vector<1x64xf32>
    %63 = vector.broadcast %62 : vector<1x64xf32> to vector<16x64xf32>
    %64 = arith.addf %61, %63 : vector<16x64xf32>
    %c0_30 = arith.constant 0 : index
    %c0_31 = arith.constant 0 : index
    %65 = vector.load %arg3[%c0_30, %c0_31] : memref<16x16xbf16, #tpu.memory_space<vmem>>, vector<16x16xbf16>
    %66 = arith.extf %65 : vector<16x16xbf16> to vector<16x16xf32>
    %c0_32 = arith.constant 0 : index
    %c0_33 = arith.constant 0 : index
    %67 = vector.load %arg10[%c0_32, %c0_33] : memref<64x64xf32, #tpu.memory_space<vmem>>, vector<64x64xf32>
    %cst_34 = arith.constant 0.000000e+00 : f32
    %68 = vector.broadcast %cst_34 : f32 to vector<16x64xf32>
    %c0_35 = arith.constant 0 : index
    %c0_36 = arith.constant 0 : index
    %69 = vector.load %arg24[%c0_35, %c0_36] : memref<16x64xf32, #tpu.memory_space<vmem>>, vector<16x64xf32>
    tpu.vector_store %arg24[%c0_35, %c0_36], %68 {strides = array<i32>} : memref<16x64xf32, #tpu.memory_space<vmem>>, vector<16x64xf32>,
    %70 = vector.extract_strided_slice %23 {offsets = [0, 0], sizes = [16, 16], strides = [1, 1]} : vector<16x64xf32> to vector<16x16xf32>
    %71 = vector.extract_strided_slice %13 {offsets = [0, 0], sizes = [16, 16], strides = [1, 1]} : vector<16x64xf32> to vector<16x16xf32>
    %72 = vector.extract_strided_slice %14 {offsets = [0, 0], sizes = [16, 16], strides = [1, 1]} : vector<16x64xf32> to vector<16x16xf32>
    %73 = arith.truncf %70 : vector<16x16xf32> to vector<16x16xbf16>
    %74 = arith.truncf %71 : vector<16x16xf32> to vector<16x16xbf16>
    %cst_37 = arith.constant dense<0.000000e+00> : vector<16x16xf32>
    %75 = tpu.matmul %73, %74, %cst_37 {dimension_numbers = #tpu.dot_dimension_numbers<[1], [1], [0], [0], [0, 0, 1, 0], [], []>} : vector<16x16xbf16>, vector<16x16xbf16>, vector<16x16xf32> -> vector<16x16xf32>
    %cst_38 = arith.constant 2.500000e-01 : f32
    %76 = vector.broadcast %cst_38 : f32 to vector<16x16xf32>
    %77 = arith.mulf %75, %76 : vector<16x16xf32>
    %78 = arith.addf %77, %66 : vector<16x16xf32>
    %cst_39 = arith.constant dense<0xFF800000> : vector<16xf32>
    %79 = vector.multi_reduction <maximumf>, %78, %cst_39 [1] : vector<16x16xf32> to vector<16xf32>
    %80 = vector.shape_cast %79 : vector<16xf32> to vector<16x1xf32>
    %81 = vector.broadcast %80 : vector<16x1xf32> to vector<16x16xf32>
    %82 = arith.subf %78, %81 : vector<16x16xf32>
    %83 = math.exp %82 : vector<16x16xf32>
    %cst_40 = arith.constant dense<0.000000e+00> : vector<16xf32>
    %84 = vector.multi_reduction <add>, %83, %cst_40 [1] : vector<16x16xf32> to vector<16xf32>
    %85 = vector.shape_cast %84 : vector<16xf32> to vector<16x1xf32>
    %86 = tpu.reciprocal %85 {approx = true} : vector<16x1xf32> -> vector<16x1xf32>
    %87 = vector.broadcast %86 : vector<16x1xf32> to vector<16x16xf32>
    %88 = arith.mulf %83, %87 : vector<16x16xf32>
    %89 = arith.truncf %88 : vector<16x16xf32> to vector<16x16xbf16>
    %90 = arith.truncf %72 : vector<16x16xf32> to vector<16x16xbf16>
    %cst_41 = arith.constant dense<0.000000e+00> : vector<16x16xf32>
    %91 = tpu.matmul %89, %90, %cst_41 {dimension_numbers = #tpu.dot_dimension_numbers<[1], [0], [0], [1], [0, 0, 1, 1], [], []>} : vector<16x16xbf16>, vector<16x16xbf16>, vector<16x16xf32> -> vector<16x16xf32>
    %c0_42 = arith.constant 0 : index
    %c0_43 = arith.constant 0 : index
    %92 = vector.load %arg24[%c0_42, %c0_43] : memref<16x64xf32, #tpu.memory_space<vmem>>, vector<16x64xf32>
    %93 = vector.extract_strided_slice %67 {offsets = [0, 0], sizes = [16, 64], strides = [1, 1]} : vector<64x64xf32> to vector<16x64xf32>
    %94 = arith.truncf %91 : vector<16x16xf32> to vector<16x16xbf16>
    %95 = arith.truncf %93 : vector<16x64xf32> to vector<16x64xbf16>
    %cst_44 = arith.constant dense<0.000000e+00> : vector<16x64xf32>
    %96 = tpu.matmul %94, %95, %cst_44 {dimension_numbers = #tpu.dot_dimension_numbers<[1], [0], [0], [1], [0, 0, 1, 1], [], []>} : vector<16x16xbf16>, vector<16x64xbf16>, vector<16x64xf32> -> vector<16x64xf32>
    %97 = arith.addf %92, %96 : vector<16x64xf32>
    %c0_45 = arith.constant 0 : index
    %c0_46 = arith.constant 0 : index
    %98 = vector.load %arg24[%c0_45, %c0_46] : memref<16x64xf32, #tpu.memory_space<vmem>>, vector<16x64xf32>
    tpu.vector_store %arg24[%c0_45, %c0_46], %97 {strides = array<i32>} : memref<16x64xf32, #tpu.memory_space<vmem>>, vector<16x64xf32>,
    %99 = vector.extract_strided_slice %23 {offsets = [0, 16], sizes = [16, 16], strides = [1, 1]} : vector<16x64xf32> to vector<16x16xf32>
    %100 = vector.extract_strided_slice %13 {offsets = [0, 16], sizes = [16, 16], strides = [1, 1]} : vector<16x64xf32> to vector<16x16xf32>
    %101 = vector.extract_strided_slice %14 {offsets = [0, 16], sizes = [16, 16], strides = [1, 1]} : vector<16x64xf32> to vector<16x16xf32>
    %102 = arith.truncf %99 : vector<16x16xf32> to vector<16x16xbf16>
    %103 = arith.truncf %100 : vector<16x16xf32> to vector<16x16xbf16>
    %cst_47 = arith.constant dense<0.000000e+00> : vector<16x16xf32>
    %104 = tpu.matmul %102, %103, %cst_47 {dimension_numbers = #tpu.dot_dimension_numbers<[1], [1], [0], [0], [0, 0, 1, 0], [], []>} : vector<16x16xbf16>, vector<16x16xbf16>, vector<16x16xf32> -> vector<16x16xf32>
    %cst_48 = arith.constant 2.500000e-01 : f32
    %105 = vector.broadcast %cst_48 : f32 to vector<16x16xf32>
    %106 = arith.mulf %104, %105 : vector<16x16xf32>
    %107 = arith.addf %106, %66 : vector<16x16xf32>
    %cst_49 = arith.constant dense<0xFF800000> : vector<16xf32>
    %108 = vector.multi_reduction <maximumf>, %107, %cst_49 [1] : vector<16x16xf32> to vector<16xf32>
    %109 = vector.shape_cast %108 : vector<16xf32> to vector<16x1xf32>
    %110 = vector.broadcast %109 : vector<16x1xf32> to vector<16x16xf32>
    %111 = arith.subf %107, %110 : vector<16x16xf32>
    %112 = math.exp %111 : vector<16x16xf32>
    %cst_50 = arith.constant dense<0.000000e+00> : vector<16xf32>
    %113 = vector.multi_reduction <add>, %112, %cst_50 [1] : vector<16x16xf32> to vector<16xf32>
    %114 = vector.shape_cast %113 : vector<16xf32> to vector<16x1xf32>
    %115 = tpu.reciprocal %114 {approx = true} : vector<16x1xf32> -> vector<16x1xf32>
    %116 = vector.broadcast %115 : vector<16x1xf32> to vector<16x16xf32>
    %117 = arith.mulf %112, %116 : vector<16x16xf32>
    %118 = arith.truncf %117 : vector<16x16xf32> to vector<16x16xbf16>
    %119 = arith.truncf %101 : vector<16x16xf32> to vector<16x16xbf16>
    %cst_51 = arith.constant dense<0.000000e+00> : vector<16x16xf32>
    %120 = tpu.matmul %118, %119, %cst_51 {dimension_numbers = #tpu.dot_dimension_numbers<[1], [0], [0], [1], [0, 0, 1, 1], [], []>} : vector<16x16xbf16>, vector<16x16xbf16>, vector<16x16xf32> -> vector<16x16xf32>
    %c0_52 = arith.constant 0 : index
    %c0_53 = arith.constant 0 : index
    %121 = vector.load %arg24[%c0_52, %c0_53] : memref<16x64xf32, #tpu.memory_space<vmem>>, vector<16x64xf32>
    %122 = vector.extract_strided_slice %67 {offsets = [16, 0], sizes = [16, 64], strides = [1, 1]} : vector<64x64xf32> to vector<16x64xf32>
    %123 = arith.truncf %120 : vector<16x16xf32> to vector<16x16xbf16>
    %124 = arith.truncf %122 : vector<16x64xf32> to vector<16x64xbf16>
    %cst_54 = arith.constant dense<0.000000e+00> : vector<16x64xf32>
    %125 = tpu.matmul %123, %124, %cst_54 {dimension_numbers = #tpu.dot_dimension_numbers<[1], [0], [0], [1], [0, 0, 1, 1], [], []>} : vector<16x16xbf16>, vector<16x64xbf16>, vector<16x64xf32> -> vector<16x64xf32>
    %126 = arith.addf %121, %125 : vector<16x64xf32>
    %c0_55 = arith.constant 0 : index
    %c0_56 = arith.constant 0 : index
    %127 = vector.load %arg24[%c0_55, %c0_56] : memref<16x64xf32, #tpu.memory_space<vmem>>, vector<16x64xf32>
    tpu.vector_store %arg24[%c0_55, %c0_56], %126 {strides = array<i32>} : memref<16x64xf32, #tpu.memory_space<vmem>>, vector<16x64xf32>,
    %128 = vector.extract_strided_slice %23 {offsets = [0, 32], sizes = [16, 16], strides = [1, 1]} : vector<16x64xf32> to vector<16x16xf32>
    %129 = vector.extract_strided_slice %13 {offsets = [0, 32], sizes = [16, 16], strides = [1, 1]} : vector<16x64xf32> to vector<16x16xf32>
    %130 = vector.extract_strided_slice %14 {offsets = [0, 32], sizes = [16, 16], strides = [1, 1]} : vector<16x64xf32> to vector<16x16xf32>
    %131 = arith.truncf %128 : vector<16x16xf32> to vector<16x16xbf16>
    %132 = arith.truncf %129 : vector<16x16xf32> to vector<16x16xbf16>
    %cst_57 = arith.constant dense<0.000000e+00> : vector<16x16xf32>
    %133 = tpu.matmul %131, %132, %cst_57 {dimension_numbers = #tpu.dot_dimension_numbers<[1], [1], [0], [0], [0, 0, 1, 0], [], []>} : vector<16x16xbf16>, vector<16x16xbf16>, vector<16x16xf32> -> vector<16x16xf32>
    %cst_58 = arith.constant 2.500000e-01 : f32
    %134 = vector.broadcast %cst_58 : f32 to vector<16x16xf32>
    %135 = arith.mulf %133, %134 : vector<16x16xf32>
    %136 = arith.addf %135, %66 : vector<16x16xf32>
    %cst_59 = arith.constant dense<0xFF800000> : vector<16xf32>
    %137 = vector.multi_reduction <maximumf>, %136, %cst_59 [1] : vector<16x16xf32> to vector<16xf32>
    %138 = vector.shape_cast %137 : vector<16xf32> to vector<16x1xf32>
    %139 = vector.broadcast %138 : vector<16x1xf32> to vector<16x16xf32>
    %140 = arith.subf %136, %139 : vector<16x16xf32>
    %141 = math.exp %140 : vector<16x16xf32>
    %cst_60 = arith.constant dense<0.000000e+00> : vector<16xf32>
    %142 = vector.multi_reduction <add>, %141, %cst_60 [1] : vector<16x16xf32> to vector<16xf32>
    %143 = vector.shape_cast %142 : vector<16xf32> to vector<16x1xf32>
    %144 = tpu.reciprocal %143 {approx = true} : vector<16x1xf32> -> vector<16x1xf32>
    %145 = vector.broadcast %144 : vector<16x1xf32> to vector<16x16xf32>
    %146 = arith.mulf %141, %145 : vector<16x16xf32>
    %147 = arith.truncf %146 : vector<16x16xf32> to vector<16x16xbf16>
    %148 = arith.truncf %130 : vector<16x16xf32> to vector<16x16xbf16>
    %cst_61 = arith.constant dense<0.000000e+00> : vector<16x16xf32>
    %149 = tpu.matmul %147, %148, %cst_61 {dimension_numbers = #tpu.dot_dimension_numbers<[1], [0], [0], [1], [0, 0, 1, 1], [], []>} : vector<16x16xbf16>, vector<16x16xbf16>, vector<16x16xf32> -> vector<16x16xf32>
    %c0_62 = arith.constant 0 : index
    %c0_63 = arith.constant 0 : index
    %150 = vector.load %arg24[%c0_62, %c0_63] : memref<16x64xf32, #tpu.memory_space<vmem>>, vector<16x64xf32>
    %151 = vector.extract_strided_slice %67 {offsets = [32, 0], sizes = [16, 64], strides = [1, 1]} : vector<64x64xf32> to vector<16x64xf32>
    %152 = arith.truncf %149 : vector<16x16xf32> to vector<16x16xbf16>
    %153 = arith.truncf %151 : vector<16x64xf32> to vector<16x64xbf16>
    %cst_64 = arith.constant dense<0.000000e+00> : vector<16x64xf32>
    %154 = tpu.matmul %152, %153, %cst_64 {dimension_numbers = #tpu.dot_dimension_numbers<[1], [0], [0], [1], [0, 0, 1, 1], [], []>} : vector<16x16xbf16>, vector<16x64xbf16>, vector<16x64xf32> -> vector<16x64xf32>
    %155 = arith.addf %150, %154 : vector<16x64xf32>
    %c0_65 = arith.constant 0 : index
    %c0_66 = arith.constant 0 : index
    %156 = vector.load %arg24[%c0_65, %c0_66] : memref<16x64xf32, #tpu.memory_space<vmem>>, vector<16x64xf32>
    tpu.vector_store %arg24[%c0_65, %c0_66], %155 {strides = array<i32>} : memref<16x64xf32, #tpu.memory_space<vmem>>, vector<16x64xf32>,
    %157 = vector.extract_strided_slice %23 {offsets = [0, 48], sizes = [16, 16], strides = [1, 1]} : vector<16x64xf32> to vector<16x16xf32>
    %158 = vector.extract_strided_slice %13 {offsets = [0, 48], sizes = [16, 16], strides = [1, 1]} : vector<16x64xf32> to vector<16x16xf32>
    %159 = vector.extract_strided_slice %14 {offsets = [0, 48], sizes = [16, 16], strides = [1, 1]} : vector<16x64xf32> to vector<16x16xf32>
    %160 = arith.truncf %157 : vector<16x16xf32> to vector<16x16xbf16>
    %161 = arith.truncf %158 : vector<16x16xf32> to vector<16x16xbf16>
    %cst_67 = arith.constant dense<0.000000e+00> : vector<16x16xf32>
    %162 = tpu.matmul %160, %161, %cst_67 {dimension_numbers = #tpu.dot_dimension_numbers<[1], [1], [0], [0], [0, 0, 1, 0], [], []>} : vector<16x16xbf16>, vector<16x16xbf16>, vector<16x16xf32> -> vector<16x16xf32>
    %cst_68 = arith.constant 2.500000e-01 : f32
    %163 = vector.broadcast %cst_68 : f32 to vector<16x16xf32>
    %164 = arith.mulf %162, %163 : vector<16x16xf32>
    %165 = arith.addf %164, %66 : vector<16x16xf32>
    %cst_69 = arith.constant dense<0xFF800000> : vector<16xf32>
    %166 = vector.multi_reduction <maximumf>, %165, %cst_69 [1] : vector<16x16xf32> to vector<16xf32>
    %167 = vector.shape_cast %166 : vector<16xf32> to vector<16x1xf32>
    %168 = vector.broadcast %167 : vector<16x1xf32> to vector<16x16xf32>
    %169 = arith.subf %165, %168 : vector<16x16xf32>
    %170 = math.exp %169 : vector<16x16xf32>
    %cst_70 = arith.constant dense<0.000000e+00> : vector<16xf32>
    %171 = vector.multi_reduction <add>, %170, %cst_70 [1] : vector<16x16xf32> to vector<16xf32>
    %172 = vector.shape_cast %171 : vector<16xf32> to vector<16x1xf32>
    %173 = tpu.reciprocal %172 {approx = true} : vector<16x1xf32> -> vector<16x1xf32>
    %174 = vector.broadcast %173 : vector<16x1xf32> to vector<16x16xf32>
    %175 = arith.mulf %170, %174 : vector<16x16xf32>
    %176 = arith.truncf %175 : vector<16x16xf32> to vector<16x16xbf16>
    %177 = arith.truncf %159 : vector<16x16xf32> to vector<16x16xbf16>
    %cst_71 = arith.constant dense<0.000000e+00> : vector<16x16xf32>
    %178 = tpu.matmul %176, %177, %cst_71 {dimension_numbers = #tpu.dot_dimension_numbers<[1], [0], [0], [1], [0, 0, 1, 1], [], []>} : vector<16x16xbf16>, vector<16x16xbf16>, vector<16x16xf32> -> vector<16x16xf32>
    %c0_72 = arith.constant 0 : index
    %c0_73 = arith.constant 0 : index
    %179 = vector.load %arg24[%c0_72, %c0_73] : memref<16x64xf32, #tpu.memory_space<vmem>>, vector<16x64xf32>
    %180 = vector.extract_strided_slice %67 {offsets = [48, 0], sizes = [16, 64], strides = [1, 1]} : vector<64x64xf32> to vector<16x64xf32>
    %181 = arith.truncf %178 : vector<16x16xf32> to vector<16x16xbf16>
    %182 = arith.truncf %180 : vector<16x64xf32> to vector<16x64xbf16>
    %cst_74 = arith.constant dense<0.000000e+00> : vector<16x64xf32>
    %183 = tpu.matmul %181, %182, %cst_74 {dimension_numbers = #tpu.dot_dimension_numbers<[1], [0], [0], [1], [0, 0, 1, 1], [], []>} : vector<16x16xbf16>, vector<16x64xbf16>, vector<16x64xf32> -> vector<16x64xf32>
    %184 = arith.addf %179, %183 : vector<16x64xf32>
    %c0_75 = arith.constant 0 : index
    %c0_76 = arith.constant 0 : index
    %185 = vector.load %arg24[%c0_75, %c0_76] : memref<16x64xf32, #tpu.memory_space<vmem>>, vector<16x64xf32>
    tpu.vector_store %arg24[%c0_75, %c0_76], %184 {strides = array<i32>} : memref<16x64xf32, #tpu.memory_space<vmem>>, vector<16x64xf32>,
    %c0_77 = arith.constant 0 : index
    %c0_78 = arith.constant 0 : index
    %186 = vector.load %arg24[%c0_77, %c0_78] : memref<16x64xf32, #tpu.memory_space<vmem>>, vector<16x64xf32>
    %c0_79 = arith.constant 0 : index
    %c0_80 = arith.constant 0 : index
    %187 = vector.load %arg11[%c0_79, %c0_80] : memref<1x64xf32, #tpu.memory_space<vmem>>, vector<1x64xf32>
    %188 = vector.broadcast %187 : vector<1x64xf32> to vector<16x64xf32>
    %189 = arith.addf %186, %188 : vector<16x64xf32>
    %190 = arith.addf %189, %4 : vector<16x64xf32>
    %c0_81 = arith.constant 0 : index
    %c0_82 = arith.constant 0 : index
    %191 = vector.load %arg18[%c0_81, %c0_82] : memref<1x64xf32, #tpu.memory_space<vmem>>, vector<1x64xf32>
    %192 = vector.broadcast %191 : vector<1x64xf32> to vector<16x64xf32>
    %193 = arith.mulf %190, %192 : vector<16x64xf32>
    %c0_83 = arith.constant 0 : index
    %c0_84 = arith.constant 0 : index
    %194 = vector.load %arg19[%c0_83, %c0_84] : memref<1x64xf32, #tpu.memory_space<vmem>>, vector<1x64xf32>
    %195 = vector.broadcast %194 : vector<1x64xf32> to vector<16x64xf32>
    %196 = arith.addf %193, %195 : vector<16x64xf32>
    %197 = arith.addf %64, %196 : vector<16x64xf32>
    %c0_85 = arith.constant 0 : index
    %c0_86 = arith.constant 0 : index
    %198 = vector.load %arg12[%c0_85, %c0_86] : memref<64x128xf32, #tpu.memory_space<vmem>>, vector<64x128xf32>
    %199 = arith.truncf %197 : vector<16x64xf32> to vector<16x64xbf16>
    %200 = arith.truncf %198 : vector<64x128xf32> to vector<64x128xbf16>
    %cst_87 = arith.constant dense<0.000000e+00> : vector<16x128xf32>
    %201 = tpu.matmul %199, %200, %cst_87 {dimension_numbers = #tpu.dot_dimension_numbers<[1], [0], [0], [1], [0, 0, 1, 1], [], []>} : vector<16x64xbf16>, vector<64x128xbf16>, vector<16x128xf32> -> vector<16x128xf32>
    %c0_88 = arith.constant 0 : index
    %c0_89 = arith.constant 0 : index
    %202 = vector.load %arg13[%c0_88, %c0_89] : memref<1x128xf32, #tpu.memory_space<vmem>>, vector<1x128xf32>
    %203 = vector.broadcast %202 : vector<1x128xf32> to vector<16x128xf32>
    %204 = arith.addf %201, %203 : vector<16x128xf32>
    %cst_90 = arith.constant 0.000000e+00 : f32
    %205 = vector.broadcast %cst_90 : f32 to vector<16x128xf32>
    %206 = arith.maximumf %204, %205 : vector<16x128xf32>
    %c0_91 = arith.constant 0 : index
    %c0_92 = arith.constant 0 : index
    %207 = vector.load %arg14[%c0_91, %c0_92] : memref<128x64xf32, #tpu.memory_space<vmem>>, vector<128x64xf32>
    %208 = arith.truncf %206 : vector<16x128xf32> to vector<16x128xbf16>
    %209 = arith.truncf %207 : vector<128x64xf32> to vector<128x64xbf16>
    %cst_93 = arith.constant dense<0.000000e+00> : vector<16x64xf32>
    %210 = tpu.matmul %208, %209, %cst_93 {dimension_numbers = #tpu.dot_dimension_numbers<[1], [0], [0], [1], [0, 0, 1, 1], [], []>} : vector<16x128xbf16>, vector<128x64xbf16>, vector<16x64xf32> -> vector<16x64xf32>
    %c0_94 = arith.constant 0 : index
    %c0_95 = arith.constant 0 : index
    %211 = vector.load %arg15[%c0_94, %c0_95] : memref<1x64xf32, #tpu.memory_space<vmem>>, vector<1x64xf32>
    %212 = vector.broadcast %211 : vector<1x64xf32> to vector<16x64xf32>
    %213 = arith.addf %210, %212 : vector<16x64xf32>
    %214 = arith.addf %197, %213 : vector<16x64xf32>
    %c0_96 = arith.constant 0 : index
    %c0_97 = arith.constant 0 : index
    %215 = vector.load %arg20[%c0_96, %c0_97] : memref<1x64xf32, #tpu.memory_space<vmem>>, vector<1x64xf32>
    %216 = vector.broadcast %215 : vector<1x64xf32> to vector<16x64xf32>
    %217 = arith.mulf %214, %216 : vector<16x64xf32>
    %c0_98 = arith.constant 0 : index
    %c0_99 = arith.constant 0 : index
    %218 = vector.load %arg21[%c0_98, %c0_99] : memref<1x64xf32, #tpu.memory_space<vmem>>, vector<1x64xf32>
    %219 = vector.broadcast %218 : vector<1x64xf32> to vector<16x64xf32>
    %220 = arith.addf %217, %219 : vector<16x64xf32>
    %cst_100 = arith.constant 0.000000e+00 : f32
    %221 = vector.broadcast %cst_100 : f32 to vector<16x64xf32>
    %222 = arith.maximumf %220, %221 : vector<16x64xf32>
    %c0_101 = arith.constant 0 : index
    %c0_102 = arith.constant 0 : index
    %223 = vector.load %arg22[%c0_101, %c0_102] : memref<16x64xf32, #tpu.memory_space<vmem>>, vector<16x64xf32>
    tpu.vector_store %arg22[%c0_101, %c0_102], %222 {strides = array<i32>} : memref<16x64xf32, #tpu.memory_space<vmem>>, vector<16x64xf32>,
    return
  }
  func.func @transform_0(%arg0: i32) -> (i32, i32) {
    %c0_i32 = arith.constant 0 : i32
    %c0_i32_0 = arith.constant 0 : i32
    %c0_i32_1 = arith.constant 0 : i32
    return %c0_i32, %c0_i32_0 : i32, i32
  }
  func.func @transform_1(%arg0: i32) -> (i32, i32) {
    %c0_i32 = arith.constant 0 : i32
    %c0_i32_0 = arith.constant 0 : i32
    return %arg0, %c0_i32 : i32, i32
  }
  func.func @transform_2(%arg0: i32) -> (i32, i32) {
    %c0_i32 = arith.constant 0 : i32
    %c0_i32_0 = arith.constant 0 : i32
    return %arg0, %c0_i32 : i32, i32
  }
  func.func @transform_3(%arg0: i32) -> (i32, i32) {
    %c0_i32 = arith.constant 0 : i32
    %c0_i32_0 = arith.constant 0 : i32
    %c0_i32_1 = arith.constant 0 : i32
    return %c0_i32, %c0_i32_0 : i32, i32
  }
  func.func @transform_4(%arg0: i32) -> (i32, i32) {
    %c0_i32 = arith.constant 0 : i32
    %c0_i32_0 = arith.constant 0 : i32
    %c0_i32_1 = arith.constant 0 : i32
    return %c0_i32, %c0_i32_0 : i32, i32
  }
  func.func @transform_5(%arg0: i32) -> (i32, i32) {
    %c0_i32 = arith.constant 0 : i32
    %c0_i32_0 = arith.constant 0 : i32
    %c0_i32_1 = arith.constant 0 : i32
    return %c0_i32, %c0_i32_0 : i32, i32
  }
  func.func @transform_6(%arg0: i32) -> (i32, i32) {
    %c0_i32 = arith.constant 0 : i32
    %c0_i32_0 = arith.constant 0 : i32
    %c0_i32_1 = arith.constant 0 : i32
    return %c0_i32, %c0_i32_0 : i32, i32
  }
  func.func @transform_7(%arg0: i32) -> (i32, i32) {
    %c0_i32 = arith.constant 0 : i32
    %c0_i32_0 = arith.constant 0 : i32
    %c0_i32_1 = arith.constant 0 : i32
    return %c0_i32, %c0_i32_0 : i32, i32
  }
  func.func @transform_8(%arg0: i32) -> (i32, i32) {
    %c0_i32 = arith.constant 0 : i32
    %c0_i32_0 = arith.constant 0 : i32
    %c0_i32_1 = arith.constant 0 : i32
    return %c0_i32, %c0_i32_0 : i32, i32
  }
  func.func @transform_9(%arg0: i32) -> (i32, i32) {
    %c0_i32 = arith.constant 0 : i32
    %c0_i32_0 = arith.constant 0 : i32
    %c0_i32_1 = arith.constant 0 : i32
    return %c0_i32, %c0_i32_0 : i32, i32
  }
  func.func @transform_10(%arg0: i32) -> (i32, i32) {
    %c0_i32 = arith.constant 0 : i32
    %c0_i32_0 = arith.constant 0 : i32
    %c0_i32_1 = arith.constant 0 : i32
    return %c0_i32, %c0_i32_0 : i32, i32
  }
  func.func @transform_11(%arg0: i32) -> (i32, i32) {
    %c0_i32 = arith.constant 0 : i32
    %c0_i32_0 = arith.constant 0 : i32
    %c0_i32_1 = arith.constant 0 : i32
    return %c0_i32, %c0_i32_0 : i32, i32
  }
  func.func @transform_12(%arg0: i32) -> (i32, i32) {
    %c0_i32 = arith.constant 0 : i32
    %c0_i32_0 = arith.constant 0 : i32
    %c0_i32_1 = arith.constant 0 : i32
    return %c0_i32, %c0_i32_0 : i32, i32
  }
  func.func @transform_13(%arg0: i32) -> (i32, i32) {
    %c0_i32 = arith.constant 0 : i32
    %c0_i32_0 = arith.constant 0 : i32
    %c0_i32_1 = arith.constant 0 : i32
    return %c0_i32, %c0_i32_0 : i32, i32
  }
  func.func @transform_14(%arg0: i32) -> (i32, i32) {
    %c0_i32 = arith.constant 0 : i32
    %c0_i32_0 = arith.constant 0 : i32
    %c0_i32_1 = arith.constant 0 : i32
    return %c0_i32, %c0_i32_0 : i32, i32
  }
  func.func @transform_15(%arg0: i32) -> (i32, i32) {
    %c0_i32 = arith.constant 0 : i32
    %c0_i32_0 = arith.constant 0 : i32
    %c0_i32_1 = arith.constant 0 : i32
    return %c0_i32, %c0_i32_0 : i32, i32
  }
  func.func @transform_16(%arg0: i32) -> (i32, i32) {
    %c0_i32 = arith.constant 0 : i32
    %c0_i32_0 = arith.constant 0 : i32
    %c0_i32_1 = arith.constant 0 : i32
    return %c0_i32, %c0_i32_0 : i32, i32
  }
  func.func @transform_17(%arg0: i32) -> (i32, i32) {
    %c0_i32 = arith.constant 0 : i32
    %c0_i32_0 = arith.constant 0 : i32
    %c0_i32_1 = arith.constant 0 : i32
    return %c0_i32, %c0_i32_0 : i32, i32
  }
  func.func @transform_18(%arg0: i32) -> (i32, i32) {
    %c0_i32 = arith.constant 0 : i32
    %c0_i32_0 = arith.constant 0 : i32
    %c0_i32_1 = arith.constant 0 : i32
    return %c0_i32, %c0_i32_0 : i32, i32
  }
  func.func @transform_19(%arg0: i32) -> (i32, i32) {
    %c0_i32 = arith.constant 0 : i32
    %c0_i32_0 = arith.constant 0 : i32
    %c0_i32_1 = arith.constant 0 : i32
    return %c0_i32, %c0_i32_0 : i32, i32
  }
  func.func @transform_20(%arg0: i32) -> (i32, i32) {
    %c0_i32 = arith.constant 0 : i32
    %c0_i32_0 = arith.constant 0 : i32
    %c0_i32_1 = arith.constant 0 : i32
    return %c0_i32, %c0_i32_0 : i32, i32
  }
  func.func @transform_21(%arg0: i32) -> (i32, i32) {
    %c0_i32 = arith.constant 0 : i32
    %c0_i32_0 = arith.constant 0 : i32
    return %arg0, %c0_i32 : i32, i32
  }
}

module attributes {stable_mosaic.version = 11 : i64} {
  func.func @_gps_layer_kernel(%arg0: i32, %arg1: memref<16x64xf32, #tpu.memory_space<vmem>>, %arg2: memref<16x16xbf16, #tpu.memory_space<vmem>>, %arg3: memref<16x16xbf16, #tpu.memory_space<vmem>>, %arg4: memref<64x192xf32, #tpu.memory_space<vmem>>, %arg5: memref<1x192xf32, #tpu.memory_space<vmem>>, %arg6: memref<64x128xf32, #tpu.memory_space<vmem>>, %arg7: memref<1x128xf32, #tpu.memory_space<vmem>>, %arg8: memref<1x64xf32, #tpu.memory_space<vmem>>, %arg9: memref<1x64xf32, #tpu.memory_space<vmem>>, %arg10: memref<64x64xf32, #tpu.memory_space<vmem>>, %arg11: memref<1x64xf32, #tpu.memory_space<vmem>>, %arg12: memref<64x128xf32, #tpu.memory_space<vmem>>, %arg13: memref<1x128xf32, #tpu.memory_space<vmem>>, %arg14: memref<128x64xf32, #tpu.memory_space<vmem>>, %arg15: memref<1x64xf32, #tpu.memory_space<vmem>>, %arg16: memref<1x64xf32, #tpu.memory_space<vmem>>, %arg17: memref<1x64xf32, #tpu.memory_space<vmem>>, %arg18: memref<1x64xf32, #tpu.memory_space<vmem>>, %arg19: memref<1x64xf32, #tpu.memory_space<vmem>>, %arg20: memref<1x64xf32, #tpu.memory_space<vmem>>, %arg21: memref<1x64xf32, #tpu.memory_space<vmem>>, %arg22: memref<16x64xf32, #tpu.memory_space<vmem>>, %arg23: memref<16x16xf32, #tpu.memory_space<vmem>>, %arg24: memref<16x64xf32, #tpu.memory_space<vmem>>) attributes {dimension_semantics = [#tpu.dimension_semantics<parallel>], iteration_bounds = array<i64: 1>, scalar_prefetch = 0 : i64, scratch_operands = 2 : i64, tpu.core_type = #tpu.core_type<tc>, window_params = [{pipeline_mode = #tpu.pipeline_mode<synchronous>, transform_indices = @transform_0, window_bounds = array<i64: 16, 64>}, {transform_indices = @transform_1, window_bounds = array<i64: 16, 16>}, {transform_indices = @transform_2, window_bounds = array<i64: 16, 16>}, {pipeline_mode = #tpu.pipeline_mode<synchronous>, transform_indices = @transform_3, window_bounds = array<i64: 64, 192>}, {pipeline_mode = #tpu.pipeline_mode<synchronous>, transform_indices = @transform_4, window_bounds = array<i64: 1, 192>}, {pipeline_mode = #tpu.pipeline_mode<synchronous>, transform_indices = @transform_5, window_bounds = array<i64: 64, 128>}, {pipeline_mode = #tpu.pipeline_mode<synchronous>, transform_indices = @transform_6, window_bounds = array<i64: 1, 128>}, {pipeline_mode = #tpu.pipeline_mode<synchronous>, transform_indices = @transform_7, window_bounds = array<i64: 1, 64>}, {pipeline_mode = #tpu.pipeline_mode<synchronous>, transform_indices = @transform_8, window_bounds = array<i64: 1, 64>}, {pipeline_mode = #tpu.pipeline_mode<synchronous>, transform_indices = @transform_9, window_bounds = array<i64: 64, 64>}, {pipeline_mode = #tpu.pipeline_mode<synchronous>, transform_indices = @transform_10, window_bounds = array<i64: 1, 64>}, {pipeline_mode = #tpu.pipeline_mode<synchronous>, transform_indices = @transform_11, window_bounds = array<i64: 64, 128>}, {pipeline_mode = #tpu.pipeline_mode<synchronous>, transform_indices = @transform_12, window_bounds = array<i64: 1, 128>}, {pipeline_mode = #tpu.pipeline_mode<synchronous>, transform_indices = @transform_13, window_bounds = array<i64: 128, 64>}, {pipeline_mode = #tpu.pipeline_mode<synchronous>, transform_indices = @transform_14, window_bounds = array<i64: 1, 64>}, {pipeline_mode = #tpu.pipeline_mode<synchronous>, transform_indices = @transform_15, window_bounds = array<i64: 1, 64>}, {pipeline_mode = #tpu.pipeline_mode<synchronous>, transform_indices = @transform_16, window_bounds = array<i64: 1, 64>}, {pipeline_mode = #tpu.pipeline_mode<synchronous>, transform_indices = @transform_17, window_bounds = array<i64: 1, 64>}, {pipeline_mode = #tpu.pipeline_mode<synchronous>, transform_indices = @transform_18, window_bounds = array<i64: 1, 64>}, {pipeline_mode = #tpu.pipeline_mode<synchronous>, transform_indices = @transform_19, window_bounds = array<i64: 1, 64>}, {pipeline_mode = #tpu.pipeline_mode<synchronous>, transform_indices = @transform_20, window_bounds = array<i64: 1, 64>}, {transform_indices = @transform_21, window_bounds = array<i64: 16, 64>}]} {
    %c16_i32 = arith.constant 16 : i32
    %0 = arith.muli %arg0, %c16_i32 : i32
    %1 = tpu.assume_multiple %0, 16 : i32
    %c0 = arith.constant 0 : index
    %c0_0 = arith.constant 0 : index
    %2 = vector.load %arg1[%c0, %c0_0] : memref<16x64xf32, #tpu.memory_space<vmem>>, vector<16x64xf32>
    %3 = arith.index_cast %1 : i32 to index
    %c0_1 = arith.constant 0 : index
    %4 = vector.load %arg1[%3, %c0_1] : memref<16x64xf32, #tpu.memory_space<vmem>>, vector<16x64xf32>
    %c0_2 = arith.constant 0 : index
    %c0_3 = arith.constant 0 : index
    %5 = vector.load %arg4[%c0_2, %c0_3] : memref<64x192xf32, #tpu.memory_space<vmem>>, vector<64x192xf32>
    %6 = arith.truncf %2 : vector<16x64xf32> to vector<16x64xbf16>
    %7 = arith.truncf %5 : vector<64x192xf32> to vector<64x192xbf16>
    %cst = arith.constant dense<0.000000e+00> : vector<16x192xf32>
    %8 = tpu.matmul %6, %7, %cst {dimension_numbers = #tpu.dot_dimension_numbers<[1], [0], [0], [1], [0, 0, 1, 1], [], []>} : vector<16x64xbf16>, vector<64x192xbf16>, vector<16x192xf32> -> vector<16x192xf32>
    %c0_4 = arith.constant 0 : index
    %c0_5 = arith.constant 0 : index
    %9 = vector.load %arg5[%c0_4, %c0_5] : memref<1x192xf32, #tpu.memory_space<vmem>>, vector<1x192xf32>
    %10 = vector.broadcast %9 : vector<1x192xf32> to vector<16x192xf32>
    %11 = arith.addf %8, %10 : vector<16x192xf32>
    %12 = vector.extract_strided_slice %11 {offsets = [0, 0], sizes = [16, 64], strides = [1, 1]} : vector<16x192xf32> to vector<16x64xf32>
    %13 = vector.extract_strided_slice %11 {offsets = [0, 64], sizes = [16, 64], strides = [1, 1]} : vector<16x192xf32> to vector<16x64xf32>
    %14 = vector.extract_strided_slice %11 {offsets = [0, 128], sizes = [16, 64], strides = [1, 1]} : vector<16x192xf32> to vector<16x64xf32>
    %c0_6 = arith.constant 0 : index
    %c0_7 = arith.constant 0 : index
    %15 = vector.load %arg6[%c0_6, %c0_7] : memref<64x128xf32, #tpu.memory_space<vmem>>, vector<64x128xf32>
    %16 = arith.truncf %4 : vector<16x64xf32> to vector<16x64xbf16>
    %17 = arith.truncf %15 : vector<64x128xf32> to vector<64x128xbf16>
    %cst_8 = arith.constant dense<0.000000e+00> : vector<16x128xf32>
    %18 = tpu.matmul %16, %17, %cst_8 {dimension_numbers = #tpu.dot_dimension_numbers<[1], [0], [0], [1], [0, 0, 1, 1], [], []>} : vector<16x64xbf16>, vector<64x128xbf16>, vector<16x128xf32> -> vector<16x128xf32>
    %c0_9 = arith.constant 0 : index
    %c0_10 = arith.constant 0 : index
    %19 = vector.load %arg7[%c0_9, %c0_10] : memref<1x128xf32, #tpu.memory_space<vmem>>, vector<1x128xf32>
    %20 = vector.broadcast %19 : vector<1x128xf32> to vector<16x128xf32>
    %21 = arith.addf %18, %20 : vector<16x128xf32>
    %22 = vector.extract_strided_slice %21 {offsets = [0, 0], sizes = [16, 64], strides = [1, 1]} : vector<16x128xf32> to vector<16x64xf32>
    %23 = vector.extract_strided_slice %21 {offsets = [0, 64], sizes = [16, 64], strides = [1, 1]} : vector<16x128xf32> to vector<16x64xf32>
    %c0_11 = arith.constant 0 : index
    %c0_12 = arith.constant 0 : index
    %24 = vector.load %arg8[%c0_11, %c0_12] : memref<1x64xf32, #tpu.memory_space<vmem>>, vector<1x64xf32>
    %25 = vector.shape_cast %22 : vector<16x64xf32> to vector<16x1x64xf32>
    %26 = vector.shape_cast %12 : vector<16x64xf32> to vector<1x16x64xf32>
    %27 = vector.broadcast %25 : vector<16x1x64xf32> to vector<16x16x64xf32>
    %28 = vector.broadcast %26 : vector<1x16x64xf32> to vector<16x16x64xf32>
    %29 = arith.addf %27, %28 : vector<16x16x64xf32>
    %cst_13 = arith.constant 2.000000e-01 : f32
    %30 = vector.broadcast %cst_13 : f32 to vector<16x16x64xf32>
    %31 = arith.mulf %30, %29 : vector<16x16x64xf32>
    %32 = arith.maximumf %29, %31 : vector<16x16x64xf32>
    %33 = vector.shape_cast %24 : vector<1x64xf32> to vector<1x1x64xf32>
    %34 = vector.broadcast %33 : vector<1x1x64xf32> to vector<16x16x64xf32>
    %35 = arith.mulf %32, %34 : vector<16x16x64xf32>
    %cst_14 = arith.constant dense<0.000000e+00> : vector<16x16xf32>
    %36 = vector.multi_reduction <add>, %35, %cst_14 [2] : vector<16x16x64xf32> to vector<16x16xf32>
    %c0_15 = arith.constant 0 : index
    %c0_16 = arith.constant 0 : index
    %37 = vector.load %arg23[%c0_15, %c0_16] : memref<16x16xf32, #tpu.memory_space<vmem>>, vector<16x16xf32>
    tpu.vector_store %arg23[%c0_15, %c0_16], %36 {strides = array<i32>} : memref<16x16xf32, #tpu.memory_space<vmem>>, vector<16x16xf32>,
    %c0_17 = arith.constant 0 : index
    %c0_18 = arith.constant 0 : index
    %38 = vector.load %arg23[%c0_17, %c0_18] : memref<16x16xf32, #tpu.memory_space<vmem>>, vector<16x16xf32>
    %c0_19 = arith.constant 0 : index
    %c0_20 = arith.constant 0 : index
    %39 = vector.load %arg2[%c0_19, %c0_20] : memref<16x16xbf16, #tpu.memory_space<vmem>>, vector<16x16xbf16>
    %40 = arith.extf %39 : vector<16x16xbf16> to vector<16x16xf32>
    %41 = arith.addf %38, %40 : vector<16x16xf32>
    %cst_21 = arith.constant dense<0xFF800000> : vector<16xf32>
    %42 = vector.multi_reduction <maximumf>, %41, %cst_21 [1] : vector<16x16xf32> to vector<16xf32>
    %43 = vector.shape_cast %42 : vector<16xf32> to vector<16x1xf32>
    %44 = vector.broadcast %43 : vector<16x1xf32> to vector<16x16xf32>
    %45 = arith.subf %41, %44 : vector<16x16xf32>
    %46 = math.exp %45 : vector<16x16xf32>
    %cst_22 = arith.constant dense<0.000000e+00> : vector<16xf32>
    %47 = vector.multi_reduction <add>, %46, %cst_22 [1] : vector<16x16xf32> to vector<16xf32>
    %48 = vector.shape_cast %47 : vector<16xf32> to vector<16x1xf32>
    %49 = tpu.reciprocal %48 {approx = true} : vector<16x1xf32> -> vector<16x1xf32>
    %50 = vector.broadcast %49 : vector<16x1xf32> to vector<16x16xf32>
    %51 = arith.mulf %46, %50 : vector<16x16xf32>
    %52 = arith.truncf %51 : vector<16x16xf32> to vector<16x16xbf16>
    %53 = arith.truncf %12 : vector<16x64xf32> to vector<16x64xbf16>
    %cst_23 = arith.constant dense<0.000000e+00> : vector<16x64xf32>
    %54 = tpu.matmul %52, %53, %cst_23 {dimension_numbers = #tpu.dot_dimension_numbers<[1], [0], [0], [1], [0, 0, 1, 1], [], []>} : vector<16x16xbf16>, vector<16x64xbf16>, vector<16x64xf32> -> vector<16x64xf32>
    %c0_24 = arith.constant 0 : index
    %c0_25 = arith.constant 0 : index
    %55 = vector.load %arg9[%c0_24, %c0_25] : memref<1x64xf32, #tpu.memory_space<vmem>>, vector<1x64xf32>
    %56 = vector.broadcast %55 : vector<1x64xf32> to vector<16x64xf32>
    %57 = arith.addf %54, %56 : vector<16x64xf32>
    %58 = arith.addf %57, %4 : vector<16x64xf32>
    %c0_26 = arith.constant 0 : index
    %c0_27 = arith.constant 0 : index
    %59 = vector.load %arg16[%c0_26, %c0_27] : memref<1x64xf32, #tpu.memory_space<vmem>>, vector<1x64xf32>
    %60 = vector.broadcast %59 : vector<1x64xf32> to vector<16x64xf32>
    %61 = arith.mulf %58, %60 : vector<16x64xf32>
    %c0_28 = arith.constant 0 : index
    %c0_29 = arith.constant 0 : index
    %62 = vector.load %arg17[%c0_28, %c0_29] : memref<1x64xf32, #tpu.memory_space<vmem>>, vector<1x64xf32>
    %63 = vector.broadcast %62 : vector<1x64xf32> to vector<16x64xf32>
    %64 = arith.addf %61, %63 : vector<16x64xf32>
    %c0_30 = arith.constant 0 : index
    %c0_31 = arith.constant 0 : index
    %65 = vector.load %arg3[%c0_30, %c0_31] : memref<16x16xbf16, #tpu.memory_space<vmem>>, vector<16x16xbf16>
    %66 = arith.extf %65 : vector<16x16xbf16> to vector<16x16xf32>
    %c0_32 = arith.constant 0 : index
    %c0_33 = arith.constant 0 : index
    %67 = vector.load %arg10[%c0_32, %c0_33] : memref<64x64xf32, #tpu.memory_space<vmem>>, vector<64x64xf32>
    %cst_34 = arith.constant 0.000000e+00 : f32
    %68 = vector.broadcast %cst_34 : f32 to vector<16x64xf32>
    %c0_35 = arith.constant 0 : index
    %c0_36 = arith.constant 0 : index
    %69 = vector.load %arg24[%c0_35, %c0_36] : memref<16x64xf32, #tpu.memory_space<vmem>>, vector<16x64xf32>
    tpu.vector_store %arg24[%c0_35, %c0_36], %68 {strides = array<i32>} : memref<16x64xf32, #tpu.memory_space<vmem>>, vector<16x64xf32>,
    %70 = vector.extract_strided_slice %23 {offsets = [0, 0], sizes = [16, 16], strides = [1, 1]} : vector<16x64xf32> to vector<16x16xf32>
    %71 = vector.extract_strided_slice %13 {offsets = [0, 0], sizes = [16, 16], strides = [1, 1]} : vector<16x64xf32> to vector<16x16xf32>
    %72 = vector.extract_strided_slice %14 {offsets = [0, 0], sizes = [16, 16], strides = [1, 1]} : vector<16x64xf32> to vector<16x16xf32>
    %73 = arith.truncf %70 : vector<16x16xf32> to vector<16x16xbf16>
    %74 = arith.truncf %71 : vector<16x16xf32> to vector<16x16xbf16>
    %cst_37 = arith.constant dense<0.000000e+00> : vector<16x16xf32>
    %75 = tpu.matmul %73, %74, %cst_37 {dimension_numbers = #tpu.dot_dimension_numbers<[1], [1], [0], [0], [0, 0, 1, 0], [], []>} : vector<16x16xbf16>, vector<16x16xbf16>, vector<16x16xf32> -> vector<16x16xf32>
    %cst_38 = arith.constant 2.500000e-01 : f32
    %76 = vector.broadcast %cst_38 : f32 to vector<16x16xf32>
    %77 = arith.mulf %75, %76 : vector<16x16xf32>
    %78 = arith.addf %77, %66 : vector<16x16xf32>
    %cst_39 = arith.constant dense<0xFF800000> : vector<16xf32>
    %79 = vector.multi_reduction <maximumf>, %78, %cst_39 [1] : vector<16x16xf32> to vector<16xf32>
    %80 = vector.shape_cast %79 : vector<16xf32> to vector<16x1xf32>
    %81 = vector.broadcast %80 : vector<16x1xf32> to vector<16x16xf32>
    %82 = arith.subf %78, %81 : vector<16x16xf32>
    %83 = math.exp %82 : vector<16x16xf32>
    %cst_40 = arith.constant dense<0.000000e+00> : vector<16xf32>
    %84 = vector.multi_reduction <add>, %83, %cst_40 [1] : vector<16x16xf32> to vector<16xf32>
    %85 = vector.shape_cast %84 : vector<16xf32> to vector<16x1xf32>
    %86 = tpu.reciprocal %85 {approx = true} : vector<16x1xf32> -> vector<16x1xf32>
    %87 = vector.broadcast %86 : vector<16x1xf32> to vector<16x16xf32>
    %88 = arith.mulf %83, %87 : vector<16x16xf32>
    %89 = arith.truncf %88 : vector<16x16xf32> to vector<16x16xbf16>
    %90 = arith.truncf %72 : vector<16x16xf32> to vector<16x16xbf16>
    %cst_41 = arith.constant dense<0.000000e+00> : vector<16x16xf32>
    %91 = tpu.matmul %89, %90, %cst_41 {dimension_numbers = #tpu.dot_dimension_numbers<[1], [0], [0], [1], [0, 0, 1, 1], [], []>} : vector<16x16xbf16>, vector<16x16xbf16>, vector<16x16xf32> -> vector<16x16xf32>
    %c0_42 = arith.constant 0 : index
    %c0_43 = arith.constant 0 : index
    %92 = vector.load %arg24[%c0_42, %c0_43] : memref<16x64xf32, #tpu.memory_space<vmem>>, vector<16x64xf32>
    %93 = vector.extract_strided_slice %67 {offsets = [0, 0], sizes = [16, 64], strides = [1, 1]} : vector<64x64xf32> to vector<16x64xf32>
    %94 = arith.truncf %91 : vector<16x16xf32> to vector<16x16xbf16>
    %95 = arith.truncf %93 : vector<16x64xf32> to vector<16x64xbf16>
    %cst_44 = arith.constant dense<0.000000e+00> : vector<16x64xf32>
    %96 = tpu.matmul %94, %95, %cst_44 {dimension_numbers = #tpu.dot_dimension_numbers<[1], [0], [0], [1], [0, 0, 1, 1], [], []>} : vector<16x16xbf16>, vector<16x64xbf16>, vector<16x64xf32> -> vector<16x64xf32>
    %97 = arith.addf %92, %96 : vector<16x64xf32>
    %c0_45 = arith.constant 0 : index
    %c0_46 = arith.constant 0 : index
    %98 = vector.load %arg24[%c0_45, %c0_46] : memref<16x64xf32, #tpu.memory_space<vmem>>, vector<16x64xf32>
    tpu.vector_store %arg24[%c0_45, %c0_46], %97 {strides = array<i32>} : memref<16x64xf32, #tpu.memory_space<vmem>>, vector<16x64xf32>,
    %99 = vector.extract_strided_slice %23 {offsets = [0, 16], sizes = [16, 16], strides = [1, 1]} : vector<16x64xf32> to vector<16x16xf32>
    %100 = vector.extract_strided_slice %13 {offsets = [0, 16], sizes = [16, 16], strides = [1, 1]} : vector<16x64xf32> to vector<16x16xf32>
    %101 = vector.extract_strided_slice %14 {offsets = [0, 16], sizes = [16, 16], strides = [1, 1]} : vector<16x64xf32> to vector<16x16xf32>
    %102 = arith.truncf %99 : vector<16x16xf32> to vector<16x16xbf16>
    %103 = arith.truncf %100 : vector<16x16xf32> to vector<16x16xbf16>
    %cst_47 = arith.constant dense<0.000000e+00> : vector<16x16xf32>
    %104 = tpu.matmul %102, %103, %cst_47 {dimension_numbers = #tpu.dot_dimension_numbers<[1], [1], [0], [0], [0, 0, 1, 0], [], []>} : vector<16x16xbf16>, vector<16x16xbf16>, vector<16x16xf32> -> vector<16x16xf32>
    %cst_48 = arith.constant 2.500000e-01 : f32
    %105 = vector.broadcast %cst_48 : f32 to vector<16x16xf32>
    %106 = arith.mulf %104, %105 : vector<16x16xf32>
    %107 = arith.addf %106, %66 : vector<16x16xf32>
    %cst_49 = arith.constant dense<0xFF800000> : vector<16xf32>
    %108 = vector.multi_reduction <maximumf>, %107, %cst_49 [1] : vector<16x16xf32> to vector<16xf32>
    %109 = vector.shape_cast %108 : vector<16xf32> to vector<16x1xf32>
    %110 = vector.broadcast %109 : vector<16x1xf32> to vector<16x16xf32>
    %111 = arith.subf %107, %110 : vector<16x16xf32>
    %112 = math.exp %111 : vector<16x16xf32>
    %cst_50 = arith.constant dense<0.000000e+00> : vector<16xf32>
    %113 = vector.multi_reduction <add>, %112, %cst_50 [1] : vector<16x16xf32> to vector<16xf32>
    %114 = vector.shape_cast %113 : vector<16xf32> to vector<16x1xf32>
    %115 = tpu.reciprocal %114 {approx = true} : vector<16x1xf32> -> vector<16x1xf32>
    %116 = vector.broadcast %115 : vector<16x1xf32> to vector<16x16xf32>
    %117 = arith.mulf %112, %116 : vector<16x16xf32>
    %118 = arith.truncf %117 : vector<16x16xf32> to vector<16x16xbf16>
    %119 = arith.truncf %101 : vector<16x16xf32> to vector<16x16xbf16>
    %cst_51 = arith.constant dense<0.000000e+00> : vector<16x16xf32>
    %120 = tpu.matmul %118, %119, %cst_51 {dimension_numbers = #tpu.dot_dimension_numbers<[1], [0], [0], [1], [0, 0, 1, 1], [], []>} : vector<16x16xbf16>, vector<16x16xbf16>, vector<16x16xf32> -> vector<16x16xf32>
    %c0_52 = arith.constant 0 : index
    %c0_53 = arith.constant 0 : index
    %121 = vector.load %arg24[%c0_52, %c0_53] : memref<16x64xf32, #tpu.memory_space<vmem>>, vector<16x64xf32>
    %122 = vector.extract_strided_slice %67 {offsets = [16, 0], sizes = [16, 64], strides = [1, 1]} : vector<64x64xf32> to vector<16x64xf32>
    %123 = arith.truncf %120 : vector<16x16xf32> to vector<16x16xbf16>
    %124 = arith.truncf %122 : vector<16x64xf32> to vector<16x64xbf16>
    %cst_54 = arith.constant dense<0.000000e+00> : vector<16x64xf32>
    %125 = tpu.matmul %123, %124, %cst_54 {dimension_numbers = #tpu.dot_dimension_numbers<[1], [0], [0], [1], [0, 0, 1, 1], [], []>} : vector<16x16xbf16>, vector<16x64xbf16>, vector<16x64xf32> -> vector<16x64xf32>
    %126 = arith.addf %121, %125 : vector<16x64xf32>
    %c0_55 = arith.constant 0 : index
    %c0_56 = arith.constant 0 : index
    %127 = vector.load %arg24[%c0_55, %c0_56] : memref<16x64xf32, #tpu.memory_space<vmem>>, vector<16x64xf32>
    tpu.vector_store %arg24[%c0_55, %c0_56], %126 {strides = array<i32>} : memref<16x64xf32, #tpu.memory_space<vmem>>, vector<16x64xf32>,
    %128 = vector.extract_strided_slice %23 {offsets = [0, 32], sizes = [16, 16], strides = [1, 1]} : vector<16x64xf32> to vector<16x16xf32>
    %129 = vector.extract_strided_slice %13 {offsets = [0, 32], sizes = [16, 16], strides = [1, 1]} : vector<16x64xf32> to vector<16x16xf32>
    %130 = vector.extract_strided_slice %14 {offsets = [0, 32], sizes = [16, 16], strides = [1, 1]} : vector<16x64xf32> to vector<16x16xf32>
    %131 = arith.truncf %128 : vector<16x16xf32> to vector<16x16xbf16>
    %132 = arith.truncf %129 : vector<16x16xf32> to vector<16x16xbf16>
    %cst_57 = arith.constant dense<0.000000e+00> : vector<16x16xf32>
    %133 = tpu.matmul %131, %132, %cst_57 {dimension_numbers = #tpu.dot_dimension_numbers<[1], [1], [0], [0], [0, 0, 1, 0], [], []>} : vector<16x16xbf16>, vector<16x16xbf16>, vector<16x16xf32> -> vector<16x16xf32>
    %cst_58 = arith.constant 2.500000e-01 : f32
    %134 = vector.broadcast %cst_58 : f32 to vector<16x16xf32>
    %135 = arith.mulf %133, %134 : vector<16x16xf32>
    %136 = arith.addf %135, %66 : vector<16x16xf32>
    %cst_59 = arith.constant dense<0xFF800000> : vector<16xf32>
    %137 = vector.multi_reduction <maximumf>, %136, %cst_59 [1] : vector<16x16xf32> to vector<16xf32>
    %138 = vector.shape_cast %137 : vector<16xf32> to vector<16x1xf32>
    %139 = vector.broadcast %138 : vector<16x1xf32> to vector<16x16xf32>
    %140 = arith.subf %136, %139 : vector<16x16xf32>
    %141 = math.exp %140 : vector<16x16xf32>
    %cst_60 = arith.constant dense<0.000000e+00> : vector<16xf32>
    %142 = vector.multi_reduction <add>, %141, %cst_60 [1] : vector<16x16xf32> to vector<16xf32>
    %143 = vector.shape_cast %142 : vector<16xf32> to vector<16x1xf32>
    %144 = tpu.reciprocal %143 {approx = true} : vector<16x1xf32> -> vector<16x1xf32>
    %145 = vector.broadcast %144 : vector<16x1xf32> to vector<16x16xf32>
    %146 = arith.mulf %141, %145 : vector<16x16xf32>
    %147 = arith.truncf %146 : vector<16x16xf32> to vector<16x16xbf16>
    %148 = arith.truncf %130 : vector<16x16xf32> to vector<16x16xbf16>
    %cst_61 = arith.constant dense<0.000000e+00> : vector<16x16xf32>
    %149 = tpu.matmul %147, %148, %cst_61 {dimension_numbers = #tpu.dot_dimension_numbers<[1], [0], [0], [1], [0, 0, 1, 1], [], []>} : vector<16x16xbf16>, vector<16x16xbf16>, vector<16x16xf32> -> vector<16x16xf32>
    %c0_62 = arith.constant 0 : index
    %c0_63 = arith.constant 0 : index
    %150 = vector.load %arg24[%c0_62, %c0_63] : memref<16x64xf32, #tpu.memory_space<vmem>>, vector<16x64xf32>
    %151 = vector.extract_strided_slice %67 {offsets = [32, 0], sizes = [16, 64], strides = [1, 1]} : vector<64x64xf32> to vector<16x64xf32>
    %152 = arith.truncf %149 : vector<16x16xf32> to vector<16x16xbf16>
    %153 = arith.truncf %151 : vector<16x64xf32> to vector<16x64xbf16>
    %cst_64 = arith.constant dense<0.000000e+00> : vector<16x64xf32>
    %154 = tpu.matmul %152, %153, %cst_64 {dimension_numbers = #tpu.dot_dimension_numbers<[1], [0], [0], [1], [0, 0, 1, 1], [], []>} : vector<16x16xbf16>, vector<16x64xbf16>, vector<16x64xf32> -> vector<16x64xf32>
    %155 = arith.addf %150, %154 : vector<16x64xf32>
    %c0_65 = arith.constant 0 : index
    %c0_66 = arith.constant 0 : index
    %156 = vector.load %arg24[%c0_65, %c0_66] : memref<16x64xf32, #tpu.memory_space<vmem>>, vector<16x64xf32>
    tpu.vector_store %arg24[%c0_65, %c0_66], %155 {strides = array<i32>} : memref<16x64xf32, #tpu.memory_space<vmem>>, vector<16x64xf32>,
    %157 = vector.extract_strided_slice %23 {offsets = [0, 48], sizes = [16, 16], strides = [1, 1]} : vector<16x64xf32> to vector<16x16xf32>
    %158 = vector.extract_strided_slice %13 {offsets = [0, 48], sizes = [16, 16], strides = [1, 1]} : vector<16x64xf32> to vector<16x16xf32>
    %159 = vector.extract_strided_slice %14 {offsets = [0, 48], sizes = [16, 16], strides = [1, 1]} : vector<16x64xf32> to vector<16x16xf32>
    %160 = arith.truncf %157 : vector<16x16xf32> to vector<16x16xbf16>
    %161 = arith.truncf %158 : vector<16x16xf32> to vector<16x16xbf16>
    %cst_67 = arith.constant dense<0.000000e+00> : vector<16x16xf32>
    %162 = tpu.matmul %160, %161, %cst_67 {dimension_numbers = #tpu.dot_dimension_numbers<[1], [1], [0], [0], [0, 0, 1, 0], [], []>} : vector<16x16xbf16>, vector<16x16xbf16>, vector<16x16xf32> -> vector<16x16xf32>
    %cst_68 = arith.constant 2.500000e-01 : f32
    %163 = vector.broadcast %cst_68 : f32 to vector<16x16xf32>
    %164 = arith.mulf %162, %163 : vector<16x16xf32>
    %165 = arith.addf %164, %66 : vector<16x16xf32>
    %cst_69 = arith.constant dense<0xFF800000> : vector<16xf32>
    %166 = vector.multi_reduction <maximumf>, %165, %cst_69 [1] : vector<16x16xf32> to vector<16xf32>
    %167 = vector.shape_cast %166 : vector<16xf32> to vector<16x1xf32>
    %168 = vector.broadcast %167 : vector<16x1xf32> to vector<16x16xf32>
    %169 = arith.subf %165, %168 : vector<16x16xf32>
    %170 = math.exp %169 : vector<16x16xf32>
    %cst_70 = arith.constant dense<0.000000e+00> : vector<16xf32>
    %171 = vector.multi_reduction <add>, %170, %cst_70 [1] : vector<16x16xf32> to vector<16xf32>
    %172 = vector.shape_cast %171 : vector<16xf32> to vector<16x1xf32>
    %173 = tpu.reciprocal %172 {approx = true} : vector<16x1xf32> -> vector<16x1xf32>
    %174 = vector.broadcast %173 : vector<16x1xf32> to vector<16x16xf32>
    %175 = arith.mulf %170, %174 : vector<16x16xf32>
    %176 = arith.truncf %175 : vector<16x16xf32> to vector<16x16xbf16>
    %177 = arith.truncf %159 : vector<16x16xf32> to vector<16x16xbf16>
    %cst_71 = arith.constant dense<0.000000e+00> : vector<16x16xf32>
    %178 = tpu.matmul %176, %177, %cst_71 {dimension_numbers = #tpu.dot_dimension_numbers<[1], [0], [0], [1], [0, 0, 1, 1], [], []>} : vector<16x16xbf16>, vector<16x16xbf16>, vector<16x16xf32> -> vector<16x16xf32>
    %c0_72 = arith.constant 0 : index
    %c0_73 = arith.constant 0 : index
    %179 = vector.load %arg24[%c0_72, %c0_73] : memref<16x64xf32, #tpu.memory_space<vmem>>, vector<16x64xf32>
    %180 = vector.extract_strided_slice %67 {offsets = [48, 0], sizes = [16, 64], strides = [1, 1]} : vector<64x64xf32> to vector<16x64xf32>
    %181 = arith.truncf %178 : vector<16x16xf32> to vector<16x16xbf16>
    %182 = arith.truncf %180 : vector<16x64xf32> to vector<16x64xbf16>
    %cst_74 = arith.constant dense<0.000000e+00> : vector<16x64xf32>
    %183 = tpu.matmul %181, %182, %cst_74 {dimension_numbers = #tpu.dot_dimension_numbers<[1], [0], [0], [1], [0, 0, 1, 1], [], []>} : vector<16x16xbf16>, vector<16x64xbf16>, vector<16x64xf32> -> vector<16x64xf32>
    %184 = arith.addf %179, %183 : vector<16x64xf32>
    %c0_75 = arith.constant 0 : index
    %c0_76 = arith.constant 0 : index
    %185 = vector.load %arg24[%c0_75, %c0_76] : memref<16x64xf32, #tpu.memory_space<vmem>>, vector<16x64xf32>
    tpu.vector_store %arg24[%c0_75, %c0_76], %184 {strides = array<i32>} : memref<16x64xf32, #tpu.memory_space<vmem>>, vector<16x64xf32>,
    %c0_77 = arith.constant 0 : index
    %c0_78 = arith.constant 0 : index
    %186 = vector.load %arg24[%c0_77, %c0_78] : memref<16x64xf32, #tpu.memory_space<vmem>>, vector<16x64xf32>
    %c0_79 = arith.constant 0 : index
    %c0_80 = arith.constant 0 : index
    %187 = vector.load %arg11[%c0_79, %c0_80] : memref<1x64xf32, #tpu.memory_space<vmem>>, vector<1x64xf32>
    %188 = vector.broadcast %187 : vector<1x64xf32> to vector<16x64xf32>
    %189 = arith.addf %186, %188 : vector<16x64xf32>
    %190 = arith.addf %189, %4 : vector<16x64xf32>
    %c0_81 = arith.constant 0 : index
    %c0_82 = arith.constant 0 : index
    %191 = vector.load %arg18[%c0_81, %c0_82] : memref<1x64xf32, #tpu.memory_space<vmem>>, vector<1x64xf32>
    %192 = vector.broadcast %191 : vector<1x64xf32> to vector<16x64xf32>
    %193 = arith.mulf %190, %192 : vector<16x64xf32>
    %c0_83 = arith.constant 0 : index
    %c0_84 = arith.constant 0 : index
    %194 = vector.load %arg19[%c0_83, %c0_84] : memref<1x64xf32, #tpu.memory_space<vmem>>, vector<1x64xf32>
    %195 = vector.broadcast %194 : vector<1x64xf32> to vector<16x64xf32>
    %196 = arith.addf %193, %195 : vector<16x64xf32>
    %197 = arith.addf %64, %196 : vector<16x64xf32>
    %c0_85 = arith.constant 0 : index
    %c0_86 = arith.constant 0 : index
    %198 = vector.load %arg12[%c0_85, %c0_86] : memref<64x128xf32, #tpu.memory_space<vmem>>, vector<64x128xf32>
    %199 = arith.truncf %197 : vector<16x64xf32> to vector<16x64xbf16>
    %200 = arith.truncf %198 : vector<64x128xf32> to vector<64x128xbf16>
    %cst_87 = arith.constant dense<0.000000e+00> : vector<16x128xf32>
    %201 = tpu.matmul %199, %200, %cst_87 {dimension_numbers = #tpu.dot_dimension_numbers<[1], [0], [0], [1], [0, 0, 1, 1], [], []>} : vector<16x64xbf16>, vector<64x128xbf16>, vector<16x128xf32> -> vector<16x128xf32>
    %c0_88 = arith.constant 0 : index
    %c0_89 = arith.constant 0 : index
    %202 = vector.load %arg13[%c0_88, %c0_89] : memref<1x128xf32, #tpu.memory_space<vmem>>, vector<1x128xf32>
    %203 = vector.broadcast %202 : vector<1x128xf32> to vector<16x128xf32>
    %204 = arith.addf %201, %203 : vector<16x128xf32>
    %cst_90 = arith.constant 0.000000e+00 : f32
    %205 = vector.broadcast %cst_90 : f32 to vector<16x128xf32>
    %206 = arith.maximumf %204, %205 : vector<16x128xf32>
    %c0_91 = arith.constant 0 : index
    %c0_92 = arith.constant 0 : index
    %207 = vector.load %arg14[%c0_91, %c0_92] : memref<128x64xf32, #tpu.memory_space<vmem>>, vector<128x64xf32>
    %208 = arith.truncf %206 : vector<16x128xf32> to vector<16x128xbf16>
    %209 = arith.truncf %207 : vector<128x64xf32> to vector<128x64xbf16>
    %cst_93 = arith.constant dense<0.000000e+00> : vector<16x64xf32>
    %210 = tpu.matmul %208, %209, %cst_93 {dimension_numbers = #tpu.dot_dimension_numbers<[1], [0], [0], [1], [0, 0, 1, 1], [], []>} : vector<16x128xbf16>, vector<128x64xbf16>, vector<16x64xf32> -> vector<16x64xf32>
    %c0_94 = arith.constant 0 : index
    %c0_95 = arith.constant 0 : index
    %211 = vector.load %arg15[%c0_94, %c0_95] : memref<1x64xf32, #tpu.memory_space<vmem>>, vector<1x64xf32>
    %212 = vector.broadcast %211 : vector<1x64xf32> to vector<16x64xf32>
    %213 = arith.addf %210, %212 : vector<16x64xf32>
    %214 = arith.addf %197, %213 : vector<16x64xf32>
    %c0_96 = arith.constant 0 : index
    %c0_97 = arith.constant 0 : index
    %215 = vector.load %arg20[%c0_96, %c0_97] : memref<1x64xf32, #tpu.memory_space<vmem>>, vector<1x64xf32>
    %216 = vector.broadcast %215 : vector<1x64xf32> to vector<16x64xf32>
    %217 = arith.mulf %214, %216 : vector<16x64xf32>
    %c0_98 = arith.constant 0 : index
    %c0_99 = arith.constant 0 : index
    %218 = vector.load %arg21[%c0_98, %c0_99] : memref<1x64xf32, #tpu.memory_space<vmem>>, vector<1x64xf32>
    %219 = vector.broadcast %218 : vector<1x64xf32> to vector<16x64xf32>
    %220 = arith.addf %217, %219 : vector<16x64xf32>
    %cst_100 = arith.constant 0.000000e+00 : f32
    %221 = vector.broadcast %cst_100 : f32 to vector<16x64xf32>
    %222 = arith.maximumf %220, %221 : vector<16x64xf32>
    %c0_101 = arith.constant 0 : index
    %c0_102 = arith.constant 0 : index
    %223 = vector.load %arg22[%c0_101, %c0_102] : memref<16x64xf32, #tpu.memory_space<vmem>>, vector<16x64xf32>
    tpu.vector_store %arg22[%c0_101, %c0_102], %222 {strides = array<i32>} : memref<16x64xf32, #tpu.memory_space<vmem>>, vector<16x64xf32>,
    return
  }
  func.func @transform_0(%arg0: i32) -> (i32, i32) {
    %c0_i32 = arith.constant 0 : i32
    %c0_i32_0 = arith.constant 0 : i32
    %c0_i32_1 = arith.constant 0 : i32
    return %c0_i32, %c0_i32_0 : i32, i32
  }
  func.func @transform_1(%arg0: i32) -> (i32, i32) {
    %c0_i32 = arith.constant 0 : i32
    %c0_i32_0 = arith.constant 0 : i32
    return %arg0, %c0_i32 : i32, i32
  }
  func.func @transform_2(%arg0: i32) -> (i32, i32) {
    %c0_i32 = arith.constant 0 : i32
    %c0_i32_0 = arith.constant 0 : i32
    return %arg0, %c0_i32 : i32, i32
  }
  func.func @transform_3(%arg0: i32) -> (i32, i32) {
    %c0_i32 = arith.constant 0 : i32
    %c0_i32_0 = arith.constant 0 : i32
    %c0_i32_1 = arith.constant 0 : i32
    return %c0_i32, %c0_i32_0 : i32, i32
  }
  func.func @transform_4(%arg0: i32) -> (i32, i32) {
    %c0_i32 = arith.constant 0 : i32
    %c0_i32_0 = arith.constant 0 : i32
    %c0_i32_1 = arith.constant 0 : i32
    return %c0_i32, %c0_i32_0 : i32, i32
  }
  func.func @transform_5(%arg0: i32) -> (i32, i32) {
    %c0_i32 = arith.constant 0 : i32
    %c0_i32_0 = arith.constant 0 : i32
    %c0_i32_1 = arith.constant 0 : i32
    return %c0_i32, %c0_i32_0 : i32, i32
  }
  func.func @transform_6(%arg0: i32) -> (i32, i32) {
    %c0_i32 = arith.constant 0 : i32
    %c0_i32_0 = arith.constant 0 : i32
    %c0_i32_1 = arith.constant 0 : i32
    return %c0_i32, %c0_i32_0 : i32, i32
  }
  func.func @transform_7(%arg0: i32) -> (i32, i32) {
    %c0_i32 = arith.constant 0 : i32
    %c0_i32_0 = arith.constant 0 : i32
    %c0_i32_1 = arith.constant 0 : i32
    return %c0_i32, %c0_i32_0 : i32, i32
  }
  func.func @transform_8(%arg0: i32) -> (i32, i32) {
    %c0_i32 = arith.constant 0 : i32
    %c0_i32_0 = arith.constant 0 : i32
    %c0_i32_1 = arith.constant 0 : i32
    return %c0_i32, %c0_i32_0 : i32, i32
  }
  func.func @transform_9(%arg0: i32) -> (i32, i32) {
    %c0_i32 = arith.constant 0 : i32
    %c0_i32_0 = arith.constant 0 : i32
    %c0_i32_1 = arith.constant 0 : i32
    return %c0_i32, %c0_i32_0 : i32, i32
  }
  func.func @transform_10(%arg0: i32) -> (i32, i32) {
    %c0_i32 = arith.constant 0 : i32
    %c0_i32_0 = arith.constant 0 : i32
    %c0_i32_1 = arith.constant 0 : i32
    return %c0_i32, %c0_i32_0 : i32, i32
  }
  func.func @transform_11(%arg0: i32) -> (i32, i32) {
    %c0_i32 = arith.constant 0 : i32
    %c0_i32_0 = arith.constant 0 : i32
    %c0_i32_1 = arith.constant 0 : i32
    return %c0_i32, %c0_i32_0 : i32, i32
  }
  func.func @transform_12(%arg0: i32) -> (i32, i32) {
    %c0_i32 = arith.constant 0 : i32
    %c0_i32_0 = arith.constant 0 : i32
    %c0_i32_1 = arith.constant 0 : i32
    return %c0_i32, %c0_i32_0 : i32, i32
  }
  func.func @transform_13(%arg0: i32) -> (i32, i32) {
    %c0_i32 = arith.constant 0 : i32
    %c0_i32_0 = arith.constant 0 : i32
    %c0_i32_1 = arith.constant 0 : i32
    return %c0_i32, %c0_i32_0 : i32, i32
  }
  func.func @transform_14(%arg0: i32) -> (i32, i32) {
    %c0_i32 = arith.constant 0 : i32
    %c0_i32_0 = arith.constant 0 : i32
    %c0_i32_1 = arith.constant 0 : i32
    return %c0_i32, %c0_i32_0 : i32, i32
  }
  func.func @transform_15(%arg0: i32) -> (i32, i32) {
    %c0_i32 = arith.constant 0 : i32
    %c0_i32_0 = arith.constant 0 : i32
    %c0_i32_1 = arith.constant 0 : i32
    return %c0_i32, %c0_i32_0 : i32, i32
  }
  func.func @transform_16(%arg0: i32) -> (i32, i32) {
    %c0_i32 = arith.constant 0 : i32
    %c0_i32_0 = arith.constant 0 : i32
    %c0_i32_1 = arith.constant 0 : i32
    return %c0_i32, %c0_i32_0 : i32, i32
  }
  func.func @transform_17(%arg0: i32) -> (i32, i32) {
    %c0_i32 = arith.constant 0 : i32
    %c0_i32_0 = arith.constant 0 : i32
    %c0_i32_1 = arith.constant 0 : i32
    return %c0_i32, %c0_i32_0 : i32, i32
  }
  func.func @transform_18(%arg0: i32) -> (i32, i32) {
    %c0_i32 = arith.constant 0 : i32
    %c0_i32_0 = arith.constant 0 : i32
    %c0_i32_1 = arith.constant 0 : i32
    return %c0_i32, %c0_i32_0 : i32, i32
  }
  func.func @transform_19(%arg0: i32) -> (i32, i32) {
    %c0_i32 = arith.constant 0 : i32
    %c0_i32_0 = arith.constant 0 : i32
    %c0_i32_1 = arith.constant 0 : i32
    return %c0_i32, %c0_i32_0 : i32, i32
  }
  func.func @transform_20(%arg0: i32) -> (i32, i32) {
    %c0_i32 = arith.constant 0 : i32
    %c0_i32_0 = arith.constant 0 : i32
    %c0_i32_1 = arith.constant 0 : i32
    return %c0_i32, %c0_i32_0 : i32, i32
  }
  func.func @transform_21(%arg0: i32) -> (i32, i32) {
    %c0_i32 = arith.constant 0 : i32
    %c0_i32_0 = arith.constant 0 : i32
    return %arg0, %c0_i32 : i32, i32
  }
}

module attributes {stable_mosaic.version = 11 : i64} {
  func.func @_pool_head_kernel(%arg0: memref<2x16xf32, #tpu.memory_space<vmem>>, %arg1: memref<16x64xf32, #tpu.memory_space<vmem>>, %arg2: memref<64x4xf32, #tpu.memory_space<vmem>>, %arg3: memref<1x4xf32, #tpu.memory_space<vmem>>, %arg4: memref<2x4xf32, #tpu.memory_space<vmem>>) attributes {dimension_semantics = [], scalar_prefetch = 0 : i64, scratch_operands = 0 : i64, tpu.core_type = #tpu.core_type<tc>} {
    %c0 = arith.constant 0 : index
    %c0_0 = arith.constant 0 : index
    %0 = vector.load %arg0[%c0, %c0_0] : memref<2x16xf32, #tpu.memory_space<vmem>>, vector<2x16xf32>
    %c0_1 = arith.constant 0 : index
    %c0_2 = arith.constant 0 : index
    %1 = vector.load %arg1[%c0_1, %c0_2] : memref<16x64xf32, #tpu.memory_space<vmem>>, vector<16x64xf32>
    %2 = arith.truncf %0 : vector<2x16xf32> to vector<2x16xbf16>
    %3 = arith.truncf %1 : vector<16x64xf32> to vector<16x64xbf16>
    %cst = arith.constant dense<0.000000e+00> : vector<2x64xf32>
    %4 = tpu.matmul %2, %3, %cst {dimension_numbers = #tpu.dot_dimension_numbers<[1], [0], [0], [1], [0, 0, 1, 1], [], []>} : vector<2x16xbf16>, vector<16x64xbf16>, vector<2x64xf32> -> vector<2x64xf32>
    %c0_3 = arith.constant 0 : index
    %c0_4 = arith.constant 0 : index
    %5 = vector.load %arg2[%c0_3, %c0_4] : memref<64x4xf32, #tpu.memory_space<vmem>>, vector<64x4xf32>
    %6 = arith.truncf %4 : vector<2x64xf32> to vector<2x64xbf16>
    %7 = arith.truncf %5 : vector<64x4xf32> to vector<64x4xbf16>
    %cst_5 = arith.constant dense<0.000000e+00> : vector<2x4xf32>
    %8 = tpu.matmul %6, %7, %cst_5 {dimension_numbers = #tpu.dot_dimension_numbers<[1], [0], [0], [1], [0, 0, 1, 1], [], []>} : vector<2x64xbf16>, vector<64x4xbf16>, vector<2x4xf32> -> vector<2x4xf32>
    %c0_6 = arith.constant 0 : index
    %c0_7 = arith.constant 0 : index
    %9 = vector.load %arg3[%c0_6, %c0_7] : memref<1x4xf32, #tpu.memory_space<vmem>>, vector<1x4xf32>
    %10 = vector.broadcast %9 : vector<1x4xf32> to vector<2x4xf32>
    %11 = arith.addf %8, %10 : vector<2x4xf32>
    %cst_8 = arith.constant dense<0xFF800000> : vector<2xf32>
    %12 = vector.multi_reduction <maximumf>, %11, %cst_8 [1] : vector<2x4xf32> to vector<2xf32>
    %13 = vector.shape_cast %12 : vector<2xf32> to vector<2x1xf32>
    %14 = vector.broadcast %13 : vector<2x1xf32> to vector<2x4xf32>
    %15 = arith.subf %11, %14 : vector<2x4xf32>
    %16 = math.exp %15 : vector<2x4xf32>
    %cst_9 = arith.constant dense<0.000000e+00> : vector<2xf32>
    %17 = vector.multi_reduction <add>, %16, %cst_9 [1] : vector<2x4xf32> to vector<2xf32>
    %18 = vector.shape_cast %17 : vector<2xf32> to vector<2x1xf32>
    %19 = math.log %18 : vector<2x1xf32>
    %20 = arith.addf %19, %13 : vector<2x1xf32>
    %21 = vector.broadcast %20 : vector<2x1xf32> to vector<2x4xf32>
    %22 = arith.subf %11, %21 : vector<2x4xf32>
    %c0_10 = arith.constant 0 : index
    %c0_11 = arith.constant 0 : index
    %23 = vector.load %arg4[%c0_10, %c0_11] : memref<2x4xf32, #tpu.memory_space<vmem>>, vector<2x4xf32>
    tpu.vector_store %arg4[%c0_10, %c0_11], %22 {strides = array<i32>} : memref<2x4xf32, #tpu.memory_space<vmem>>, vector<2x4xf32>,
    return
  }
}

</mosaic_0001>

<llo_original>
// kernel: gps_conv_net_forward.5
$region0: #{gps_conv_net_forward.5}
  #allocation0 [shape = 'u32[]', space=smem, size = 0x4, offset = 0x4, fixed_abs, tag = 'smem constant byte address 0x4 - core index']
  #allocation1 [shape = 'u32[72,128]{1,0:T(1,128)}', space=vmem, size = 0x9000, scoped, tag = 'internal scratch']
  %s0 = inlined_call_operand.vmem [shape: f32[16,8], index: 0, kind: input, shape index: {}]
  %s1 = inlined_call_operand.vmem [shape: f32[8,128], index: 1, kind: input, shape index: {}]
  %s2 = inlined_call_operand.vmem [shape: f32[1,128], index: 2, kind: input, shape index: {}]
  %s3 = inlined_call_operand.vmem [shape: f32[128,64], index: 3, kind: input, shape index: {}]
  %s4 = inlined_call_operand.vmem [shape: f32[1,64], index: 4, kind: input, shape index: {}]
  %s5 = inlined_call_operand.vmem [shape: f32[16,64], index: 5, kind: output, shape index: {}]
  %s6 = sld [smem:[#allocation0]]
  $region30: #{gps_conv_net_forward.5} parent=0
    _
  %s8 = ssub.s32 1, %s6
  %s9 = scalar_select 0, %s8, %s6
  // Predicated region
  $region2: #{gps_conv_net_forward.5} parent=0 // pred_check
    _
  $region3: #{gps_conv_net_forward.5} parent=0 // pred_check_branch
    %11 = sbr.rel (0) target = $region5
  $region4: #{gps_conv_net_forward.5} parent=0 // pred_region
    _
  $region5: #{gps_conv_net_forward.5} parent=0 // pred_fallthru
    _
  // Predicated region
  $region6: #{gps_conv_net_forward.5} parent=0 // pred_check
    _
  $region7: #{gps_conv_net_forward.5} parent=0 // pred_check_branch
    %13 = sbr.rel (0) target = $region9
  $region8: #{gps_conv_net_forward.5} parent=0 // pred_region
    _
  $region9: #{gps_conv_net_forward.5} parent=0 // pred_fallthru
    _
  // Predicated region
  $region10: #{gps_conv_net_forward.5} parent=0 // pred_check
    _
  $region11: #{gps_conv_net_forward.5} parent=0 // pred_check_branch
    %15 = sbr.rel (0) target = $region13
  $region12: #{gps_conv_net_forward.5} parent=0 // pred_region
    _
  $region13: #{gps_conv_net_forward.5} parent=0 // pred_fallthru
    _
  // Predicated region
  $region14: #{gps_conv_net_forward.5} parent=0 // pred_check
    _
  $region15: #{gps_conv_net_forward.5} parent=0 // pred_check_branch
    %17 = sbr.rel (0) target = $region17
  $region16: #{gps_conv_net_forward.5} parent=0 // pred_region
    _
  $region17: #{gps_conv_net_forward.5} parent=0 // pred_fallthru
    _
  // Predicated region
  $region18: #{gps_conv_net_forward.5} parent=0 // pred_check
    _
  $region19: #{gps_conv_net_forward.5} parent=0 // pred_check_branch
    %19 = sbr.rel (0) target = $region21
  $region20: #{gps_conv_net_forward.5} parent=0 // pred_region
    _
  $region21: #{gps_conv_net_forward.5} parent=0 // pred_fallthru
    _
  %v21 = vld [vmem:[%s0] sm:$0xff]
  %v22 = vld [vmem:[%s0 + $0x8] sm:$0xff]
  %v23 = vld [vmem:[%s1] sm:$0xff]
  %v24 = vpack.c.bf16 %v22, %v21
  %v25 = vpack.c.bf16 %v23, %v23
  %v26 = vld [vmem:[%s2] sm:$0x1]
  %v28 = vperm.slane %v26, 0
  %vm30 = vcmask 64512
  %v32 = vsel %vm30, %v24, 0
  %vm34 = vcmask 1043456
  %v36 = vsel %vm34, %v25, 0
  %38 = vmatpush.bf16.msra.mxu0 0
  %39 = vmatpush.bf16.msra.mxu0 0
  %40 = vmatpush.bf16.msra.mxu0 0
  %41 = vmatpush.bf16.msra.mxu0 0
  %42 = vmatpush.bf16.msra.mxu0 0
  %43 = vmatpush.bf16.msra.mxu0 0
  %44 = vmatpush.bf16.msra.mxu0 0
  %45 = vmatpush.bf16.msra.mxu0 %v36
  %46 = vmatmul.bf16.gmra.mxu0 %v32
  %v47 = vpop.f32.mrf.mxu0
  %v48 = vadd.f32 %v28, %v47
  %v49 = vpop.f32.mrf.mxu0
  %v50 = vadd.f32 %v28, %v49
  %51 = vdwg.mxu0
  %v52 = vmul.f32 %v48, 0.5
  %v53 = vmul.f32 %v50, 0.5
  %v54 = vmul.f32 %v48, 0.044715
  %v55 = vmul.f32 %v50, 0.044715
  %v56 = vmul.f32 %v54, %v48
  %v57 = vmul.f32 %v55, %v50
  %v58 = vmul.f32 %v56, %v48
  %v59 = vmul.f32 %v57, %v50
  %v60 = vadd.f32 %v48, %v58
  %v61 = vadd.f32 %v50, %v59
  %v62 = vmul.f32 %v60, 0.7978846
  %v63 = vmul.f32 %v61, 0.7978846
  %v64 = vtanh.pop %v62
  %v65 = vtanh.pop %v63
  %v66 = vadd.f32 %v64, 1.0
  %v67 = vadd.f32 %v65, 1.0
  %v68 = vmul.f32 %v52, %v66
  %v69 = vmul.f32 %v53, %v67
  %v70 = vld [vmem:[%s3] sm:$0xff]
  %v71 = vld [vmem:[%s3 + $0x8] sm:$0xff]
  %v72 = vld [vmem:[%s3 + $0x10] sm:$0xff]
  %v73 = vld [vmem:[%s3 + $0x18] sm:$0xff]
  %v74 = vld [vmem:[%s3 + $0x20] sm:$0xff]
  %v75 = vld [vmem:[%s3 + $0x28] sm:$0xff]
  %v76 = vld [vmem:[%s3 + $0x30] sm:$0xff]
  %v77 = vld [vmem:[%s3 + $0x38] sm:$0xff]
  %v78 = vld [vmem:[%s3 + $0x40] sm:$0xff]
  %v79 = vld [vmem:[%s3 + $0x48] sm:$0xff]
  %v80 = vld [vmem:[%s3 + $0x50] sm:$0xff]
  %v81 = vld [vmem:[%s3 + $0x58] sm:$0xff]
  %v82 = vld [vmem:[%s3 + $0x60] sm:$0xff]
  %v83 = vld [vmem:[%s3 + $0x68] sm:$0xff]
  %v84 = vld [vmem:[%s3 + $0x70] sm:$0xff]
  %v85 = vld [vmem:[%s3 + $0x78] sm:$0xff]
  %v86 = vpack.c.bf16 %v69, %v68
  %v87 = vpack.c.bf16 %v71, %v70
  %v88 = vpack.c.bf16 %v73, %v72
  %v89 = vpack.c.bf16 %v75, %v74
  %v90 = vpack.c.bf16 %v77, %v76
  %v91 = vpack.c.bf16 %v79, %v78
  %v92 = vpack.c.bf16 %v81, %v80
  %v93 = vpack.c.bf16 %v83, %v82
  %v94 = vpack.c.bf16 %v85, %v84
  %v95 = vld [vmem:[%s4] sm:$0x1]
  %v97 = vperm.slane %v95, 0
  %99 = vmatpush.bf16.msra.mxu0 %v94
  %100 = vmatpush.bf16.msra.mxu0 %v93
  %101 = vmatpush.bf16.msra.mxu0 %v92
  %102 = vmatpush.bf16.msra.mxu0 %v91
  %103 = vmatpush.bf16.msra.mxu0 %v90
  %104 = vmatpush.bf16.msra.mxu0 %v89
  %105 = vmatpush.bf16.msra.mxu0 %v88
  %106 = vmatpush.bf16.msra.mxu0 %v87
  %107 = vmatmul.bf16.gmra.mxu0 %v86
  %v108 = vpop.f32.mrf.mxu0
  %v109 = vadd.f32 %v97, %v108
  %v110 = vpop.f32.mrf.mxu0
  %v111 = vadd.f32 %v97, %v110
  %112 = vdwg.mxu0
  %v113 = vmul.f32 %v109, 0.5
  %v114 = vmul.f32 %v111, 0.5
  %v115 = vmul.f32 %v109, 0.044715
  %v116 = vmul.f32 %v111, 0.044715
  %v117 = vmul.f32 %v115, %v109
  %v118 = vmul.f32 %v116, %v111
  %v119 = vmul.f32 %v117, %v109
  %v120 = vmul.f32 %v118, %v111
  %v121 = vadd.f32 %v109, %v119
  %v122 = vadd.f32 %v111, %v120
  %v123 = vmul.f32 %v121, 0.7978846
  %v124 = vmul.f32 %v122, 0.7978846
  %v125 = vtanh.pop %v123
  %v126 = vtanh.pop %v124
  %v127 = vadd.f32 %v125, 1.0
  %v128 = vadd.f32 %v126, 1.0
  %v129 = vmul.f32 %v113, %v127
  %v130 = vmul.f32 %v114, %v128
  %vm131 = vcmask 523264
  %132 = vst.msk [vmem:[%s5] sm:$0xff] %vm131, %v129
  %133 = vst.msk [vmem:[%s5 + $0x8] sm:$0xff] %vm131, %v130
  // Predicated region
  $region22: #{gps_conv_net_forward.5} parent=0 // pred_check
    _
  $region23: #{gps_conv_net_forward.5} parent=0 // pred_check_branch
    %135 = sbr.rel (0) target = $region25
  $region24: #{gps_conv_net_forward.5} parent=0 // pred_region
    _
  $region25: #{gps_conv_net_forward.5} parent=0 // pred_fallthru
    _
  // Predicated region
  $region26: #{gps_conv_net_forward.5} parent=0 // pred_check
    _
  $region27: #{gps_conv_net_forward.5} parent=0 // pred_check_branch
    %137 = sbr.rel (0) target = $region29
  $region28: #{gps_conv_net_forward.5} parent=0 // pred_region
    _
  $region29: #{gps_conv_net_forward.5} parent=0 // pred_fallthru
    _

// kernel: gps_conv_net_forward.9
$region0: #{gps_conv_net_forward.9}
  #allocation0 [shape = 'u32[]', space=smem, size = 0x4, offset = 0x4, fixed_abs, tag = 'smem constant byte address 0x4 - core index']
  #allocation1 [shape = 'u32[72,128]{1,0:T(1,128)}', space=vmem, size = 0x9000, scoped, tag = 'internal scratch']
  %s0 = inlined_call_operand.vmem [shape: f32[2,16], index: 0, kind: input, shape index: {}]
  %s1 = inlined_call_operand.vmem [shape: f32[16,64], index: 1, kind: input, shape index: {}]
  %s2 = inlined_call_operand.vmem [shape: f32[64,4], index: 2, kind: input, shape index: {}]
  %s3 = inlined_call_operand.vmem [shape: f32[1,4], index: 3, kind: input, shape index: {}]
  %s4 = inlined_call_operand.hbm [shape: f32[2,4], index: 4, kind: output, shape index: {}]
  %s5 = sld [smem:[#allocation0]]
  $region26: #{gps_conv_net_forward.9} parent=0
    _
  %s7 = ssub.s32 1, %s5
  %s8 = scalar_select 0, %s7, %s5
  $region1: #{gps_conv_net_forward.9} parent=0
    #allocation2 [shape = 'u8[1024]{0}', space=vmem, size = 0x400, scoped, tag = 'output window, operand 0, single buffered']
    #allocation3 [shape = 's32[1]{0}', space=sflag, size = 0x4, scoped, tag = 'scoped memory for gps_conv_net_forward.9']
    %9 = vsyncpa [#allocation3], 0
    // Predicated region
    $region2: #{gps_conv_net_forward.9} parent=1 // pred_check
      _
    $region3: #{gps_conv_net_forward.9} parent=1 // pred_check_branch
      %11 = sbr.rel (0) target = $region5
    $region4: #{gps_conv_net_forward.9} parent=1 // pred_region
      _
    $region5: #{gps_conv_net_forward.9} parent=1 // pred_fallthru
      _
    // Predicated region
    $region6: #{gps_conv_net_forward.9} parent=1 // pred_check
      _
    $region7: #{gps_conv_net_forward.9} parent=1 // pred_check_branch
      %13 = sbr.rel (0) target = $region9
    $region8: #{gps_conv_net_forward.9} parent=1 // pred_region
      _
    $region9: #{gps_conv_net_forward.9} parent=1 // pred_fallthru
      _
    // Predicated region
    $region10: #{gps_conv_net_forward.9} parent=1 // pred_check
      _
    $region11: #{gps_conv_net_forward.9} parent=1 // pred_check_branch
      %15 = sbr.rel (0) target = $region13
    $region12: #{gps_conv_net_forward.9} parent=1 // pred_region
      _
    $region13: #{gps_conv_net_forward.9} parent=1 // pred_fallthru
      _
    // Predicated region
    $region14: #{gps_conv_net_forward.9} parent=1 // pred_check
      _
    $region15: #{gps_conv_net_forward.9} parent=1 // pred_check_branch
      %17 = sbr.rel (0) target = $region17
    $region16: #{gps_conv_net_forward.9} parent=1 // pred_region
      _
    $region17: #{gps_conv_net_forward.9} parent=1 // pred_fallthru
      _
    %v19 = vld [vmem:[%s0] sm:$0x3]
    %v20 = vld [vmem:[%s1] sm:$0xff]
    %v21 = vld [vmem:[%s1 + $0x8] sm:$0xff]
    %v22 = vpack.c.bf16 %v19, %v19
    %v23 = vpack.c.bf16 %v21, %v20
    %vm24 = vcmask 130048
    %v26 = vsel %vm24, %v22, 0
    %28 = vmatpush.bf16.msra.mxu0 0
    %29 = vmatpush.bf16.msra.mxu0 0
    %30 = vmatpush.bf16.msra.mxu0 0
    %31 = vmatpush.bf16.msra.mxu0 0
    %32 = vmatpush.bf16.msra.mxu0 0
    %33 = vmatpush.bf16.msra.mxu0 0
    %34 = vmatpush.bf16.msra.mxu0 0
    %35 = vmatpush.bf16.msra.mxu0 %v23
    %36 = vmatmul.bf16.gmra.mxu0 %v26
    %v37 = vpop.f32.mrf.mxu0
    %v38 = vadd.f32 0.0, %v37
    %v39 = vpop.f32.mrf.mxu0
    %40 = vdwg.mxu0
    %v41 = vld [vmem:[%s2] sm:$0xff]
    %v42 = vld [vmem:[%s2 + $0x8] sm:$0xff]
    %v43 = vld [vmem:[%s2 + $0x10] sm:$0xff]
    %v44 = vld [vmem:[%s2 + $0x18] sm:$0xff]
    %v45 = vld [vmem:[%s2 + $0x20] sm:$0xff]
    %v46 = vld [vmem:[%s2 + $0x28] sm:$0xff]
    %v47 = vld [vmem:[%s2 + $0x30] sm:$0xff]
    %v48 = vld [vmem:[%s2 + $0x38] sm:$0xff]
    %v49 = vpack.c.bf16 %v38, %v38
    %v50 = vpack.c.bf16 %v42, %v41
    %v51 = vpack.c.bf16 %v44, %v43
    %v52 = vpack.c.bf16 %v46, %v45
    %v53 = vpack.c.bf16 %v48, %v47
    %v54 = vld [vmem:[%s3] sm:$0x1]
    %v56 = vperm.slane %v54, 0
    %vm58 = vcmask 523264
    %v60 = vsel %vm58, %v49, 0
    %62 = vmatpush.bf16.msra.mxu0 0
    %63 = vmatpush.bf16.msra.mxu0 0
    %64 = vmatpush.bf16.msra.mxu0 0
    %65 = vmatpush.bf16.msra.mxu0 0
    %66 = vmatpush.bf16.msra.mxu0 %v53
    %67 = vmatpush.bf16.msra.mxu0 %v52
    %68 = vmatpush.bf16.msra.mxu0 %v51
    %69 = vmatpush.bf16.msra.mxu0 %v50
    %70 = vmatmul.bf16.gmra.mxu0 %v60
    %v71 = vpop.f32.mrf.mxu0
    %v72 = vadd.f32 %v56, %v71
    %v73 = vpop.f32.mrf.mxu0
    %74 = vdwg.mxu0
    %vm75 = vcmask 25600
    %v76 = vsel %vm75, %v72, -inf
    %77 = vmax.xlane.f32.xlu0 %v76
    %v78 = vpop.xlane.xlu0 %77
    %v79 = vsub.f32 %v72, %v78
    %v80 = vmul.f32 %v79, 1.442695
    %v81 = vpow.pop %v80
    %v82 = vsel %vm75, %v81, 0.0
    %83 = vadd.xlane.f32.xlu0 %v82
    %v84 = vpop.xlane.xlu0 %83
    %v85 = vlog2.pop %v84
    %v86 = vmul.f32 %v85, 0.6931472
    %v87 = vadd.f32 %v86, %v78
    %v88 = vsub.f32 %v72, %v87
    %89 = vst.msk [vmem:[#allocation2] sm:$0x3] %vm75, %v88
    // Predicated region
    $region18: #{gps_conv_net_forward.9} parent=1 // pred_check
      _
    $region19: #{gps_conv_net_forward.9} parent=1 // pred_check_branch
      %91 = sbr.rel (0) target = $region21
    $region20: #{gps_conv_net_forward.9} parent=1 // pred_region
      %93 = vsyncadd [#allocation3], 0
      %s95 = sshll.u32 [#allocation2], 4
      %s96 = int_to_ptr.vmem [resolvable:$true] %s95
      %s97 = sshll.u32 %s4, 4
      %s98 = int_to_ptr.hbm [resolvable:$true] %s97
      %100 = dma.vmem_to_hbm [thread:$0]  %s96, 32, %s98, [#allocation3]
    $region21: #{gps_conv_net_forward.9} parent=1 // pred_fallthru
      _
    // Predicated region
    $region22: #{gps_conv_net_forward.9} parent=1 // pred_check
      _
    $region23: #{gps_conv_net_forward.9} parent=1 // pred_check_branch
      %102 = sbr.rel (0) target = $region25
    $region24: #{gps_conv_net_forward.9} parent=1 // pred_region
      %104 = dma.done [#allocation3], 32
    $region25: #{gps_conv_net_forward.9} parent=1 // pred_fallthru
      _
    %105 = vsyncpa [#allocation3], 1

// kernel: gps_conv_net_forward.7
$region0: #{gps_conv_net_forward.7}
  #allocation0 [shape = 'u32[]', space=smem, size = 0x4, offset = 0x4, fixed_abs, tag = 'smem constant byte address 0x4 - core index']
  #allocation1 [shape = 'u32[72,128]{1,0:T(1,128)}', space=vmem, size = 0x9000, scoped, tag = 'internal scratch']
  #allocation2 [shape = 'f32[16,16]{1,0:T(8,128)}', space=vmem, size = 0x2000, scoped, tag = 'scratch operand']
  #allocation3 [shape = 'f32[16,64]{1,0:T(8,128)}', space=vmem, size = 0x2000, scoped, tag = 'scratch operand']
  %s0 = inlined_call_operand.vmem [shape: f32[16,64], index: 0, kind: input, shape index: {}]
  %s1 = inlined_call_operand.vmem [shape: bf16[16,16], index: 1, kind: input, shape index: {}]
  %s2 = inlined_call_operand.vmem [shape: bf16[16,16], index: 2, kind: input, shape index: {}]
  %s3 = inlined_call_operand.vmem [shape: f32[64,192], index: 3, kind: input, shape index: {}]
  %s4 = inlined_call_operand.vmem [shape: f32[1,192], index: 4, kind: input, shape index: {}]
  %s5 = inlined_call_operand.hbm [shape: f32[64,128], index: 5, kind: input, shape index: {}]
  %s6 = inlined_call_operand.vmem [shape: f32[1,128], index: 6, kind: input, shape index: {}]
  %s7 = inlined_call_operand.vmem [shape: f32[1,64], index: 7, kind: input, shape index: {}]
  %s8 = inlined_call_operand.hbm [shape: f32[1,64], index: 8, kind: input, shape index: {}]
  %s9 = inlined_call_operand.hbm [shape: f32[64,64], index: 9, kind: input, shape index: {}]
  %s10 = inlined_call_operand.vmem [shape: f32[1,64], index: 10, kind: input, shape index: {}]
  %s11 = inlined_call_operand.hbm [shape: f32[64,128], index: 11, kind: input, shape index: {}]
  %s12 = inlined_call_operand.vmem [shape: f32[1,128], index: 12, kind: input, shape index: {}]
  %s13 = inlined_call_operand.vmem [shape: f32[128,64], index: 13, kind: input, shape index: {}]
  %s14 = inlined_call_operand.hbm [shape: f32[1,64], index: 14, kind: input, shape index: {}]
  %s15 = inlined_call_operand.hbm [shape: f32[1,64], index: 15, kind: input, shape index: {}]
  %s16 = inlined_call_operand.hbm [shape: f32[1,64], index: 16, kind: input, shape index: {}]
  %s17 = inlined_call_operand.hbm [shape: f32[1,64], index: 17, kind: input, shape index: {}]
  %s18 = inlined_call_operand.hbm [shape: f32[1,64], index: 18, kind: input, shape index: {}]
  %s19 = inlined_call_operand.hbm [shape: f32[1,64], index: 19, kind: input, shape index: {}]
  %s20 = inlined_call_operand.hbm [shape: f32[1,64], index: 20, kind: input, shape index: {}]
  %s21 = inlined_call_operand.vmem [shape: f32[16,64], index: 21, kind: output, shape index: {}]
  %s22 = sld [smem:[#allocation0]]
  $region138: #{gps_conv_net_forward.7} parent=0
    _
  %s24 = ssub.s32 1, %s22
  %s25 = scalar_select 0, %s24, %s22
  $region1: #{gps_conv_net_forward.7} parent=0
    #allocation4 [shape = 'u8[32768]{0}', space=vmem, size = 0x8000, scoped, tag = 'input window, operand 5, single buffered']
    #allocation5 [shape = 's32[1]{0}', space=sflag, size = 0x4, scoped, tag = 'scoped memory for gps_conv_net_forward.7']
    #allocation6 [shape = 'u8[512]{0}', space=vmem, size = 0x400, scoped, tag = 'input window, operand 8, single buffered']
    #allocation7 [shape = 's32[1]{0}', space=sflag, size = 0x4, scoped, tag = 'scoped memory for gps_conv_net_forward.7']
    #allocation8 [shape = 'u8[32768]{0}', space=vmem, size = 0x8000, scoped, tag = 'input window, operand 9, single buffered']
    #allocation9 [shape = 'u8[32768]{0}', space=vmem, size = 0x8000, scoped, tag = 'input window, operand 11, single buffered']
    #allocation10 [shape = 's32[1]{0}', space=sflag, size = 0x4, scoped, tag = 'scoped memory for gps_conv_net_forward.7']
    #allocation11 [shape = 'u8[512]{0}', space=vmem, size = 0x400, scoped, tag = 'input window, operand 14, single buffered']
    #allocation12 [shape = 'u8[512]{0}', space=vmem, size = 0x400, scoped, tag = 'input window, operand 15, single buffered']
    #allocation13 [shape = 's32[1]{0}', space=sflag, size = 0x4, scoped, tag = 'scoped memory for gps_conv_net_forward.7']
    #allocation14 [shape = 'u8[512]{0}', space=vmem, size = 0x400, scoped, tag = 'input window, operand 16, single buffered']
    #allocation15 [shape = 'u8[512]{0}', space=vmem, size = 0x400, scoped, tag = 'input window, operand 17, single buffered']
    #allocation16 [shape = 's32[1]{0}', space=sflag, size = 0x4, scoped, tag = 'scoped memory for gps_conv_net_forward.7']
    #allocation17 [shape = 'u8[512]{0}', space=vmem, size = 0x400, scoped, tag = 'input window, operand 18, single buffered']
    #allocation18 [shape = 'u8[512]{0}', space=vmem, size = 0x400, scoped, tag = 'input window, operand 19, single buffered']
    #allocation19 [shape = 's32[1]{0}', space=sflag, size = 0x4, scoped, tag = 'scoped memory for gps_conv_net_forward.7']
    #allocation20 [shape = 'u8[512]{0}', space=vmem, size = 0x400, scoped, tag = 'input window, operand 20, single buffered']
    %26 = vsyncpa [#allocation5], 0
    %27 = vsyncpa [#allocation7], 0
    %28 = vsyncpa [#allocation10], 0
    %29 = vsyncpa [#allocation13], 0
    %30 = vsyncpa [#allocation16], 0
    %31 = vsyncpa [#allocation19], 0
    // Predicated region
    $region2: #{gps_conv_net_forward.7} parent=1 // pred_check
      _
    $region3: #{gps_conv_net_forward.7} parent=1 // pred_check_branch
      %33 = sbr.rel (0) target = $region5
    $region4: #{gps_conv_net_forward.7} parent=1 // pred_region
      _
    $region5: #{gps_conv_net_forward.7} parent=1 // pred_fallthru
      _
    // Predicated region
    $region6: #{gps_conv_net_forward.7} parent=1 // pred_check
      _
    $region7: #{gps_conv_net_forward.7} parent=1 // pred_check_branch
      %35 = sbr.rel (0) target = $region9
    $region8: #{gps_conv_net_forward.7} parent=1 // pred_region
      _
    $region9: #{gps_conv_net_forward.7} parent=1 // pred_fallthru
      _
    // Predicated region
    $region10: #{gps_conv_net_forward.7} parent=1 // pred_check
      _
    $region11: #{gps_conv_net_forward.7} parent=1 // pred_check_branch
      %37 = sbr.rel (0) target = $region13
    $region12: #{gps_conv_net_forward.7} parent=1 // pred_region
      _
    $region13: #{gps_conv_net_forward.7} parent=1 // pred_fallthru
      _
    // Predicated region
    $region14: #{gps_conv_net_forward.7} parent=1 // pred_check
      _
    $region15: #{gps_conv_net_forward.7} parent=1 // pred_check_branch
      %39 = sbr.rel (0) target = $region17
    $region16: #{gps_conv_net_forward.7} parent=1 // pred_region
      _
    $region17: #{gps_conv_net_forward.7} parent=1 // pred_fallthru
      _
    // Predicated region
    $region18: #{gps_conv_net_forward.7} parent=1 // pred_check
      _
    $region19: #{gps_conv_net_forward.7} parent=1 // pred_check_branch
      %41 = sbr.rel (0) target = $region21
    $region20: #{gps_conv_net_forward.7} parent=1 // pred_region
      _
    $region21: #{gps_conv_net_forward.7} parent=1 // pred_fallthru
      _
    // Predicated region
    $region22: #{gps_conv_net_forward.7} parent=1 // pred_check
      _
    $region23: #{gps_conv_net_forward.7} parent=1 // pred_check_branch
      %43 = sbr.rel (0) target = $region25
    $region24: #{gps_conv_net_forward.7} parent=1 // pred_region
      %45 = vsyncadd [#allocation5], 0
      %s46 = sshll.u32 %s5, 4
      %s47 = int_to_ptr.hbm [resolvable:$true] %s46
      %s48 = sshll.u32 [#allocation4], 4
      %s49 = int_to_ptr.vmem [resolvable:$true] %s48
      %54 = dma.hbm_to_vmem [thread:$0]  %s47, 1024, %s49, [#allocation5], 128, 128, 8
    $region25: #{gps_conv_net_forward.7} parent=1 // pred_fallthru
      _
    // Predicated region
    $region26: #{gps_conv_net_forward.7} parent=1 // pred_check
      _
    $region27: #{gps_conv_net_forward.7} parent=1 // pred_check_branch
      %56 = sbr.rel (0) target = $region29
    $region28: #{gps_conv_net_forward.7} parent=1 // pred_region
      _
    $region29: #{gps_conv_net_forward.7} parent=1 // pred_fallthru
      _
    // Predicated region
    $region30: #{gps_conv_net_forward.7} parent=1 // pred_check
      _
    $region31: #{gps_conv_net_forward.7} parent=1 // pred_check_branch
      %58 = sbr.rel (0) target = $region33
    $region32: #{gps_conv_net_forward.7} parent=1 // pred_region
      _
    $region33: #{gps_conv_net_forward.7} parent=1 // pred_fallthru
      _
    // Predicated region
    $region34: #{gps_conv_net_forward.7} parent=1 // pred_check
      _
    $region35: #{gps_conv_net_forward.7} parent=1 // pred_check_branch
      %60 = sbr.rel (0) target = $region37
    $region36: #{gps_conv_net_forward.7} parent=1 // pred_region
      %62 = vsyncadd [#allocation7], 0
      %s64 = sshll.u32 %s8, 4
      %s65 = int_to_ptr.hbm [resolvable:$true] %s64
      %s66 = sshll.u32 [#allocation6], 4
      %s67 = int_to_ptr.vmem [resolvable:$true] %s66
      %69 = dma.hbm_to_vmem [thread:$0]  %s65, 16, %s67, [#allocation7]
    $region37: #{gps_conv_net_forward.7} parent=1 // pred_fallthru
      _
    // Predicated region
    $region38: #{gps_conv_net_forward.7} parent=1 // pred_check
      _
    $region39: #{gps_conv_net_forward.7} parent=1 // pred_check_branch
      %71 = sbr.rel (0) target = $region41
    $region40: #{gps_conv_net_forward.7} parent=1 // pred_region
      %73 = vsyncadd [#allocation7], 0
      %s74 = sshll.u32 %s9, 4
      %s75 = int_to_ptr.hbm [resolvable:$true] %s74
      %s76 = sshll.u32 [#allocation8], 4
      %s77 = int_to_ptr.vmem [resolvable:$true] %s76
      %82 = dma.hbm_to_vmem [thread:$0]  %s75, 1024, %s77, [#allocation7], 128, 128, 8
    $region41: #{gps_conv_net_forward.7} parent=1 // pred_fallthru
      _
    // Predicated region
    $region42: #{gps_conv_net_forward.7} parent=1 // pred_check
      _
    $region43: #{gps_conv_net_forward.7} parent=1 // pred_check_branch
      %84 = sbr.rel (0) target = $region45
    $region44: #{gps_conv_net_forward.7} parent=1 // pred_region
      _
    $region45: #{gps_conv_net_forward.7} parent=1 // pred_fallthru
      _
    // Predicated region
    $region46: #{gps_conv_net_forward.7} parent=1 // pred_check
      _
    $region47: #{gps_conv_net_forward.7} parent=1 // pred_check_branch
      %86 = sbr.rel (0) target = $region49
    $region48: #{gps_conv_net_forward.7} parent=1 // pred_region
      %88 = vsyncadd [#allocation10], 0
      %s89 = sshll.u32 %s11, 4
      %s90 = int_to_ptr.hbm [resolvable:$true] %s89
      %s91 = sshll.u32 [#allocation9], 4
      %s92 = int_to_ptr.vmem [resolvable:$true] %s91
      %97 = dma.hbm_to_vmem [thread:$0]  %s90, 1024, %s92, [#allocation10], 128, 128, 8
    $region49: #{gps_conv_net_forward.7} parent=1 // pred_fallthru
      _
    // Predicated region
    $region50: #{gps_conv_net_forward.7} parent=1 // pred_check
      _
    $region51: #{gps_conv_net_forward.7} parent=1 // pred_check_branch
      %99 = sbr.rel (0) target = $region53
    $region52: #{gps_conv_net_forward.7} parent=1 // pred_region
      _
    $region53: #{gps_conv_net_forward.7} parent=1 // pred_fallthru
      _
    // Predicated region
    $region54: #{gps_conv_net_forward.7} parent=1 // pred_check
      _
    $region55: #{gps_conv_net_forward.7} parent=1 // pred_check_branch
      %101 = sbr.rel (0) target = $region57
    $region56: #{gps_conv_net_forward.7} parent=1 // pred_region
      _
    $region57: #{gps_conv_net_forward.7} parent=1 // pred_fallthru
      _
    // Predicated region
    $region58: #{gps_conv_net_forward.7} parent=1 // pred_check
      _
    $region59: #{gps_conv_net_forward.7} parent=1 // pred_check_branch
      %103 = sbr.rel (0) target = $region61
    $region60: #{gps_conv_net_forward.7} parent=1 // pred_region
      %105 = vsyncadd [#allocation10], 0
      %s107 = sshll.u32 %s14, 4
      %s108 = int_to_ptr.hbm [resolvable:$true] %s107
      %s109 = sshll.u32 [#allocation11], 4
      %s110 = int_to_ptr.vmem [resolvable:$true] %s109
      %112 = dma.hbm_to_vmem [thread:$0]  %s108, 16, %s110, [#allocation10]
    $region61: #{gps_conv_net_forward.7} parent=1 // pred_fallthru
      _
    // Predicated region
    $region62: #{gps_conv_net_forward.7} parent=1 // pred_check
      _
    $region63: #{gps_conv_net_forward.7} parent=1 // pred_check_branch
      %114 = sbr.rel (0) target = $region65
    $region64: #{gps_conv_net_forward.7} parent=1 // pred_region
      %116 = vsyncadd [#allocation13], 0
      %s118 = sshll.u32 %s15, 4
      %s119 = int_to_ptr.hbm [resolvable:$true] %s118
      %s120 = sshll.u32 [#allocation12], 4
      %s121 = int_to_ptr.vmem [resolvable:$true] %s120
      %123 = dma.hbm_to_vmem [thread:$0]  %s119, 16, %s121, [#allocation13]
    $region65: #{gps_conv_net_forward.7} parent=1 // pred_fallthru
      _
    // Predicated region
    $region66: #{gps_conv_net_forward.7} parent=1 // pred_check
      _
    $region67: #{gps_conv_net_forward.7} parent=1 // pred_check_branch
      %125 = sbr.rel (0) target = $region69
    $region68: #{gps_conv_net_forward.7} parent=1 // pred_region
      %127 = vsyncadd [#allocation13], 0
      %s129 = sshll.u32 %s16, 4
      %s130 = int_to_ptr.hbm [resolvable:$true] %s129
      %s131 = sshll.u32 [#allocation14], 4
      %s132 = int_to_ptr.vmem [resolvable:$true] %s131
      %134 = dma.hbm_to_vmem [thread:$0]  %s130, 16, %s132, [#allocation13]
    $region69: #{gps_conv_net_forward.7} parent=1 // pred_fallthru
      _
    // Predicated region
    $region70: #{gps_conv_net_forward.7} parent=1 // pred_check
      _
    $region71: #{gps_conv_net_forward.7} parent=1 // pred_check_branch
      %136 = sbr.rel (0) target = $region73
    $region72: #{gps_conv_net_forward.7} parent=1 // pred_region
      %138 = vsyncadd [#allocation16], 0
      %s140 = sshll.u32 %s17, 4
      %s141 = int_to_ptr.hbm [resolvable:$true] %s140
      %s142 = sshll.u32 [#allocation15], 4
      %s143 = int_to_ptr.vmem [resolvable:$true] %s142
      %145 = dma.hbm_to_vmem [thread:$0]  %s141, 16, %s143, [#allocation16]
    $region73: #{gps_conv_net_forward.7} parent=1 // pred_fallthru
      _
    // Predicated region
    $region74: #{gps_conv_net_forward.7} parent=1 // pred_check
      _
    $region75: #{gps_conv_net_forward.7} parent=1 // pred_check_branch
      %147 = sbr.rel (0) target = $region77
    $region76: #{gps_conv_net_forward.7} parent=1 // pred_region
      %149 = vsyncadd [#allocation16], 0
      %s151 = sshll.u32 %s18, 4
      %s152 = int_to_ptr.hbm [resolvable:$true] %s151
      %s153 = sshll.u32 [#allocation17], 4
      %s154 = int_to_ptr.vmem [resolvable:$true] %s153
      %156 = dma.hbm_to_vmem [thread:$0]  %s152, 16, %s154, [#allocation16]
    $region77: #{gps_conv_net_forward.7} parent=1 // pred_fallthru
      _
    // Predicated region
    $region78: #{gps_conv_net_forward.7} parent=1 // pred_check
      _
    $region79: #{gps_conv_net_forward.7} parent=1 // pred_check_branch
      %158 = sbr.rel (0) target = $region81
    $region80: #{gps_conv_net_forward.7} parent=1 // pred_region
      %160 = vsyncadd [#allocation19], 0
      %s162 = sshll.u32 %s19, 4
      %s163 = int_to_ptr.hbm [resolvable:$true] %s162
      %s164 = sshll.u32 [#allocation18], 4
      %s165 = int_to_ptr.vmem [resolvable:$true] %s164
      %167 = dma.hbm_to_vmem [thread:$0]  %s163, 16, %s165, [#allocation19]
    $region81: #{gps_conv_net_forward.7} parent=1 // pred_fallthru
      _
    // Predicated region
    $region82: #{gps_conv_net_forward.7} parent=1 // pred_check
      _
    $region83: #{gps_conv_net_forward.7} parent=1 // pred_check_branch
      %169 = sbr.rel (0) target = $region85
    $region84: #{gps_conv_net_forward.7} parent=1 // pred_region
      %171 = vsyncadd [#allocation19], 0
      %s173 = sshll.u32 %s20, 4
      %s174 = int_to_ptr.hbm [resolvable:$true] %s173
      %s175 = sshll.u32 [#allocation20], 4
      %s176 = int_to_ptr.vmem [resolvable:$true] %s175
      %178 = dma.hbm_to_vmem [thread:$0]  %s174, 16, %s176, [#allocation19]
    $region85: #{gps_conv_net_forward.7} parent=1 // pred_fallthru
      _
    // Predicated region
    $region86: #{gps_conv_net_forward.7} parent=1 // pred_check
      _
    $region87: #{gps_conv_net_forward.7} parent=1 // pred_check_branch
      %180 = sbr.rel (0) target = $region89
    $region88: #{gps_conv_net_forward.7} parent=1 // pred_region
      %182 = dma.done [#allocation5], 1024
    $region89: #{gps_conv_net_forward.7} parent=1 // pred_fallthru
      _
    // Predicated region
    $region90: #{gps_conv_net_forward.7} parent=1 // pred_check
      _
    $region91: #{gps_conv_net_forward.7} parent=1 // pred_check_branch
      %184 = sbr.rel (0) target = $region93
    $region92: #{gps_conv_net_forward.7} parent=1 // pred_region
      %186 = dma.done [#allocation7], 16
    $region93: #{gps_conv_net_forward.7} parent=1 // pred_fallthru
      _
    // Predicated region
    $region94: #{gps_conv_net_forward.7} parent=1 // pred_check
      _
    $region95: #{gps_conv_net_forward.7} parent=1 // pred_check_branch
      %188 = sbr.rel (0) target = $region97
    $region96: #{gps_conv_net_forward.7} parent=1 // pred_region
      %190 = dma.done [#allocation7], 1024
    $region97: #{gps_conv_net_forward.7} parent=1 // pred_fallthru
      _
    // Predicated region
    $region98: #{gps_conv_net_forward.7} parent=1 // pred_check
      _
    $region99: #{gps_conv_net_forward.7} parent=1 // pred_check_branch
      %192 = sbr.rel (0) target = $region101
    $region100: #{gps_conv_net_forward.7} parent=1 // pred_region
      %194 = dma.done [#allocation10], 1024
    $region101: #{gps_conv_net_forward.7} parent=1 // pred_fallthru
      _
    // Predicated region
    $region102: #{gps_conv_net_forward.7} parent=1 // pred_check
      _
    $region103: #{gps_conv_net_forward.7} parent=1 // pred_check_branch
      %196 = sbr.rel (0) target = $region105
    $region104: #{gps_conv_net_forward.7} parent=1 // pred_region
      %198 = dma.done [#allocation10], 16
    $region105: #{gps_conv_net_forward.7} parent=1 // pred_fallthru
      _
    // Predicated region
    $region106: #{gps_conv_net_forward.7} parent=1 // pred_check
      _
    $region107: #{gps_conv_net_forward.7} parent=1 // pred_check_branch
      %200 = sbr.rel (0) target = $region109
    $region108: #{gps_conv_net_forward.7} parent=1 // pred_region
      %202 = dma.done [#allocation13], 16
    $region109: #{gps_conv_net_forward.7} parent=1 // pred_fallthru
      _
    // Predicated region
    $region110: #{gps_conv_net_forward.7} parent=1 // pred_check
      _
    $region111: #{gps_conv_net_forward.7} parent=1 // pred_check_branch
      %204 = sbr.rel (0) target = $region113
    $region112: #{gps_conv_net_forward.7} parent=1 // pred_region
      %206 = dma.done [#allocation13], 16
    $region113: #{gps_conv_net_forward.7} parent=1 // pred_fallthru
      _
    // Predicated region
    $region114: #{gps_conv_net_forward.7} parent=1 // pred_check
      _
    $region115: #{gps_conv_net_forward.7} parent=1 // pred_check_branch
      %208 = sbr.rel (0) target = $region117
    $region116: #{gps_conv_net_forward.7} parent=1 // pred_region
      %210 = dma.done [#allocation16], 16
    $region117: #{gps_conv_net_forward.7} parent=1 // pred_fallthru
      _
    // Predicated region
    $region118: #{gps_conv_net_forward.7} parent=1 // pred_check
      _
    $region119: #{gps_conv_net_forward.7} parent=1 // pred_check_branch
      %212 = sbr.rel (0) target = $region121
    $region120: #{gps_conv_net_forward.7} parent=1 // pred_region
      %214 = dma.done [#allocation16], 16
    $region121: #{gps_conv_net_forward.7} parent=1 // pred_fallthru
      _
    // Predicated region
    $region122: #{gps_conv_net_forward.7} parent=1 // pred_check
      _
    $region123: #{gps_conv_net_forward.7} parent=1 // pred_check_branch
      %216 = sbr.rel (0) target = $region125
    $region124: #{gps_conv_net_forward.7} parent=1 // pred_region
      %218 = dma.done [#allocation19], 16
    $region125: #{gps_conv_net_forward.7} parent=1 // pred_fallthru
      _
    // Predicated region
    $region126: #{gps_conv_net_forward.7} parent=1 // pred_check
      _
    $region127: #{gps_conv_net_forward.7} parent=1 // pred_check_branch
      %220 = sbr.rel (0) target = $region129
    $region128: #{gps_conv_net_forward.7} parent=1 // pred_region
      %222 = dma.done [#allocation19], 16
    $region129: #{gps_conv_net_forward.7} parent=1 // pred_fallthru
      _
    %s224 = smul.u32 0, 16
    %v225 = vld [vmem:[%s0] sm:$0xff]
    %v226 = vld [vmem:[%s0 + $0x8] sm:$0xff]
    %s227 = scalar_lea.vmem %s0, %s224
    %v228 = vld [vmem:[%s227] sm:$0xff]
    %v229 = vld [vmem:[%s227 + $0x8] sm:$0xff]
    %v230 = vld [vmem:[%s3] sm:$0xff]
    %v231 = vld [vmem:[%s3 + $0x8] sm:$0xff]
    %v232 = vld [vmem:[%s3 + $0x10] sm:$0xff]
    %v233 = vld [vmem:[%s3 + $0x18] sm:$0xff]
    %v234 = vld [vmem:[%s3 + $0x20] sm:$0xff]
    %v235 = vld [vmem:[%s3 + $0x28] sm:$0xff]
    %v236 = vld [vmem:[%s3 + $0x30] sm:$0xff]
    %v237 = vld [vmem:[%s3 + $0x38] sm:$0xff]
    %v238 = vld [vmem:[%s3 + $0x40] sm:$0xff]
    %v239 = vld [vmem:[%s3 + $0x48] sm:$0xff]
    %v240 = vld [vmem:[%s3 + $0x50] sm:$0xff]
    %v241 = vld [vmem:[%s3 + $0x58] sm:$0xff]
    %v242 = vld [vmem:[%s3 + $0x60] sm:$0xff]
    %v243 = vld [vmem:[%s3 + $0x68] sm:$0xff]
    %v244 = vld [vmem:[%s3 + $0x70] sm:$0xff]
    %v245 = vld [vmem:[%s3 + $0x78] sm:$0xff]
    %v246 = vpack.c.bf16 %v226, %v225
    %v247 = vpack.c.bf16 %v232, %v230
    %v248 = vpack.c.bf16 %v233, %v231
    %v249 = vpack.c.bf16 %v236, %v234
    %v250 = vpack.c.bf16 %v237, %v235
    %v251 = vpack.c.bf16 %v240, %v238
    %v252 = vpack.c.bf16 %v241, %v239
    %v253 = vpack.c.bf16 %v244, %v242
    %v254 = vpack.c.bf16 %v245, %v243
    %v255 = vld [vmem:[%s4] sm:$0x3]
    %v257 = vperm.slane %v255, 0
    %v258 = vperm.slane %v255, 1
    %vm261 = vcmask 523264
    %v263 = vsel %vm261, %v246, 0
    %265 = vmatpush.bf16.msra.mxu0 0
    %266 = vmatpush.bf16.msra.mxu0 0
    %267 = vmatpush.bf16.msra.mxu0 0
    %268 = vmatpush.bf16.msra.mxu0 0
    %269 = vmatpush.bf16.msra.mxu0 %v253
    %270 = vmatpush.bf16.msra.mxu0 %v251
    %271 = vmatpush.bf16.msra.mxu0 %v249
    %272 = vmatpush.bf16.msra.mxu0 %v247
    %273 = vmatmul.bf16.gmra.mxu0 %v263
    %v274 = vpop.f32.mrf.mxu0
    %v275 = vadd.f32 %v257, %v274
    %v276 = vpop.f32.mrf.mxu0
    %v277 = vadd.f32 %v257, %v276
    %278 = vdwg.mxu0
    %279 = vmatpush.bf16.msra.mxu0 0
    %280 = vmatpush.bf16.msra.mxu0 0
    %281 = vmatpush.bf16.msra.mxu0 0
    %282 = vmatpush.bf16.msra.mxu0 0
    %283 = vmatpush.bf16.msra.mxu0 %v254
    %284 = vmatpush.bf16.msra.mxu0 %v252
    %285 = vmatpush.bf16.msra.mxu0 %v250
    %286 = vmatpush.bf16.msra.mxu0 %v248
    %287 = vmatmul.bf16.gmra.mxu0 %v263
    %v288 = vpop.f32.mrf.mxu0
    %v289 = vadd.f32 %v258, %v288
    %v290 = vpop.f32.mrf.mxu0
    %v291 = vadd.f32 %v258, %v290
    %292 = vdwg.mxu0
    %v293 = vld [vmem:[#allocation4] sm:$0xff]
    %v294 = vld [vmem:[#allocation4 + $0x8] sm:$0xff]
    %v295 = vld [vmem:[#allocation4 + $0x10] sm:$0xff]
    %v296 = vld [vmem:[#allocation4 + $0x18] sm:$0xff]
    %v297 = vld [vmem:[#allocation4 + $0x20] sm:$0xff]
    %v298 = vld [vmem:[#allocation4 + $0x28] sm:$0xff]
    %v299 = vld [vmem:[#allocation4 + $0x30] sm:$0xff]
    %v300 = vld [vmem:[#allocation4 + $0x38] sm:$0xff]
    %v301 = vpack.c.bf16 %v229, %v228
    %v302 = vpack.c.bf16 %v294, %v293
    %v303 = vpack.c.bf16 %v296, %v295
    %v304 = vpack.c.bf16 %v298, %v297
    %v305 = vpack.c.bf16 %v300, %v299
    %v306 = vld [vmem:[%s6] sm:$0x1]
    %v308 = vperm.slane %v306, 0
    %v311 = vsel %vm261, %v301, 0
    %313 = vmatpush.bf16.msra.mxu0 0
    %314 = vmatpush.bf16.msra.mxu0 0
    %315 = vmatpush.bf16.msra.mxu0 0
    %316 = vmatpush.bf16.msra.mxu0 0
    %317 = vmatpush.bf16.msra.mxu0 %v305
    %318 = vmatpush.bf16.msra.mxu0 %v304
    %319 = vmatpush.bf16.msra.mxu0 %v303
    %320 = vmatpush.bf16.msra.mxu0 %v302
    %321 = vmatmul.bf16.gmra.mxu0 %v311
    %v322 = vpop.f32.mrf.mxu0
    %v323 = vadd.f32 %v308, %v322
    %v324 = vpop.f32.mrf.mxu0
    %v325 = vadd.f32 %v308, %v324
    %326 = vdwg.mxu0
    %v327 = vld [vmem:[%s7] sm:$0x1]
    %v330 = vrot.slane %v323, 1
    %v331 = vrot.slane %v323, 2
    %v332 = vrot.slane %v323, 3
    %v333 = vrot.slane %v323, 4
    %v334 = vrot.slane %v323, 5
    %v335 = vrot.slane %v323, 6
    %v336 = vrot.slane %v323, 7
    %v337 = vrot.slane %v325, 1
    %v338 = vrot.slane %v325, 2
    %v339 = vrot.slane %v325, 3
    %v340 = vrot.slane %v325, 4
    %v341 = vrot.slane %v325, 5
    %v342 = vrot.slane %v325, 6
    %v343 = vrot.slane %v325, 7
    %v344 = vperm.slane %v323, 0
    %v345 = vperm.slane %v330, 0
    %v346 = vperm.slane %v331, 0
    %v347 = vperm.slane %v332, 0
    %v348 = vperm.slane %v333, 0
    %v349 = vperm.slane %v334, 0
    %v350 = vperm.slane %v335, 0
    %v351 = vperm.slane %v336, 0
    %v352 = vperm.slane %v325, 0
    %v353 = vperm.slane %v337, 0
    %v354 = vperm.slane %v338, 0
    %v355 = vperm.slane %v339, 0
    %v356 = vperm.slane %v340, 0
    %v357 = vperm.slane %v341, 0
    %v358 = vperm.slane %v342, 0
    %v359 = vperm.slane %v343, 0
    %v376 = vadd.f32 %v344, %v275
    %v377 = vadd.f32 %v344, %v277
    %v378 = vadd.f32 %v345, %v275
    %v379 = vadd.f32 %v345, %v277
    %v380 = vadd.f32 %v346, %v275
    %v381 = vadd.f32 %v346, %v277
    %v382 = vadd.f32 %v347, %v275
    %v383 = vadd.f32 %v347, %v277
    %v384 = vadd.f32 %v348, %v275
    %v385 = vadd.f32 %v348, %v277
    %v386 = vadd.f32 %v349, %v275
    %v387 = vadd.f32 %v349, %v277
    %v388 = vadd.f32 %v350, %v275
    %v389 = vadd.f32 %v350, %v277
    %v390 = vadd.f32 %v351, %v275
    %v391 = vadd.f32 %v351, %v277
    %v392 = vadd.f32 %v352, %v275
    %v393 = vadd.f32 %v352, %v277
    %v394 = vadd.f32 %v353, %v275
    %v395 = vadd.f32 %v353, %v277
    %v396 = vadd.f32 %v354, %v275
    %v397 = vadd.f32 %v354, %v277
    %v398 = vadd.f32 %v355, %v275
    %v399 = vadd.f32 %v355, %v277
    %v400 = vadd.f32 %v356, %v275
    %v401 = vadd.f32 %v356, %v277
    %v402 = vadd.f32 %v357, %v275
    %v403 = vadd.f32 %v357, %v277
    %v404 = vadd.f32 %v358, %v275
    %v405 = vadd.f32 %v358, %v277
    %v406 = vadd.f32 %v359, %v275
    %v407 = vadd.f32 %v359, %v277
    %v408 = vmul.f32 %v376, 0.2
    %v409 = vmul.f32 %v377, 0.2
    %v410 = vmul.f32 %v378, 0.2
    %v411 = vmul.f32 %v379, 0.2
    %v412 = vmul.f32 %v380, 0.2
    %v413 = vmul.f32 %v381, 0.2
    %v414 = vmul.f32 %v382, 0.2
    %v415 = vmul.f32 %v383, 0.2
    %v416 = vmul.f32 %v384, 0.2
    %v417 = vmul.f32 %v385, 0.2
    %v418 = vmul.f32 %v386, 0.2
    %v419 = vmul.f32 %v387, 0.2
    %v420 = vmul.f32 %v388, 0.2
    %v421 = vmul.f32 %v389, 0.2
    %v422 = vmul.f32 %v390, 0.2
    %v423 = vmul.f32 %v391, 0.2
    %v424 = vmul.f32 %v392, 0.2
    %v425 = vmul.f32 %v393, 0.2
    %v426 = vmul.f32 %v394, 0.2
    %v427 = vmul.f32 %v395, 0.2
    %v428 = vmul.f32 %v396, 0.2
    %v429 = vmul.f32 %v397, 0.2
    %v430 = vmul.f32 %v398, 0.2
    %v431 = vmul.f32 %v399, 0.2
    %v432 = vmul.f32 %v400, 0.2
    %v433 = vmul.f32 %v401, 0.2
    %v434 = vmul.f32 %v402, 0.2
    %v435 = vmul.f32 %v403, 0.2
    %v436 = vmul.f32 %v404, 0.2
    %v437 = vmul.f32 %v405, 0.2
    %v438 = vmul.f32 %v406, 0.2
    %v439 = vmul.f32 %v407, 0.2
    %v440 = vmax.f32 %v376, %v408
    %v441 = vmax.f32 %v377, %v409
    %v442 = vmax.f32 %v378, %v410
    %v443 = vmax.f32 %v379, %v411
    %v444 = vmax.f32 %v380, %v412
    %v445 = vmax.f32 %v381, %v413
    %v446 = vmax.f32 %v382, %v414
    %v447 = vmax.f32 %v383, %v415
    %v448 = vmax.f32 %v384, %v416
    %v449 = vmax.f32 %v385, %v417
    %v450 = vmax.f32 %v386, %v418
    %v451 = vmax.f32 %v387, %v419
    %v452 = vmax.f32 %v388, %v420
    %v453 = vmax.f32 %v389, %v421
    %v454 = vmax.f32 %v390, %v422
    %v455 = vmax.f32 %v391, %v423
    %v456 = vmax.f32 %v392, %v424
    %v457 = vmax.f32 %v393, %v425
    %v458 = vmax.f32 %v394, %v426
    %v459 = vmax.f32 %v395, %v427
    %v460 = vmax.f32 %v396, %v428
    %v461 = vmax.f32 %v397, %v429
    %v462 = vmax.f32 %v398, %v430
    %v463 = vmax.f32 %v399, %v431
    %v464 = vmax.f32 %v400, %v432
    %v465 = vmax.f32 %v401, %v433
    %v466 = vmax.f32 %v402, %v434
    %v467 = vmax.f32 %v403, %v435
    %v468 = vmax.f32 %v404, %v436
    %v469 = vmax.f32 %v405, %v437
    %v470 = vmax.f32 %v406, %v438
    %v471 = vmax.f32 %v407, %v439
    %v473 = vperm.slane %v327, 0
    %v475 = vmul.f32 %v440, %v473
    %v476 = vmul.f32 %v441, %v473
    %v477 = vmul.f32 %v442, %v473
    %v478 = vmul.f32 %v443, %v473
    %v479 = vmul.f32 %v444, %v473
    %v480 = vmul.f32 %v445, %v473
    %v481 = vmul.f32 %v446, %v473
    %v482 = vmul.f32 %v447, %v473
    %v483 = vmul.f32 %v448, %v473
    %v484 = vmul.f32 %v449, %v473
    %v485 = vmul.f32 %v450, %v473
    %v486 = vmul.f32 %v451, %v473
    %v487 = vmul.f32 %v452, %v473
    %v488 = vmul.f32 %v453, %v473
    %v489 = vmul.f32 %v454, %v473
    %v490 = vmul.f32 %v455, %v473
    %v491 = vmul.f32 %v456, %v473
    %v492 = vmul.f32 %v457, %v473
    %v493 = vmul.f32 %v458, %v473
    %v494 = vmul.f32 %v459, %v473
    %v495 = vmul.f32 %v460, %v473
    %v496 = vmul.f32 %v461, %v473
    %v497 = vmul.f32 %v462, %v473
    %v498 = vmul.f32 %v463, %v473
    %v499 = vmul.f32 %v464, %v473
    %v500 = vmul.f32 %v465, %v473
    %v501 = vmul.f32 %v466, %v473
    %v502 = vmul.f32 %v467, %v473
    %v503 = vmul.f32 %v468, %v473
    %v504 = vmul.f32 %v469, %v473
    %v505 = vmul.f32 %v470, %v473
    %v506 = vmul.f32 %v471, %v473
    %v507 = vsel %vm261, %v475, 0.0
    %508 = vadd.xlane.f32.xlu0 %v507
    %v509 = vpop.xlane.xlu0 %508
    %v510 = vsel %vm261, %v476, 0.0
    %511 = vadd.xlane.f32.xlu0 %v510
    %v512 = vpop.xlane.xlu0 %511
    %v513 = vsel %vm261, %v477, 0.0
    %514 = vadd.xlane.f32.xlu0 %v513
    %v515 = vpop.xlane.xlu0 %514
    %v516 = vsel %vm261, %v478, 0.0
    %517 = vadd.xlane.f32.xlu0 %v516
    %v518 = vpop.xlane.xlu0 %517
    %v519 = vsel %vm261, %v479, 0.0
    %520 = vadd.xlane.f32.xlu0 %v519
    %v521 = vpop.xlane.xlu0 %520
    %v522 = vsel %vm261, %v480, 0.0
    %523 = vadd.xlane.f32.xlu0 %v522
    %v524 = vpop.xlane.xlu0 %523
    %v525 = vsel %vm261, %v481, 0.0
    %526 = vadd.xlane.f32.xlu0 %v525
    %v527 = vpop.xlane.xlu0 %526
    %v528 = vsel %vm261, %v482, 0.0
    %529 = vadd.xlane.f32.xlu0 %v528
    %v530 = vpop.xlane.xlu0 %529
    %v531 = vsel %vm261, %v483, 0.0
    %532 = vadd.xlane.f32.xlu0 %v531
    %v533 = vpop.xlane.xlu0 %532
    %v534 = vsel %vm261, %v484, 0.0
    %535 = vadd.xlane.f32.xlu0 %v534
    %v536 = vpop.xlane.xlu0 %535
    %v537 = vsel %vm261, %v485, 0.0
    %538 = vadd.xlane.f32.xlu0 %v537
    %v539 = vpop.xlane.xlu0 %538
    %v540 = vsel %vm261, %v486, 0.0
    %541 = vadd.xlane.f32.xlu0 %v540
    %v542 = vpop.xlane.xlu0 %541
    %v543 = vsel %vm261, %v487, 0.0
    %544 = vadd.xlane.f32.xlu0 %v543
    %v545 = vpop.xlane.xlu0 %544
    %v546 = vsel %vm261, %v488, 0.0
    %547 = vadd.xlane.f32.xlu0 %v546
    %v548 = vpop.xlane.xlu0 %547
    %v549 = vsel %vm261, %v489, 0.0
    %550 = vadd.xlane.f32.xlu0 %v549
    %v551 = vpop.xlane.xlu0 %550
    %v552 = vsel %vm261, %v490, 0.0
    %553 = vadd.xlane.f32.xlu0 %v552
    %v554 = vpop.xlane.xlu0 %553
    %v555 = vsel %vm261, %v491, 0.0
    %556 = vadd.xlane.f32.xlu0 %v555
    %v557 = vpop.xlane.xlu0 %556
    %v558 = vsel %vm261, %v492, 0.0
    %559 = vadd.xlane.f32.xlu0 %v558
    %v560 = vpop.xlane.xlu0 %559
    %v561 = vsel %vm261, %v493, 0.0
    %562 = vadd.xlane.f32.xlu0 %v561
    %v563 = vpop.xlane.xlu0 %562
    %v564 = vsel %vm261, %v494, 0.0
    %565 = vadd.xlane.f32.xlu0 %v564
    %v566 = vpop.xlane.xlu0 %565
    %v567 = vsel %vm261, %v495, 0.0
    %568 = vadd.xlane.f32.xlu0 %v567
    %v569 = vpop.xlane.xlu0 %568
    %v570 = vsel %vm261, %v496, 0.0
    %571 = vadd.xlane.f32.xlu0 %v570
    %v572 = vpop.xlane.xlu0 %571
    %v573 = vsel %vm261, %v497, 0.0
    %574 = vadd.xlane.f32.xlu0 %v573
    %v575 = vpop.xlane.xlu0 %574
    %v576 = vsel %vm261, %v498, 0.0
    %577 = vadd.xlane.f32.xlu0 %v576
    %v578 = vpop.xlane.xlu0 %577
    %v579 = vsel %vm261, %v499, 0.0
    %580 = vadd.xlane.f32.xlu0 %v579
    %v581 = vpop.xlane.xlu0 %580
    %v582 = vsel %vm261, %v500, 0.0
    %583 = vadd.xlane.f32.xlu0 %v582
    %v584 = vpop.xlane.xlu0 %583
    %v585 = vsel %vm261, %v501, 0.0
    %586 = vadd.xlane.f32.xlu0 %v585
    %v587 = vpop.xlane.xlu0 %586
    %v588 = vsel %vm261, %v502, 0.0
    %589 = vadd.xlane.f32.xlu0 %v588
    %v590 = vpop.xlane.xlu0 %589
    %v591 = vsel %vm261, %v503, 0.0
    %592 = vadd.xlane.f32.xlu0 %v591
    %v593 = vpop.xlane.xlu0 %592
    %v594 = vsel %vm261, %v504, 0.0
    %595 = vadd.xlane.f32.xlu0 %v594
    %v596 = vpop.xlane.xlu0 %595
    %v597 = vsel %vm261, %v505, 0.0
    %598 = vadd.xlane.f32.xlu0 %v597
    %v599 = vpop.xlane.xlu0 %598
    %v600 = vsel %vm261, %v506, 0.0
    %601 = vadd.xlane.f32.xlu0 %v600
    %v602 = vpop.xlane.xlu0 %601
    %v635 = vlaneseq
    %v636 = vand.u32 %v635, 127
    %v637 = vperm.slane %v509, %v636
    %v638 = vadd.s32 %v636, 4294967288
    %v639 = vperm.slane %v512, %v638
    %vm640 = vcmask 130112
    %v641 = vsel %vm640, %v639, %v637
    %v642 = vperm.slane %v515, %v636
    %v643 = vperm.slane %v518, %v638
    %v644 = vsel %vm640, %v643, %v642
    %v645 = vperm.slane %v521, %v636
    %v646 = vperm.slane %v524, %v638
    %v647 = vsel %vm640, %v646, %v645
    %v648 = vperm.slane %v527, %v636
    %v649 = vperm.slane %v530, %v638
    %v650 = vsel %vm640, %v649, %v648
    %v651 = vperm.slane %v533, %v636
    %v652 = vperm.slane %v536, %v638
    %v653 = vsel %vm640, %v652, %v651
    %v654 = vperm.slane %v539, %v636
    %v655 = vperm.slane %v542, %v638
    %v656 = vsel %vm640, %v655, %v654
    %v657 = vperm.slane %v545, %v636
    %v658 = vperm.slane %v548, %v638
    %v659 = vsel %vm640, %v658, %v657
    %v660 = vperm.slane %v551, %v636
    %v661 = vperm.slane %v554, %v638
    %v662 = vsel %vm640, %v661, %v660
    %v663 = vperm.slane %v557, %v636
    %v664 = vperm.slane %v560, %v638
    %v665 = vsel %vm640, %v664, %v663
    %v666 = vperm.slane %v563, %v636
    %v667 = vperm.slane %v566, %v638
    %v668 = vsel %vm640, %v667, %v666
    %v669 = vperm.slane %v569, %v636
    %v670 = vperm.slane %v572, %v638
    %v671 = vsel %vm640, %v670, %v669
    %v672 = vperm.slane %v575, %v636
    %v673 = vperm.slane %v578, %v638
    %v674 = vsel %vm640, %v673, %v672
    %v675 = vperm.slane %v581, %v636
    %v676 = vperm.slane %v584, %v638
    %v677 = vsel %vm640, %v676, %v675
    %v678 = vperm.slane %v587, %v636
    %v679 = vperm.slane %v590, %v638
    %v680 = vsel %vm640, %v679, %v678
    %v681 = vperm.slane %v593, %v636
    %v682 = vperm.slane %v596, %v638
    %v683 = vsel %vm640, %v682, %v681
    %v684 = vperm.slane %v599, %v636
    %v685 = vperm.slane %v602, %v638
    %v686 = vsel %vm640, %v685, %v684
    %vm687 = vcmask 1041409
    %v688 = vsel %vm687, %v644, %v641
    %vm689 = vcmask 1042434
    %v690 = vsel %vm689, %v647, %v688
    %vm691 = vcmask 1043459
    %v692 = vsel %vm691, %v650, %v690
    %vm693 = vcmask 1044484
    %v694 = vsel %vm693, %v653, %v692
    %vm695 = vcmask 1045509
    %v696 = vsel %vm695, %v656, %v694
    %vm697 = vcmask 1046534
    %v698 = vsel %vm697, %v659, %v696
    %vm699 = vcmask 1047559
    %v700 = vsel %vm699, %v662, %v698
    %v701 = vsel %vm687, %v668, %v665
    %v702 = vsel %vm689, %v671, %v701
    %v703 = vsel %vm691, %v674, %v702
    %v704 = vsel %vm693, %v677, %v703
    %v705 = vsel %vm695, %v680, %v704
    %v706 = vsel %vm697, %v683, %v705
    %v707 = vsel %vm699, %v686, %v706
    %vm710 = vcmask 130048
    %711 = vst.msk [vmem:[#allocation2] sm:$0xff] %vm710, %v700
    %712 = vst.msk [vmem:[#allocation2 + $0x8] sm:$0xff] %vm710, %v707
    %v713 = vld [vmem:[#allocation2] sm:$0xff]
    %v714 = vld [vmem:[#allocation2 + $0x8] sm:$0xff]
    %v715 = vld [vmem:[%s1] sm:$0xf]
    %v716 = vld [vmem:[%s1 + $0x4] sm:$0xf]
    %v717 = vunpack.c.l.bf16 %v715
    %v718 = vunpack.c.l.bf16 %v716
    %v719 = vadd.f32 %v713, %v717
    %v720 = vadd.f32 %v714, %v718
    %v721 = vsel %vm710, %v719, -inf
    %722 = vmax.xlane.f32.xlu0 %v721
    %v723 = vpop.xlane.xlu0 %722
    %v724 = vsel %vm710, %v720, -inf
    %725 = vmax.xlane.f32.xlu0 %v724
    %v726 = vpop.xlane.xlu0 %725
    %v727 = vsub.f32 %v719, %v723
    %v728 = vsub.f32 %v720, %v726
    %v729 = vmul.f32 %v727, 1.442695
    %v730 = vpow.pop %v729
    %v731 = vmul.f32 %v728, 1.442695
    %v732 = vpow.pop %v731
    %v733 = vsel %vm710, %v730, 0.0
    %734 = vadd.xlane.f32.xlu0 %v733
    %v735 = vpop.xlane.xlu0 %734
    %v736 = vsel %vm710, %v732, 0.0
    %737 = vadd.xlane.f32.xlu0 %v736
    %v738 = vpop.xlane.xlu0 %737
    %v739 = vrcp.pop %v735
    %v740 = vrcp.pop %v738
    %v741 = vmul.f32 %v730, %v739
    %v742 = vmul.f32 %v732, %v740
    %v743 = vpack.c.bf16 %v742, %v741
    %v744 = vpack.c.bf16 %v277, %v275
    %v745 = vld [vmem:[#allocation6] sm:$0x1]
    %v747 = vperm.slane %v745, 0
    %v750 = vsel %vm710, %v743, 0
    %752 = vmatpush.bf16.msra.mxu0 0
    %753 = vmatpush.bf16.msra.mxu0 0
    %754 = vmatpush.bf16.msra.mxu0 0
    %755 = vmatpush.bf16.msra.mxu0 0
    %756 = vmatpush.bf16.msra.mxu0 0
    %757 = vmatpush.bf16.msra.mxu0 0
    %758 = vmatpush.bf16.msra.mxu0 0
    %759 = vmatpush.bf16.msra.mxu0 %v744
    %760 = vmatmul.bf16.gmra.mxu0 %v750
    %v761 = vpop.f32.mrf.mxu0
    %v762 = vadd.f32 %v747, %v761
    %v763 = vpop.f32.mrf.mxu0
    %v764 = vadd.f32 %v747, %v763
    %765 = vdwg.mxu0
    %v766 = vadd.f32 %v762, %v228
    %v767 = vadd.f32 %v764, %v229
    %v768 = vld [vmem:[#allocation12] sm:$0x1]
    %v770 = vperm.slane %v768, 0
    %v772 = vmul.f32 %v766, %v770
    %v773 = vmul.f32 %v767, %v770
    %v774 = vld [vmem:[#allocation14] sm:$0x1]
    %v776 = vperm.slane %v774, 0
    %v778 = vadd.f32 %v772, %v776
    %v779 = vadd.f32 %v773, %v776
    %v780 = vld [vmem:[%s2] sm:$0xf]
    %v781 = vld [vmem:[%s2 + $0x4] sm:$0xf]
    %v782 = vunpack.c.l.bf16 %v780
    %v783 = vunpack.c.l.bf16 %v781
    %v784 = vld [vmem:[#allocation8] sm:$0xff]
    %v785 = vld [vmem:[#allocation8 + $0x8] sm:$0xff]
    %v786 = vld [vmem:[#allocation8 + $0x10] sm:$0xff]
    %v787 = vld [vmem:[#allocation8 + $0x18] sm:$0xff]
    %v788 = vld [vmem:[#allocation8 + $0x20] sm:$0xff]
    %v789 = vld [vmem:[#allocation8 + $0x28] sm:$0xff]
    %v790 = vld [vmem:[#allocation8 + $0x30] sm:$0xff]
    %v791 = vld [vmem:[#allocation8 + $0x38] sm:$0xff]
    %792 = vst.msk [vmem:[#allocation3] sm:$0xff] %vm261, 0.0
    %793 = vst.msk [vmem:[#allocation3 + $0x8] sm:$0xff] %vm261, 0.0
    %v794 = vpack.c.bf16 %v325, %v323
    %796 = vrot.lane.b32.xlu0 %v794, 64
    %v797 = vpop.permute.xlu0 %796
    %799 = vrot.lane.b32.xlu0 %v744, 64
    %v800 = vpop.permute.xlu0 %799
    %v802 = vsel %vm710, %v797, 0
    %v805 = vsel %vm710, %v800, 0
    %807 = vmatpush.bf16.xpose.msra.mxu0 0
    %808 = vmatpush.bf16.xpose.msra.mxu0 0
    %809 = vmatpush.bf16.xpose.msra.mxu0 0
    %810 = vmatpush.bf16.xpose.msra.mxu0 0
    %811 = vmatpush.bf16.xpose.msra.mxu0 0
    %812 = vmatpush.bf16.xpose.msra.mxu0 0
    %813 = vmatpush.bf16.xpose.msra.mxu0 0
    %814 = vmatpush.bf16.xpose.msra.mxu0 %v805
    %815 = vmatmul.bf16.gmra.mxu0 %v802
    %v816 = vpop.f32.mrf.mxu0
    %v817 = vadd.f32 0.0, %v816
    %v818 = vpop.f32.mrf.mxu0
    %v819 = vadd.f32 0.0, %v818
    %820 = vdwg.mxu0
    %v821 = vmul.f32 %v817, 0.25
    %v822 = vmul.f32 %v819, 0.25
    %v823 = vadd.f32 %v821, %v782
    %v824 = vadd.f32 %v822, %v783
    %v825 = vsel %vm710, %v823, -inf
    %826 = vmax.xlane.f32.xlu0 %v825
    %v827 = vpop.xlane.xlu0 %826
    %v828 = vsel %vm710, %v824, -inf
    %829 = vmax.xlane.f32.xlu0 %v828
    %v830 = vpop.xlane.xlu0 %829
    %v831 = vsub.f32 %v823, %v827
    %v832 = vsub.f32 %v824, %v830
    %v833 = vmul.f32 %v831, 1.442695
    %v834 = vpow.pop %v833
    %v835 = vmul.f32 %v832, 1.442695
    %v836 = vpow.pop %v835
    %v837 = vsel %vm710, %v834, 0.0
    %838 = vadd.xlane.f32.xlu0 %v837
    %v839 = vpop.xlane.xlu0 %838
    %v840 = vsel %vm710, %v836, 0.0
    %841 = vadd.xlane.f32.xlu0 %v840
    %v842 = vpop.xlane.xlu0 %841
    %v843 = vrcp.pop %v839
    %v844 = vrcp.pop %v842
    %v845 = vmul.f32 %v834, %v843
    %v846 = vmul.f32 %v836, %v844
    %v847 = vpack.c.bf16 %v846, %v845
    %v848 = vpack.c.bf16 %v291, %v289
    %v850 = vsel %vm710, %v847, 0
    %852 = vmatpush.bf16.msra.mxu0 0
    %853 = vmatpush.bf16.msra.mxu0 0
    %854 = vmatpush.bf16.msra.mxu0 0
    %855 = vmatpush.bf16.msra.mxu0 0
    %856 = vmatpush.bf16.msra.mxu0 0
    %857 = vmatpush.bf16.msra.mxu0 0
    %858 = vmatpush.bf16.msra.mxu0 0
    %859 = vmatpush.bf16.msra.mxu0 %v848
    %860 = vmatmul.bf16.gmra.mxu0 %v850
    %v861 = vpop.f32.mrf.mxu0
    %v862 = vadd.f32 0.0, %v861
    %v863 = vpop.f32.mrf.mxu0
    %v864 = vadd.f32 0.0, %v863
    %865 = vdwg.mxu0
    %v866 = vld [vmem:[#allocation3] sm:$0xff]
    %v867 = vld [vmem:[#allocation3 + $0x8] sm:$0xff]
    %v868 = vpack.c.bf16 %v864, %v862
    %v869 = vpack.c.bf16 %v785, %v784
    %v871 = vsel %vm710, %v868, 0
    %873 = vmatpush.bf16.msra.mxu0 0
    %874 = vmatpush.bf16.msra.mxu0 0
    %875 = vmatpush.bf16.msra.mxu0 0
    %876 = vmatpush.bf16.msra.mxu0 0
    %877 = vmatpush.bf16.msra.mxu0 0
    %878 = vmatpush.bf16.msra.mxu0 0
    %879 = vmatpush.bf16.msra.mxu0 0
    %880 = vmatpush.bf16.msra.mxu0 %v869
    %881 = vmatmul.bf16.gmra.mxu0 %v871
    %v882 = vpop.f32.mrf.mxu0
    %v883 = vadd.f32 0.0, %v882
    %v884 = vpop.f32.mrf.mxu0
    %v885 = vadd.f32 0.0, %v884
    %886 = vdwg.mxu0
    %v887 = vadd.f32 %v866, %v883
    %v888 = vadd.f32 %v867, %v885
    %889 = vst.msk [vmem:[#allocation3] sm:$0xff] %vm261, %v887
    %890 = vst.msk [vmem:[#allocation3 + $0x8] sm:$0xff] %vm261, %v888
    %891 = vrot.lane.b32.xlu0 %v794, 48
    %v892 = vpop.permute.xlu0 %891
    %893 = vrot.lane.b32.xlu0 %v744, 48
    %v894 = vpop.permute.xlu0 %893
    %v896 = vsel %vm710, %v892, 0
    %v899 = vsel %vm710, %v894, 0
    %901 = vmatpush.bf16.xpose.msra.mxu0 0
    %902 = vmatpush.bf16.xpose.msra.mxu0 0
    %903 = vmatpush.bf16.xpose.msra.mxu0 0
    %904 = vmatpush.bf16.xpose.msra.mxu0 0
    %905 = vmatpush.bf16.xpose.msra.mxu0 0
    %906 = vmatpush.bf16.xpose.msra.mxu0 0
    %907 = vmatpush.bf16.xpose.msra.mxu0 0
    %908 = vmatpush.bf16.xpose.msra.mxu0 %v899
    %909 = vmatmul.bf16.gmra.mxu0 %v896
    %v910 = vpop.f32.mrf.mxu0
    %v911 = vadd.f32 0.0, %v910
    %v912 = vpop.f32.mrf.mxu0
    %v913 = vadd.f32 0.0, %v912
    %914 = vdwg.mxu0
    %v915 = vmul.f32 %v911, 0.25
    %v916 = vmul.f32 %v913, 0.25
    %v917 = vadd.f32 %v915, %v782
    %v918 = vadd.f32 %v916, %v783
    %v919 = vsel %vm710, %v917, -inf
    %920 = vmax.xlane.f32.xlu0 %v919
    %v921 = vpop.xlane.xlu0 %920
    %v922 = vsel %vm710, %v918, -inf
    %923 = vmax.xlane.f32.xlu0 %v922
    %v924 = vpop.xlane.xlu0 %923
    %v925 = vsub.f32 %v917, %v921
    %v926 = vsub.f32 %v918, %v924
    %v927 = vmul.f32 %v925, 1.442695
    %v928 = vpow.pop %v927
    %v929 = vmul.f32 %v926, 1.442695
    %v930 = vpow.pop %v929
    %v931 = vsel %vm710, %v928, 0.0
    %932 = vadd.xlane.f32.xlu0 %v931
    %v933 = vpop.xlane.xlu0 %932
    %v934 = vsel %vm710, %v930, 0.0
    %935 = vadd.xlane.f32.xlu0 %v934
    %v936 = vpop.xlane.xlu0 %935
    %v937 = vrcp.pop %v933
    %v938 = vrcp.pop %v936
    %v939 = vmul.f32 %v928, %v937
    %v940 = vmul.f32 %v930, %v938
    %v941 = vpack.c.bf16 %v940, %v939
    %943 = vrot.lane.b32.xlu0 %v848, 112
    %v944 = vpop.permute.xlu0 %943
    %v947 = vsel %vm710, %v941, 0
    %949 = vmatpush.bf16.msra.mxu0 0
    %950 = vmatpush.bf16.msra.mxu0 0
    %951 = vmatpush.bf16.msra.mxu0 0
    %952 = vmatpush.bf16.msra.mxu0 0
    %953 = vmatpush.bf16.msra.mxu0 0
    %954 = vmatpush.bf16.msra.mxu0 0
    %955 = vmatpush.bf16.msra.mxu0 0
    %956 = vmatpush.bf16.msra.mxu0 %v944
    %957 = vmatmul.bf16.gmra.mxu0 %v947
    %v958 = vpop.f32.mrf.mxu0
    %v959 = vadd.f32 0.0, %v958
    %v960 = vpop.f32.mrf.mxu0
    %v961 = vadd.f32 0.0, %v960
    %962 = vdwg.mxu0
    %v963 = vld [vmem:[#allocation3] sm:$0xff]
    %v964 = vld [vmem:[#allocation3 + $0x8] sm:$0xff]
    %v965 = vpack.c.bf16 %v961, %v959
    %v966 = vpack.c.bf16 %v787, %v786
    %v968 = vsel %vm710, %v965, 0
    %970 = vmatpush.bf16.msra.mxu0 0
    %971 = vmatpush.bf16.msra.mxu0 0
    %972 = vmatpush.bf16.msra.mxu0 0
    %973 = vmatpush.bf16.msra.mxu0 0
    %974 = vmatpush.bf16.msra.mxu0 0
    %975 = vmatpush.bf16.msra.mxu0 0
    %976 = vmatpush.bf16.msra.mxu0 0
    %977 = vmatpush.bf16.msra.mxu0 %v966
    %978 = vmatmul.bf16.gmra.mxu0 %v968
    %v979 = vpop.f32.mrf.mxu0
    %v980 = vadd.f32 0.0, %v979
    %v981 = vpop.f32.mrf.mxu0
    %v982 = vadd.f32 0.0, %v981
    %983 = vdwg.mxu0
    %v984 = vadd.f32 %v963, %v980
    %v985 = vadd.f32 %v964, %v982
    %986 = vst.msk [vmem:[#allocation3] sm:$0xff] %vm261, %v984
    %987 = vst.msk [vmem:[#allocation3 + $0x8] sm:$0xff] %vm261, %v985
    %988 = vrot.lane.b32.xlu0 %v794, 32
    %v989 = vpop.permute.xlu0 %988
    %990 = vrot.lane.b32.xlu0 %v744, 32
    %v991 = vpop.permute.xlu0 %990
    %v993 = vsel %vm710, %v989, 0
    %v996 = vsel %vm710, %v991, 0
    %998 = vmatpush.bf16.xpose.msra.mxu0 0
    %999 = vmatpush.bf16.xpose.msra.mxu0 0
    %1000 = vmatpush.bf16.xpose.msra.mxu0 0
    %1001 = vmatpush.bf16.xpose.msra.mxu0 0
    %1002 = vmatpush.bf16.xpose.msra.mxu0 0
    %1003 = vmatpush.bf16.xpose.msra.mxu0 0
    %1004 = vmatpush.bf16.xpose.msra.mxu0 0
    %1005 = vmatpush.bf16.xpose.msra.mxu0 %v996
    %1006 = vmatmul.bf16.gmra.mxu0 %v993
    %v1007 = vpop.f32.mrf.mxu0
    %v1008 = vadd.f32 0.0, %v1007
    %v1009 = vpop.f32.mrf.mxu0
    %v1010 = vadd.f32 0.0, %v1009
    %1011 = vdwg.mxu0
    %v1012 = vmul.f32 %v1008, 0.25
    %v1013 = vmul.f32 %v1010, 0.25
    %v1014 = vadd.f32 %v1012, %v782
    %v1015 = vadd.f32 %v1013, %v783
    %v1016 = vsel %vm710, %v1014, -inf
    %1017 = vmax.xlane.f32.xlu0 %v1016
    %v1018 = vpop.xlane.xlu0 %1017
    %v1019 = vsel %vm710, %v1015, -inf
    %1020 = vmax.xlane.f32.xlu0 %v1019
    %v1021 = vpop.xlane.xlu0 %1020
    %v1022 = vsub.f32 %v1014, %v1018
    %v1023 = vsub.f32 %v1015, %v1021
    %v1024 = vmul.f32 %v1022, 1.442695
    %v1025 = vpow.pop %v1024
    %v1026 = vmul.f32 %v1023, 1.442695
    %v1027 = vpow.pop %v1026
    %v1028 = vsel %vm710, %v1025, 0.0
    %1029 = vadd.xlane.f32.xlu0 %v1028
    %v1030 = vpop.xlane.xlu0 %1029
    %v1031 = vsel %vm710, %v1027, 0.0
    %1032 = vadd.xlane.f32.xlu0 %v1031
    %v1033 = vpop.xlane.xlu0 %1032
    %v1034 = vrcp.pop %v1030
    %v1035 = vrcp.pop %v1033
    %v1036 = vmul.f32 %v1025, %v1034
    %v1037 = vmul.f32 %v1027, %v1035
    %v1038 = vpack.c.bf16 %v1037, %v1036
    %1039 = vrot.lane.b32.xlu0 %v848, 96
    %v1040 = vpop.permute.xlu0 %1039
    %v1043 = vsel %vm710, %v1038, 0
    %1045 = vmatpush.bf16.msra.mxu0 0
    %1046 = vmatpush.bf16.msra.mxu0 0
    %1047 = vmatpush.bf16.msra.mxu0 0
    %1048 = vmatpush.bf16.msra.mxu0 0
    %1049 = vmatpush.bf16.msra.mxu0 0
    %1050 = vmatpush.bf16.msra.mxu0 0
    %1051 = vmatpush.bf16.msra.mxu0 0
    %1052 = vmatpush.bf16.msra.mxu0 %v1040
    %1053 = vmatmul.bf16.gmra.mxu0 %v1043
    %v1054 = vpop.f32.mrf.mxu0
    %v1055 = vadd.f32 0.0, %v1054
    %v1056 = vpop.f32.mrf.mxu0
    %v1057 = vadd.f32 0.0, %v1056
    %1058 = vdwg.mxu0
    %v1059 = vld [vmem:[#allocation3] sm:$0xff]
    %v1060 = vld [vmem:[#allocation3 + $0x8] sm:$0xff]
    %v1061 = vpack.c.bf16 %v1057, %v1055
    %v1062 = vpack.c.bf16 %v789, %v788
    %v1064 = vsel %vm710, %v1061, 0
    %1066 = vmatpush.bf16.msra.mxu0 0
    %1067 = vmatpush.bf16.msra.mxu0 0
    %1068 = vmatpush.bf16.msra.mxu0 0
    %1069 = vmatpush.bf16.msra.mxu0 0
    %1070 = vmatpush.bf16.msra.mxu0 0
    %1071 = vmatpush.bf16.msra.mxu0 0
    %1072 = vmatpush.bf16.msra.mxu0 0
    %1073 = vmatpush.bf16.msra.mxu0 %v1062
    %1074 = vmatmul.bf16.gmra.mxu0 %v1064
    %v1075 = vpop.f32.mrf.mxu0
    %v1076 = vadd.f32 0.0, %v1075
    %v1077 = vpop.f32.mrf.mxu0
    %v1078 = vadd.f32 0.0, %v1077
    %1079 = vdwg.mxu0
    %v1080 = vadd.f32 %v1059, %v1076
    %v1081 = vadd.f32 %v1060, %v1078
    %1082 = vst.msk [vmem:[#allocation3] sm:$0xff] %vm261, %v1080
    %1083 = vst.msk [vmem:[#allocation3 + $0x8] sm:$0xff] %vm261, %v1081
    %1084 = vrot.lane.b32.xlu0 %v794, 16
    %v1085 = vpop.permute.xlu0 %1084
    %1086 = vrot.lane.b32.xlu0 %v744, 16
    %v1087 = vpop.permute.xlu0 %1086
    %v1089 = vsel %vm710, %v1085, 0
    %v1092 = vsel %vm710, %v1087, 0
    %1094 = vmatpush.bf16.xpose.msra.mxu0 0
    %1095 = vmatpush.bf16.xpose.msra.mxu0 0
    %1096 = vmatpush.bf16.xpose.msra.mxu0 0
    %1097 = vmatpush.bf16.xpose.msra.mxu0 0
    %1098 = vmatpush.bf16.xpose.msra.mxu0 0
    %1099 = vmatpush.bf16.xpose.msra.mxu0 0
    %1100 = vmatpush.bf16.xpose.msra.mxu0 0
    %1101 = vmatpush.bf16.xpose.msra.mxu0 %v1092
    %1102 = vmatmul.bf16.gmra.mxu0 %v1089
    %v1103 = vpop.f32.mrf.mxu0
    %v1104 = vadd.f32 0.0, %v1103
    %v1105 = vpop.f32.mrf.mxu0
    %v1106 = vadd.f32 0.0, %v1105
    %1107 = vdwg.mxu0
    %v1108 = vmul.f32 %v1104, 0.25
    %v1109 = vmul.f32 %v1106, 0.25
    %v1110 = vadd.f32 %v1108, %v782
    %v1111 = vadd.f32 %v1109, %v783
    %v1112 = vsel %vm710, %v1110, -inf
    %1113 = vmax.xlane.f32.xlu0 %v1112
    %v1114 = vpop.xlane.xlu0 %1113
    %v1115 = vsel %vm710, %v1111, -inf
    %1116 = vmax.xlane.f32.xlu0 %v1115
    %v1117 = vpop.xlane.xlu0 %1116
    %v1118 = vsub.f32 %v1110, %v1114
    %v1119 = vsub.f32 %v1111, %v1117
    %v1120 = vmul.f32 %v1118, 1.442695
    %v1121 = vpow.pop %v1120
    %v1122 = vmul.f32 %v1119, 1.442695
    %v1123 = vpow.pop %v1122
    %v1124 = vsel %vm710, %v1121, 0.0
    %1125 = vadd.xlane.f32.xlu0 %v1124
    %v1126 = vpop.xlane.xlu0 %1125
    %v1127 = vsel %vm710, %v1123, 0.0
    %1128 = vadd.xlane.f32.xlu0 %v1127
    %v1129 = vpop.xlane.xlu0 %1128
    %v1130 = vrcp.pop %v1126
    %v1131 = vrcp.pop %v1129
    %v1132 = vmul.f32 %v1121, %v1130
    %v1133 = vmul.f32 %v1123, %v1131
    %v1134 = vpack.c.bf16 %v1133, %v1132
    %1135 = vrot.lane.b32.xlu0 %v848, 80
    %v1136 = vpop.permute.xlu0 %1135
    %v1139 = vsel %vm710, %v1134, 0
    %1141 = vmatpush.bf16.msra.mxu0 0
    %1142 = vmatpush.bf16.msra.mxu0 0
    %1143 = vmatpush.bf16.msra.mxu0 0
    %1144 = vmatpush.bf16.msra.mxu0 0
    %1145 = vmatpush.bf16.msra.mxu0 0
    %1146 = vmatpush.bf16.msra.mxu0 0
    %1147 = vmatpush.bf16.msra.mxu0 0
    %1148 = vmatpush.bf16.msra.mxu0 %v1136
    %1149 = vmatmul.bf16.gmra.mxu0 %v1139
    %v1150 = vpop.f32.mrf.mxu0
    %v1151 = vadd.f32 0.0, %v1150
    %v1152 = vpop.f32.mrf.mxu0
    %v1153 = vadd.f32 0.0, %v1152
    %1154 = vdwg.mxu0
    %v1155 = vld [vmem:[#allocation3] sm:$0xff]
    %v1156 = vld [vmem:[#allocation3 + $0x8] sm:$0xff]
    %v1157 = vpack.c.bf16 %v1153, %v1151
    %v1158 = vpack.c.bf16 %v791, %v790
    %v1160 = vsel %vm710, %v1157, 0
    %1162 = vmatpush.bf16.msra.mxu0 0
    %1163 = vmatpush.bf16.msra.mxu0 0
    %1164 = vmatpush.bf16.msra.mxu0 0
    %1165 = vmatpush.bf16.msra.mxu0 0
    %1166 = vmatpush.bf16.msra.mxu0 0
    %1167 = vmatpush.bf16.msra.mxu0 0
    %1168 = vmatpush.bf16.msra.mxu0 0
    %1169 = vmatpush.bf16.msra.mxu0 %v1158
    %1170 = vmatmul.bf16.gmra.mxu0 %v1160
    %v1171 = vpop.f32.mrf.mxu0
    %v1172 = vadd.f32 0.0, %v1171
    %v1173 = vpop.f32.mrf.mxu0
    %v1174 = vadd.f32 0.0, %v1173
    %1175 = vdwg.mxu0
    %v1176 = vadd.f32 %v1155, %v1172
    %v1177 = vadd.f32 %v1156, %v1174
    %1178 = vst.msk [vmem:[#allocation3] sm:$0xff] %vm261, %v1176
    %1179 = vst.msk [vmem:[#allocation3 + $0x8] sm:$0xff] %vm261, %v1177
    %v1180 = vld [vmem:[#allocation3] sm:$0xff]
    %v1181 = vld [vmem:[#allocation3 + $0x8] sm:$0xff]
    %v1182 = vld [vmem:[%s10] sm:$0x1]
    %v1184 = vperm.slane %v1182, 0
    %v1186 = vadd.f32 %v1180, %v1184
    %v1187 = vadd.f32 %v1181, %v1184
    %v1188 = vadd.f32 %v1186, %v228
    %v1189 = vadd.f32 %v1187, %v229
    %v1190 = vld [vmem:[#allocation15] sm:$0x1]
    %v1192 = vperm.slane %v1190, 0
    %v1194 = vmul.f32 %v1188, %v1192
    %v1195 = vmul.f32 %v1189, %v1192
    %v1196 = vld [vmem:[#allocation17] sm:$0x1]
    %v1198 = vperm.slane %v1196, 0
    %v1200 = vadd.f32 %v1194, %v1198
    %v1201 = vadd.f32 %v1195, %v1198
    %v1202 = vadd.f32 %v778, %v1200
    %v1203 = vadd.f32 %v779, %v1201
    %v1204 = vld [vmem:[#allocation9] sm:$0xff]
    %v1205 = vld [vmem:[#allocation9 + $0x8] sm:$0xff]
    %v1206 = vld [vmem:[#allocation9 + $0x10] sm:$0xff]
    %v1207 = vld [vmem:[#allocation9 + $0x18] sm:$0xff]
    %v1208 = vld [vmem:[#allocation9 + $0x20] sm:$0xff]
    %v1209 = vld [vmem:[#allocation9 + $0x28] sm:$0xff]
    %v1210 = vld [vmem:[#allocation9 + $0x30] sm:$0xff]
    %v1211 = vld [vmem:[#allocation9 + $0x38] sm:$0xff]
    %v1212 = vpack.c.bf16 %v1203, %v1202
    %v1213 = vpack.c.bf16 %v1205, %v1204
    %v1214 = vpack.c.bf16 %v1207, %v1206
    %v1215 = vpack.c.bf16 %v1209, %v1208
    %v1216 = vpack.c.bf16 %v1211, %v1210
    %v1217 = vld [vmem:[%s12] sm:$0x1]
    %v1219 = vperm.slane %v1217, 0
    %v1222 = vsel %vm261, %v1212, 0
    %1224 = vmatpush.bf16.msra.mxu0 0
    %1225 = vmatpush.bf16.msra.mxu0 0
    %1226 = vmatpush.bf16.msra.mxu0 0
    %1227 = vmatpush.bf16.msra.mxu0 0
    %1228 = vmatpush.bf16.msra.mxu0 %v1216
    %1229 = vmatpush.bf16.msra.mxu0 %v1215
    %1230 = vmatpush.bf16.msra.mxu0 %v1214
    %1231 = vmatpush.bf16.msra.mxu0 %v1213
    %1232 = vmatmul.bf16.gmra.mxu0 %v1222
    %v1233 = vpop.f32.mrf.mxu0
    %v1234 = vadd.f32 %v1219, %v1233
    %v1235 = vpop.f32.mrf.mxu0
    %v1236 = vadd.f32 %v1219, %v1235
    %1237 = vdwg.mxu0
    %v1238 = vmax.f32 %v1234, 0.0
    %v1239 = vmax.f32 %v1236, 0.0
    %v1240 = vld [vmem:[%s13] sm:$0xff]
    %v1241 = vld [vmem:[%s13 + $0x8] sm:$0xff]
    %v1242 = vld [vmem:[%s13 + $0x10] sm:$0xff]
    %v1243 = vld [vmem:[%s13 + $0x18] sm:$0xff]
    %v1244 = vld [vmem:[%s13 + $0x20] sm:$0xff]
    %v1245 = vld [vmem:[%s13 + $0x28] sm:$0xff]
    %v1246 = vld [vmem:[%s13 + $0x30] sm:$0xff]
    %v1247 = vld [vmem:[%s13 + $0x38] sm:$0xff]
    %v1248 = vld [vmem:[%s13 + $0x40] sm:$0xff]
    %v1249 = vld [vmem:[%s13 + $0x48] sm:$0xff]
    %v1250 = vld [vmem:[%s13 + $0x50] sm:$0xff]
    %v1251 = vld [vmem:[%s13 + $0x58] sm:$0xff]
    %v1252 = vld [vmem:[%s13 + $0x60] sm:$0xff]
    %v1253 = vld [vmem:[%s13 + $0x68] sm:$0xff]
    %v1254 = vld [vmem:[%s13 + $0x70] sm:$0xff]
    %v1255 = vld [vmem:[%s13 + $0x78] sm:$0xff]
    %v1256 = vpack.c.bf16 %v1239, %v1238
    %v1257 = vpack.c.bf16 %v1241, %v1240
    %v1258 = vpack.c.bf16 %v1243, %v1242
    %v1259 = vpack.c.bf16 %v1245, %v1244
    %v1260 = vpack.c.bf16 %v1247, %v1246
    %v1261 = vpack.c.bf16 %v1249, %v1248
    %v1262 = vpack.c.bf16 %v1251, %v1250
    %v1263 = vpack.c.bf16 %v1253, %v1252
    %v1264 = vpack.c.bf16 %v1255, %v1254
    %v1265 = vld [vmem:[#allocation11] sm:$0x1]
    %v1267 = vperm.slane %v1265, 0
    %1269 = vmatpush.bf16.msra.mxu0 %v1264
    %1270 = vmatpush.bf16.msra.mxu0 %v1263
    %1271 = vmatpush.bf16.msra.mxu0 %v1262
    %1272 = vmatpush.bf16.msra.mxu0 %v1261
    %1273 = vmatpush.bf16.msra.mxu0 %v1260
    %1274 = vmatpush.bf16.msra.mxu0 %v1259
    %1275 = vmatpush.bf16.msra.mxu0 %v1258
    %1276 = vmatpush.bf16.msra.mxu0 %v1257
    %1277 = vmatmul.bf16.gmra.mxu0 %v1256
    %v1278 = vpop.f32.mrf.mxu0
    %v1279 = vadd.f32 %v1267, %v1278
    %v1280 = vpop.f32.mrf.mxu0
    %v1281 = vadd.f32 %v1267, %v1280
    %1282 = vdwg.mxu0
    %v1283 = vadd.f32 %v1202, %v1279
    %v1284 = vadd.f32 %v1203, %v1281
    %v1285 = vld [vmem:[#allocation18] sm:$0x1]
    %v1287 = vperm.slane %v1285, 0
    %v1289 = vmul.f32 %v1283, %v1287
    %v1290 = vmul.f32 %v1284, %v1287
    %v1291 = vld [vmem:[#allocation20] sm:$0x1]
    %v1293 = vperm.slane %v1291, 0
    %v1295 = vadd.f32 %v1289, %v1293
    %v1296 = vadd.f32 %v1290, %v1293
    %v1297 = vmax.f32 %v1295, 0.0
    %v1298 = vmax.f32 %v1296, 0.0
    %1299 = vst.msk [vmem:[%s21] sm:$0xff] %vm261, %v1297
    %1300 = vst.msk [vmem:[%s21 + $0x8] sm:$0xff] %vm261, %v1298
    // Predicated region
    $region130: #{gps_conv_net_forward.7} parent=1 // pred_check
      _
    $region131: #{gps_conv_net_forward.7} parent=1 // pred_check_branch
      %1302 = sbr.rel (0) target = $region133
    $region132: #{gps_conv_net_forward.7} parent=1 // pred_region
      _
    $region133: #{gps_conv_net_forward.7} parent=1 // pred_fallthru
      _
    // Predicated region
    $region134: #{gps_conv_net_forward.7} parent=1 // pred_check
      _
    $region135: #{gps_conv_net_forward.7} parent=1 // pred_check_branch
      %1304 = sbr.rel (0) target = $region137
    $region136: #{gps_conv_net_forward.7} parent=1 // pred_region
      _
    $region137: #{gps_conv_net_forward.7} parent=1 // pred_fallthru
      _
    %1305 = vsyncpa [#allocation5], 1
    %1306 = vsyncpa [#allocation7], 1
    %1307 = vsyncpa [#allocation10], 1
    %1308 = vsyncpa [#allocation13], 1
    %1309 = vsyncpa [#allocation16], 1
    %1310 = vsyncpa [#allocation19], 1

// kernel: gps_conv_net_forward.8
$region0: #{gps_conv_net_forward.8}
  #allocation0 [shape = 'u32[]', space=smem, size = 0x4, offset = 0x4, fixed_abs, tag = 'smem constant byte address 0x4 - core index']
  #allocation1 [shape = 'u32[72,128]{1,0:T(1,128)}', space=vmem, size = 0x9000, scoped, tag = 'internal scratch']
  #allocation2 [shape = 'f32[16,16]{1,0:T(8,128)}', space=vmem, size = 0x2000, scoped, tag = 'scratch operand']
  #allocation3 [shape = 'f32[16,64]{1,0:T(8,128)}', space=vmem, size = 0x2000, scoped, tag = 'scratch operand']
  %s0 = inlined_call_operand.vmem [shape: f32[16,64], index: 0, kind: input, shape index: {}]
  %s1 = inlined_call_operand.vmem [shape: bf16[16,16], index: 1, kind: input, shape index: {}]
  %s2 = inlined_call_operand.vmem [shape: bf16[16,16], index: 2, kind: input, shape index: {}]
  %s3 = inlined_call_operand.vmem [shape: f32[64,192], index: 3, kind: input, shape index: {}]
  %s4 = inlined_call_operand.vmem [shape: f32[1,192], index: 4, kind: input, shape index: {}]
  %s5 = inlined_call_operand.hbm [shape: f32[64,128], index: 5, kind: input, shape index: {}]
  %s6 = inlined_call_operand.vmem [shape: f32[1,128], index: 6, kind: input, shape index: {}]
  %s7 = inlined_call_operand.vmem [shape: f32[1,64], index: 7, kind: input, shape index: {}]
  %s8 = inlined_call_operand.vmem [shape: f32[1,64], index: 8, kind: input, shape index: {}]
  %s9 = inlined_call_operand.hbm [shape: f32[64,64], index: 9, kind: input, shape index: {}]
  %s10 = inlined_call_operand.vmem [shape: f32[1,64], index: 10, kind: input, shape index: {}]
  %s11 = inlined_call_operand.hbm [shape: f32[64,128], index: 11, kind: input, shape index: {}]
  %s12 = inlined_call_operand.vmem [shape: f32[1,128], index: 12, kind: input, shape index: {}]
  %s13 = inlined_call_operand.vmem [shape: f32[128,64], index: 13, kind: input, shape index: {}]
  %s14 = inlined_call_operand.vmem [shape: f32[1,64], index: 14, kind: input, shape index: {}]
  %s15 = inlined_call_operand.vmem [shape: f32[1,64], index: 15, kind: input, shape index: {}]
  %s16 = inlined_call_operand.vmem [shape: f32[1,64], index: 16, kind: input, shape index: {}]
  %s17 = inlined_call_operand.vmem [shape: f32[1,64], index: 17, kind: input, shape index: {}]
  %s18 = inlined_call_operand.vmem [shape: f32[1,64], index: 18, kind: input, shape index: {}]
  %s19 = inlined_call_operand.vmem [shape: f32[1,64], index: 19, kind: input, shape index: {}]
  %s20 = inlined_call_operand.vmem [shape: f32[1,64], index: 20, kind: input, shape index: {}]
  %s21 = inlined_call_operand.vmem [shape: f32[16,64], index: 21, kind: output, shape index: {}]
  %s22 = sld [smem:[#allocation0]]
  $region106: #{gps_conv_net_forward.8} parent=0
    _
  %s24 = ssub.s32 1, %s22
  %s25 = scalar_select 0, %s24, %s22
  $region1: #{gps_conv_net_forward.8} parent=0
    #allocation4 [shape = 'u8[32768]{0}', space=vmem, size = 0x8000, scoped, tag = 'input window, operand 5, single buffered']
    #allocation5 [shape = 's32[1]{0}', space=sflag, size = 0x4, scoped, tag = 'scoped memory for gps_conv_net_forward.8']
    #allocation6 [shape = 'u8[32768]{0}', space=vmem, size = 0x8000, scoped, tag = 'input window, operand 9, single buffered']
    #allocation7 [shape = 's32[1]{0}', space=sflag, size = 0x4, scoped, tag = 'scoped memory for gps_conv_net_forward.8']
    #allocation8 [shape = 'u8[32768]{0}', space=vmem, size = 0x8000, scoped, tag = 'input window, operand 11, single buffered']
    %26 = vsyncpa [#allocation5], 0
    %27 = vsyncpa [#allocation7], 0
    // Predicated region
    $region2: #{gps_conv_net_forward.8} parent=1 // pred_check
      _
    $region3: #{gps_conv_net_forward.8} parent=1 // pred_check_branch
      %29 = sbr.rel (0) target = $region5
    $region4: #{gps_conv_net_forward.8} parent=1 // pred_region
      _
    $region5: #{gps_conv_net_forward.8} parent=1 // pred_fallthru
      _
    // Predicated region
    $region6: #{gps_conv_net_forward.8} parent=1 // pred_check
      _
    $region7: #{gps_conv_net_forward.8} parent=1 // pred_check_branch
      %31 = sbr.rel (0) target = $region9
    $region8: #{gps_conv_net_forward.8} parent=1 // pred_region
      _
    $region9: #{gps_conv_net_forward.8} parent=1 // pred_fallthru
      _
    // Predicated region
    $region10: #{gps_conv_net_forward.8} parent=1 // pred_check
      _
    $region11: #{gps_conv_net_forward.8} parent=1 // pred_check_branch
      %33 = sbr.rel (0) target = $region13
    $region12: #{gps_conv_net_forward.8} parent=1 // pred_region
      _
    $region13: #{gps_conv_net_forward.8} parent=1 // pred_fallthru
      _
    // Predicated region
    $region14: #{gps_conv_net_forward.8} parent=1 // pred_check
      _
    $region15: #{gps_conv_net_forward.8} parent=1 // pred_check_branch
      %35 = sbr.rel (0) target = $region17
    $region16: #{gps_conv_net_forward.8} parent=1 // pred_region
      _
    $region17: #{gps_conv_net_forward.8} parent=1 // pred_fallthru
      _
    // Predicated region
    $region18: #{gps_conv_net_forward.8} parent=1 // pred_check
      _
    $region19: #{gps_conv_net_forward.8} parent=1 // pred_check_branch
      %37 = sbr.rel (0) target = $region21
    $region20: #{gps_conv_net_forward.8} parent=1 // pred_region
      _
    $region21: #{gps_conv_net_forward.8} parent=1 // pred_fallthru
      _
    // Predicated region
    $region22: #{gps_conv_net_forward.8} parent=1 // pred_check
      _
    $region23: #{gps_conv_net_forward.8} parent=1 // pred_check_branch
      %39 = sbr.rel (0) target = $region25
    $region24: #{gps_conv_net_forward.8} parent=1 // pred_region
      %41 = vsyncadd [#allocation5], 0
      %s42 = sshll.u32 %s5, 4
      %s43 = int_to_ptr.hbm [resolvable:$true] %s42
      %s44 = sshll.u32 [#allocation4], 4
      %s45 = int_to_ptr.vmem [resolvable:$true] %s44
      %50 = dma.hbm_to_vmem [thread:$0]  %s43, 1024, %s45, [#allocation5], 128, 128, 8
    $region25: #{gps_conv_net_forward.8} parent=1 // pred_fallthru
      _
    // Predicated region
    $region26: #{gps_conv_net_forward.8} parent=1 // pred_check
      _
    $region27: #{gps_conv_net_forward.8} parent=1 // pred_check_branch
      %52 = sbr.rel (0) target = $region29
    $region28: #{gps_conv_net_forward.8} parent=1 // pred_region
      _
    $region29: #{gps_conv_net_forward.8} parent=1 // pred_fallthru
      _
    // Predicated region
    $region30: #{gps_conv_net_forward.8} parent=1 // pred_check
      _
    $region31: #{gps_conv_net_forward.8} parent=1 // pred_check_branch
      %54 = sbr.rel (0) target = $region33
    $region32: #{gps_conv_net_forward.8} parent=1 // pred_region
      _
    $region33: #{gps_conv_net_forward.8} parent=1 // pred_fallthru
      _
    // Predicated region
    $region34: #{gps_conv_net_forward.8} parent=1 // pred_check
      _
    $region35: #{gps_conv_net_forward.8} parent=1 // pred_check_branch
      %56 = sbr.rel (0) target = $region37
    $region36: #{gps_conv_net_forward.8} parent=1 // pred_region
      _
    $region37: #{gps_conv_net_forward.8} parent=1 // pred_fallthru
      _
    // Predicated region
    $region38: #{gps_conv_net_forward.8} parent=1 // pred_check
      _
    $region39: #{gps_conv_net_forward.8} parent=1 // pred_check_branch
      %58 = sbr.rel (0) target = $region41
    $region40: #{gps_conv_net_forward.8} parent=1 // pred_region
      %60 = vsyncadd [#allocation7], 0
      %s61 = sshll.u32 %s9, 4
      %s62 = int_to_ptr.hbm [resolvable:$true] %s61
      %s63 = sshll.u32 [#allocation6], 4
      %s64 = int_to_ptr.vmem [resolvable:$true] %s63
      %69 = dma.hbm_to_vmem [thread:$0]  %s62, 1024, %s64, [#allocation7], 128, 128, 8
    $region41: #{gps_conv_net_forward.8} parent=1 // pred_fallthru
      _
    // Predicated region
    $region42: #{gps_conv_net_forward.8} parent=1 // pred_check
      _
    $region43: #{gps_conv_net_forward.8} parent=1 // pred_check_branch
      %71 = sbr.rel (0) target = $region45
    $region44: #{gps_conv_net_forward.8} parent=1 // pred_region
      _
    $region45: #{gps_conv_net_forward.8} parent=1 // pred_fallthru
      _
    // Predicated region
    $region46: #{gps_conv_net_forward.8} parent=1 // pred_check
      _
    $region47: #{gps_conv_net_forward.8} parent=1 // pred_check_branch
      %73 = sbr.rel (0) target = $region49
    $region48: #{gps_conv_net_forward.8} parent=1 // pred_region
      %75 = vsyncadd [#allocation7], 0
      %s76 = sshll.u32 %s11, 4
      %s77 = int_to_ptr.hbm [resolvable:$true] %s76
      %s78 = sshll.u32 [#allocation8], 4
      %s79 = int_to_ptr.vmem [resolvable:$true] %s78
      %84 = dma.hbm_to_vmem [thread:$0]  %s77, 1024, %s79, [#allocation7], 128, 128, 8
    $region49: #{gps_conv_net_forward.8} parent=1 // pred_fallthru
      _
    // Predicated region
    $region50: #{gps_conv_net_forward.8} parent=1 // pred_check
      _
    $region51: #{gps_conv_net_forward.8} parent=1 // pred_check_branch
      %86 = sbr.rel (0) target = $region53
    $region52: #{gps_conv_net_forward.8} parent=1 // pred_region
      _
    $region53: #{gps_conv_net_forward.8} parent=1 // pred_fallthru
      _
    // Predicated region
    $region54: #{gps_conv_net_forward.8} parent=1 // pred_check
      _
    $region55: #{gps_conv_net_forward.8} parent=1 // pred_check_branch
      %88 = sbr.rel (0) target = $region57
    $region56: #{gps_conv_net_forward.8} parent=1 // pred_region
      _
    $region57: #{gps_conv_net_forward.8} parent=1 // pred_fallthru
      _
    // Predicated region
    $region58: #{gps_conv_net_forward.8} parent=1 // pred_check
      _
    $region59: #{gps_conv_net_forward.8} parent=1 // pred_check_branch
      %90 = sbr.rel (0) target = $region61
    $region60: #{gps_conv_net_forward.8} parent=1 // pred_region
      _
    $region61: #{gps_conv_net_forward.8} parent=1 // pred_fallthru
      _
    // Predicated region
    $region62: #{gps_conv_net_forward.8} parent=1 // pred_check
      _
    $region63: #{gps_conv_net_forward.8} parent=1 // pred_check_branch
      %92 = sbr.rel (0) target = $region65
    $region64: #{gps_conv_net_forward.8} parent=1 // pred_region
      _
    $region65: #{gps_conv_net_forward.8} parent=1 // pred_fallthru
      _
    // Predicated region
    $region66: #{gps_conv_net_forward.8} parent=1 // pred_check
      _
    $region67: #{gps_conv_net_forward.8} parent=1 // pred_check_branch
      %94 = sbr.rel (0) target = $region69
    $region68: #{gps_conv_net_forward.8} parent=1 // pred_region
      _
    $region69: #{gps_conv_net_forward.8} parent=1 // pred_fallthru
      _
    // Predicated region
    $region70: #{gps_conv_net_forward.8} parent=1 // pred_check
      _
    $region71: #{gps_conv_net_forward.8} parent=1 // pred_check_branch
      %96 = sbr.rel (0) target = $region73
    $region72: #{gps_conv_net_forward.8} parent=1 // pred_region
      _
    $region73: #{gps_conv_net_forward.8} parent=1 // pred_fallthru
      _
    // Predicated region
    $region74: #{gps_conv_net_forward.8} parent=1 // pred_check
      _
    $region75: #{gps_conv_net_forward.8} parent=1 // pred_check_branch
      %98 = sbr.rel (0) target = $region77
    $region76: #{gps_conv_net_forward.8} parent=1 // pred_region
      _
    $region77: #{gps_conv_net_forward.8} parent=1 // pred_fallthru
      _
    // Predicated region
    $region78: #{gps_conv_net_forward.8} parent=1 // pred_check
      _
    $region79: #{gps_conv_net_forward.8} parent=1 // pred_check_branch
      %100 = sbr.rel (0) target = $region81
    $region80: #{gps_conv_net_forward.8} parent=1 // pred_region
      _
    $region81: #{gps_conv_net_forward.8} parent=1 // pred_fallthru
      _
    // Predicated region
    $region82: #{gps_conv_net_forward.8} parent=1 // pred_check
      _
    $region83: #{gps_conv_net_forward.8} parent=1 // pred_check_branch
      %102 = sbr.rel (0) target = $region85
    $region84: #{gps_conv_net_forward.8} parent=1 // pred_region
      _
    $region85: #{gps_conv_net_forward.8} parent=1 // pred_fallthru
      _
    // Predicated region
    $region86: #{gps_conv_net_forward.8} parent=1 // pred_check
      _
    $region87: #{gps_conv_net_forward.8} parent=1 // pred_check_branch
      %104 = sbr.rel (0) target = $region89
    $region88: #{gps_conv_net_forward.8} parent=1 // pred_region
      %106 = dma.done [#allocation5], 1024
    $region89: #{gps_conv_net_forward.8} parent=1 // pred_fallthru
      _
    // Predicated region
    $region90: #{gps_conv_net_forward.8} parent=1 // pred_check
      _
    $region91: #{gps_conv_net_forward.8} parent=1 // pred_check_branch
      %108 = sbr.rel (0) target = $region93
    $region92: #{gps_conv_net_forward.8} parent=1 // pred_region
      %110 = dma.done [#allocation7], 1024
    $region93: #{gps_conv_net_forward.8} parent=1 // pred_fallthru
      _
    // Predicated region
    $region94: #{gps_conv_net_forward.8} parent=1 // pred_check
      _
    $region95: #{gps_conv_net_forward.8} parent=1 // pred_check_branch
      %112 = sbr.rel (0) target = $region97
    $region96: #{gps_conv_net_forward.8} parent=1 // pred_region
      %114 = dma.done [#allocation7], 1024
    $region97: #{gps_conv_net_forward.8} parent=1 // pred_fallthru
      _
    %s116 = smul.u32 0, 16
    %v117 = vld [vmem:[%s0] sm:$0xff]
    %v118 = vld [vmem:[%s0 + $0x8] sm:$0xff]
    %s119 = scalar_lea.vmem %s0, %s116
    %v120 = vld [vmem:[%s119] sm:$0xff]
    %v121 = vld [vmem:[%s119 + $0x8] sm:$0xff]
    %v122 = vld [vmem:[%s3] sm:$0xff]
    %v123 = vld [vmem:[%s3 + $0x8] sm:$0xff]
    %v124 = vld [vmem:[%s3 + $0x10] sm:$0xff]
    %v125 = vld [vmem:[%s3 + $0x18] sm:$0xff]
    %v126 = vld [vmem:[%s3 + $0x20] sm:$0xff]
    %v127 = vld [vmem:[%s3 + $0x28] sm:$0xff]
    %v128 = vld [vmem:[%s3 + $0x30] sm:$0xff]
    %v129 = vld [vmem:[%s3 + $0x38] sm:$0xff]
    %v130 = vld [vmem:[%s3 + $0x40] sm:$0xff]
    %v131 = vld [vmem:[%s3 + $0x48] sm:$0xff]
    %v132 = vld [vmem:[%s3 + $0x50] sm:$0xff]
    %v133 = vld [vmem:[%s3 + $0x58] sm:$0xff]
    %v134 = vld [vmem:[%s3 + $0x60] sm:$0xff]
    %v135 = vld [vmem:[%s3 + $0x68] sm:$0xff]
    %v136 = vld [vmem:[%s3 + $0x70] sm:$0xff]
    %v137 = vld [vmem:[%s3 + $0x78] sm:$0xff]
    %v138 = vpack.c.bf16 %v118, %v117
    %v139 = vpack.c.bf16 %v124, %v122
    %v140 = vpack.c.bf16 %v125, %v123
    %v141 = vpack.c.bf16 %v128, %v126
    %v142 = vpack.c.bf16 %v129, %v127
    %v143 = vpack.c.bf16 %v132, %v130
    %v144 = vpack.c.bf16 %v133, %v131
    %v145 = vpack.c.bf16 %v136, %v134
    %v146 = vpack.c.bf16 %v137, %v135
    %v147 = vld [vmem:[%s4] sm:$0x3]
    %v149 = vperm.slane %v147, 0
    %v150 = vperm.slane %v147, 1
    %vm153 = vcmask 523264
    %v155 = vsel %vm153, %v138, 0
    %157 = vmatpush.bf16.msra.mxu0 0
    %158 = vmatpush.bf16.msra.mxu0 0
    %159 = vmatpush.bf16.msra.mxu0 0
    %160 = vmatpush.bf16.msra.mxu0 0
    %161 = vmatpush.bf16.msra.mxu0 %v145
    %162 = vmatpush.bf16.msra.mxu0 %v143
    %163 = vmatpush.bf16.msra.mxu0 %v141
    %164 = vmatpush.bf16.msra.mxu0 %v139
    %165 = vmatmul.bf16.gmra.mxu0 %v155
    %v166 = vpop.f32.mrf.mxu0
    %v167 = vadd.f32 %v149, %v166
    %v168 = vpop.f32.mrf.mxu0
    %v169 = vadd.f32 %v149, %v168
    %170 = vdwg.mxu0
    %171 = vmatpush.bf16.msra.mxu0 0
    %172 = vmatpush.bf16.msra.mxu0 0
    %173 = vmatpush.bf16.msra.mxu0 0
    %174 = vmatpush.bf16.msra.mxu0 0
    %175 = vmatpush.bf16.msra.mxu0 %v146
    %176 = vmatpush.bf16.msra.mxu0 %v144
    %177 = vmatpush.bf16.msra.mxu0 %v142
    %178 = vmatpush.bf16.msra.mxu0 %v140
    %179 = vmatmul.bf16.gmra.mxu0 %v155
    %v180 = vpop.f32.mrf.mxu0
    %v181 = vadd.f32 %v150, %v180
    %v182 = vpop.f32.mrf.mxu0
    %v183 = vadd.f32 %v150, %v182
    %184 = vdwg.mxu0
    %v185 = vld [vmem:[#allocation4] sm:$0xff]
    %v186 = vld [vmem:[#allocation4 + $0x8] sm:$0xff]
    %v187 = vld [vmem:[#allocation4 + $0x10] sm:$0xff]
    %v188 = vld [vmem:[#allocation4 + $0x18] sm:$0xff]
    %v189 = vld [vmem:[#allocation4 + $0x20] sm:$0xff]
    %v190 = vld [vmem:[#allocation4 + $0x28] sm:$0xff]
    %v191 = vld [vmem:[#allocation4 + $0x30] sm:$0xff]
    %v192 = vld [vmem:[#allocation4 + $0x38] sm:$0xff]
    %v193 = vpack.c.bf16 %v121, %v120
    %v194 = vpack.c.bf16 %v186, %v185
    %v195 = vpack.c.bf16 %v188, %v187
    %v196 = vpack.c.bf16 %v190, %v189
    %v197 = vpack.c.bf16 %v192, %v191
    %v198 = vld [vmem:[%s6] sm:$0x1]
    %v200 = vperm.slane %v198, 0
    %v203 = vsel %vm153, %v193, 0
    %205 = vmatpush.bf16.msra.mxu0 0
    %206 = vmatpush.bf16.msra.mxu0 0
    %207 = vmatpush.bf16.msra.mxu0 0
    %208 = vmatpush.bf16.msra.mxu0 0
    %209 = vmatpush.bf16.msra.mxu0 %v197
    %210 = vmatpush.bf16.msra.mxu0 %v196
    %211 = vmatpush.bf16.msra.mxu0 %v195
    %212 = vmatpush.bf16.msra.mxu0 %v194
    %213 = vmatmul.bf16.gmra.mxu0 %v203
    %v214 = vpop.f32.mrf.mxu0
    %v215 = vadd.f32 %v200, %v214
    %v216 = vpop.f32.mrf.mxu0
    %v217 = vadd.f32 %v200, %v216
    %218 = vdwg.mxu0
    %v219 = vld [vmem:[%s7] sm:$0x1]
    %v222 = vrot.slane %v215, 1
    %v223 = vrot.slane %v215, 2
    %v224 = vrot.slane %v215, 3
    %v225 = vrot.slane %v215, 4
    %v226 = vrot.slane %v215, 5
    %v227 = vrot.slane %v215, 6
    %v228 = vrot.slane %v215, 7
    %v229 = vrot.slane %v217, 1
    %v230 = vrot.slane %v217, 2
    %v231 = vrot.slane %v217, 3
    %v232 = vrot.slane %v217, 4
    %v233 = vrot.slane %v217, 5
    %v234 = vrot.slane %v217, 6
    %v235 = vrot.slane %v217, 7
    %v236 = vperm.slane %v215, 0
    %v237 = vperm.slane %v222, 0
    %v238 = vperm.slane %v223, 0
    %v239 = vperm.slane %v224, 0
    %v240 = vperm.slane %v225, 0
    %v241 = vperm.slane %v226, 0
    %v242 = vperm.slane %v227, 0
    %v243 = vperm.slane %v228, 0
    %v244 = vperm.slane %v217, 0
    %v245 = vperm.slane %v229, 0
    %v246 = vperm.slane %v230, 0
    %v247 = vperm.slane %v231, 0
    %v248 = vperm.slane %v232, 0
    %v249 = vperm.slane %v233, 0
    %v250 = vperm.slane %v234, 0
    %v251 = vperm.slane %v235, 0
    %v268 = vadd.f32 %v236, %v167
    %v269 = vadd.f32 %v236, %v169
    %v270 = vadd.f32 %v237, %v167
    %v271 = vadd.f32 %v237, %v169
    %v272 = vadd.f32 %v238, %v167
    %v273 = vadd.f32 %v238, %v169
    %v274 = vadd.f32 %v239, %v167
    %v275 = vadd.f32 %v239, %v169
    %v276 = vadd.f32 %v240, %v167
    %v277 = vadd.f32 %v240, %v169
    %v278 = vadd.f32 %v241, %v167
    %v279 = vadd.f32 %v241, %v169
    %v280 = vadd.f32 %v242, %v167
    %v281 = vadd.f32 %v242, %v169
    %v282 = vadd.f32 %v243, %v167
    %v283 = vadd.f32 %v243, %v169
    %v284 = vadd.f32 %v244, %v167
    %v285 = vadd.f32 %v244, %v169
    %v286 = vadd.f32 %v245, %v167
    %v287 = vadd.f32 %v245, %v169
    %v288 = vadd.f32 %v246, %v167
    %v289 = vadd.f32 %v246, %v169
    %v290 = vadd.f32 %v247, %v167
    %v291 = vadd.f32 %v247, %v169
    %v292 = vadd.f32 %v248, %v167
    %v293 = vadd.f32 %v248, %v169
    %v294 = vadd.f32 %v249, %v167
    %v295 = vadd.f32 %v249, %v169
    %v296 = vadd.f32 %v250, %v167
    %v297 = vadd.f32 %v250, %v169
    %v298 = vadd.f32 %v251, %v167
    %v299 = vadd.f32 %v251, %v169
    %v300 = vmul.f32 %v268, 0.2
    %v301 = vmul.f32 %v269, 0.2
    %v302 = vmul.f32 %v270, 0.2
    %v303 = vmul.f32 %v271, 0.2
    %v304 = vmul.f32 %v272, 0.2
    %v305 = vmul.f32 %v273, 0.2
    %v306 = vmul.f32 %v274, 0.2
    %v307 = vmul.f32 %v275, 0.2
    %v308 = vmul.f32 %v276, 0.2
    %v309 = vmul.f32 %v277, 0.2
    %v310 = vmul.f32 %v278, 0.2
    %v311 = vmul.f32 %v279, 0.2
    %v312 = vmul.f32 %v280, 0.2
    %v313 = vmul.f32 %v281, 0.2
    %v314 = vmul.f32 %v282, 0.2
    %v315 = vmul.f32 %v283, 0.2
    %v316 = vmul.f32 %v284, 0.2
    %v317 = vmul.f32 %v285, 0.2
    %v318 = vmul.f32 %v286, 0.2
    %v319 = vmul.f32 %v287, 0.2
    %v320 = vmul.f32 %v288, 0.2
    %v321 = vmul.f32 %v289, 0.2
    %v322 = vmul.f32 %v290, 0.2
    %v323 = vmul.f32 %v291, 0.2
    %v324 = vmul.f32 %v292, 0.2
    %v325 = vmul.f32 %v293, 0.2
    %v326 = vmul.f32 %v294, 0.2
    %v327 = vmul.f32 %v295, 0.2
    %v328 = vmul.f32 %v296, 0.2
    %v329 = vmul.f32 %v297, 0.2
    %v330 = vmul.f32 %v298, 0.2
    %v331 = vmul.f32 %v299, 0.2
    %v332 = vmax.f32 %v268, %v300
    %v333 = vmax.f32 %v269, %v301
    %v334 = vmax.f32 %v270, %v302
    %v335 = vmax.f32 %v271, %v303
    %v336 = vmax.f32 %v272, %v304
    %v337 = vmax.f32 %v273, %v305
    %v338 = vmax.f32 %v274, %v306
    %v339 = vmax.f32 %v275, %v307
    %v340 = vmax.f32 %v276, %v308
    %v341 = vmax.f32 %v277, %v309
    %v342 = vmax.f32 %v278, %v310
    %v343 = vmax.f32 %v279, %v311
    %v344 = vmax.f32 %v280, %v312
    %v345 = vmax.f32 %v281, %v313
    %v346 = vmax.f32 %v282, %v314
    %v347 = vmax.f32 %v283, %v315
    %v348 = vmax.f32 %v284, %v316
    %v349 = vmax.f32 %v285, %v317
    %v350 = vmax.f32 %v286, %v318
    %v351 = vmax.f32 %v287, %v319
    %v352 = vmax.f32 %v288, %v320
    %v353 = vmax.f32 %v289, %v321
    %v354 = vmax.f32 %v290, %v322
    %v355 = vmax.f32 %v291, %v323
    %v356 = vmax.f32 %v292, %v324
    %v357 = vmax.f32 %v293, %v325
    %v358 = vmax.f32 %v294, %v326
    %v359 = vmax.f32 %v295, %v327
    %v360 = vmax.f32 %v296, %v328
    %v361 = vmax.f32 %v297, %v329
    %v362 = vmax.f32 %v298, %v330
    %v363 = vmax.f32 %v299, %v331
    %v365 = vperm.slane %v219, 0
    %v367 = vmul.f32 %v332, %v365
    %v368 = vmul.f32 %v333, %v365
    %v369 = vmul.f32 %v334, %v365
    %v370 = vmul.f32 %v335, %v365
    %v371 = vmul.f32 %v336, %v365
    %v372 = vmul.f32 %v337, %v365
    %v373 = vmul.f32 %v338, %v365
    %v374 = vmul.f32 %v339, %v365
    %v375 = vmul.f32 %v340, %v365
    %v376 = vmul.f32 %v341, %v365
    %v377 = vmul.f32 %v342, %v365
    %v378 = vmul.f32 %v343, %v365
    %v379 = vmul.f32 %v344, %v365
    %v380 = vmul.f32 %v345, %v365
    %v381 = vmul.f32 %v346, %v365
    %v382 = vmul.f32 %v347, %v365
    %v383 = vmul.f32 %v348, %v365
    %v384 = vmul.f32 %v349, %v365
    %v385 = vmul.f32 %v350, %v365
    %v386 = vmul.f32 %v351, %v365
    %v387 = vmul.f32 %v352, %v365
    %v388 = vmul.f32 %v353, %v365
    %v389 = vmul.f32 %v354, %v365
    %v390 = vmul.f32 %v355, %v365
    %v391 = vmul.f32 %v356, %v365
    %v392 = vmul.f32 %v357, %v365
    %v393 = vmul.f32 %v358, %v365
    %v394 = vmul.f32 %v359, %v365
    %v395 = vmul.f32 %v360, %v365
    %v396 = vmul.f32 %v361, %v365
    %v397 = vmul.f32 %v362, %v365
    %v398 = vmul.f32 %v363, %v365
    %v399 = vsel %vm153, %v367, 0.0
    %400 = vadd.xlane.f32.xlu0 %v399
    %v401 = vpop.xlane.xlu0 %400
    %v402 = vsel %vm153, %v368, 0.0
    %403 = vadd.xlane.f32.xlu0 %v402
    %v404 = vpop.xlane.xlu0 %403
    %v405 = vsel %vm153, %v369, 0.0
    %406 = vadd.xlane.f32.xlu0 %v405
    %v407 = vpop.xlane.xlu0 %406
    %v408 = vsel %vm153, %v370, 0.0
    %409 = vadd.xlane.f32.xlu0 %v408
    %v410 = vpop.xlane.xlu0 %409
    %v411 = vsel %vm153, %v371, 0.0
    %412 = vadd.xlane.f32.xlu0 %v411
    %v413 = vpop.xlane.xlu0 %412
    %v414 = vsel %vm153, %v372, 0.0
    %415 = vadd.xlane.f32.xlu0 %v414
    %v416 = vpop.xlane.xlu0 %415
    %v417 = vsel %vm153, %v373, 0.0
    %418 = vadd.xlane.f32.xlu0 %v417
    %v419 = vpop.xlane.xlu0 %418
    %v420 = vsel %vm153, %v374, 0.0
    %421 = vadd.xlane.f32.xlu0 %v420
    %v422 = vpop.xlane.xlu0 %421
    %v423 = vsel %vm153, %v375, 0.0
    %424 = vadd.xlane.f32.xlu0 %v423
    %v425 = vpop.xlane.xlu0 %424
    %v426 = vsel %vm153, %v376, 0.0
    %427 = vadd.xlane.f32.xlu0 %v426
    %v428 = vpop.xlane.xlu0 %427
    %v429 = vsel %vm153, %v377, 0.0
    %430 = vadd.xlane.f32.xlu0 %v429
    %v431 = vpop.xlane.xlu0 %430
    %v432 = vsel %vm153, %v378, 0.0
    %433 = vadd.xlane.f32.xlu0 %v432
    %v434 = vpop.xlane.xlu0 %433
    %v435 = vsel %vm153, %v379, 0.0
    %436 = vadd.xlane.f32.xlu0 %v435
    %v437 = vpop.xlane.xlu0 %436
    %v438 = vsel %vm153, %v380, 0.0
    %439 = vadd.xlane.f32.xlu0 %v438
    %v440 = vpop.xlane.xlu0 %439
    %v441 = vsel %vm153, %v381, 0.0
    %442 = vadd.xlane.f32.xlu0 %v441
    %v443 = vpop.xlane.xlu0 %442
    %v444 = vsel %vm153, %v382, 0.0
    %445 = vadd.xlane.f32.xlu0 %v444
    %v446 = vpop.xlane.xlu0 %445
    %v447 = vsel %vm153, %v383, 0.0
    %448 = vadd.xlane.f32.xlu0 %v447
    %v449 = vpop.xlane.xlu0 %448
    %v450 = vsel %vm153, %v384, 0.0
    %451 = vadd.xlane.f32.xlu0 %v450
    %v452 = vpop.xlane.xlu0 %451
    %v453 = vsel %vm153, %v385, 0.0
    %454 = vadd.xlane.f32.xlu0 %v453
    %v455 = vpop.xlane.xlu0 %454
    %v456 = vsel %vm153, %v386, 0.0
    %457 = vadd.xlane.f32.xlu0 %v456
    %v458 = vpop.xlane.xlu0 %457
    %v459 = vsel %vm153, %v387, 0.0
    %460 = vadd.xlane.f32.xlu0 %v459
    %v461 = vpop.xlane.xlu0 %460
    %v462 = vsel %vm153, %v388, 0.0
    %463 = vadd.xlane.f32.xlu0 %v462
    %v464 = vpop.xlane.xlu0 %463
    %v465 = vsel %vm153, %v389, 0.0
    %466 = vadd.xlane.f32.xlu0 %v465
    %v467 = vpop.xlane.xlu0 %466
    %v468 = vsel %vm153, %v390, 0.0
    %469 = vadd.xlane.f32.xlu0 %v468
    %v470 = vpop.xlane.xlu0 %469
    %v471 = vsel %vm153, %v391, 0.0
    %472 = vadd.xlane.f32.xlu0 %v471
    %v473 = vpop.xlane.xlu0 %472
    %v474 = vsel %vm153, %v392, 0.0
    %475 = vadd.xlane.f32.xlu0 %v474
    %v476 = vpop.xlane.xlu0 %475
    %v477 = vsel %vm153, %v393, 0.0
    %478 = vadd.xlane.f32.xlu0 %v477
    %v479 = vpop.xlane.xlu0 %478
    %v480 = vsel %vm153, %v394, 0.0
    %481 = vadd.xlane.f32.xlu0 %v480
    %v482 = vpop.xlane.xlu0 %481
    %v483 = vsel %vm153, %v395, 0.0
    %484 = vadd.xlane.f32.xlu0 %v483
    %v485 = vpop.xlane.xlu0 %484
    %v486 = vsel %vm153, %v396, 0.0
    %487 = vadd.xlane.f32.xlu0 %v486
    %v488 = vpop.xlane.xlu0 %487
    %v489 = vsel %vm153, %v397, 0.0
    %490 = vadd.xlane.f32.xlu0 %v489
    %v491 = vpop.xlane.xlu0 %490
    %v492 = vsel %vm153, %v398, 0.0
    %493 = vadd.xlane.f32.xlu0 %v492
    %v494 = vpop.xlane.xlu0 %493
    %v527 = vlaneseq
    %v528 = vand.u32 %v527, 127
    %v529 = vperm.slane %v401, %v528
    %v530 = vadd.s32 %v528, 4294967288
    %v531 = vperm.slane %v404, %v530
    %vm532 = vcmask 130112
    %v533 = vsel %vm532, %v531, %v529
    %v534 = vperm.slane %v407, %v528
    %v535 = vperm.slane %v410, %v530
    %v536 = vsel %vm532, %v535, %v534
    %v537 = vperm.slane %v413, %v528
    %v538 = vperm.slane %v416, %v530
    %v539 = vsel %vm532, %v538, %v537
    %v540 = vperm.slane %v419, %v528
    %v541 = vperm.slane %v422, %v530
    %v542 = vsel %vm532, %v541, %v540
    %v543 = vperm.slane %v425, %v528
    %v544 = vperm.slane %v428, %v530
    %v545 = vsel %vm532, %v544, %v543
    %v546 = vperm.slane %v431, %v528
    %v547 = vperm.slane %v434, %v530
    %v548 = vsel %vm532, %v547, %v546
    %v549 = vperm.slane %v437, %v528
    %v550 = vperm.slane %v440, %v530
    %v551 = vsel %vm532, %v550, %v549
    %v552 = vperm.slane %v443, %v528
    %v553 = vperm.slane %v446, %v530
    %v554 = vsel %vm532, %v553, %v552
    %v555 = vperm.slane %v449, %v528
    %v556 = vperm.slane %v452, %v530
    %v557 = vsel %vm532, %v556, %v555
    %v558 = vperm.slane %v455, %v528
    %v559 = vperm.slane %v458, %v530
    %v560 = vsel %vm532, %v559, %v558
    %v561 = vperm.slane %v461, %v528
    %v562 = vperm.slane %v464, %v530
    %v563 = vsel %vm532, %v562, %v561
    %v564 = vperm.slane %v467, %v528
    %v565 = vperm.slane %v470, %v530
    %v566 = vsel %vm532, %v565, %v564
    %v567 = vperm.slane %v473, %v528
    %v568 = vperm.slane %v476, %v530
    %v569 = vsel %vm532, %v568, %v567
    %v570 = vperm.slane %v479, %v528
    %v571 = vperm.slane %v482, %v530
    %v572 = vsel %vm532, %v571, %v570
    %v573 = vperm.slane %v485, %v528
    %v574 = vperm.slane %v488, %v530
    %v575 = vsel %vm532, %v574, %v573
    %v576 = vperm.slane %v491, %v528
    %v577 = vperm.slane %v494, %v530
    %v578 = vsel %vm532, %v577, %v576
    %vm579 = vcmask 1041409
    %v580 = vsel %vm579, %v536, %v533
    %vm581 = vcmask 1042434
    %v582 = vsel %vm581, %v539, %v580
    %vm583 = vcmask 1043459
    %v584 = vsel %vm583, %v542, %v582
    %vm585 = vcmask 1044484
    %v586 = vsel %vm585, %v545, %v584
    %vm587 = vcmask 1045509
    %v588 = vsel %vm587, %v548, %v586
    %vm589 = vcmask 1046534
    %v590 = vsel %vm589, %v551, %v588
    %vm591 = vcmask 1047559
    %v592 = vsel %vm591, %v554, %v590
    %v593 = vsel %vm579, %v560, %v557
    %v594 = vsel %vm581, %v563, %v593
    %v595 = vsel %vm583, %v566, %v594
    %v596 = vsel %vm585, %v569, %v595
    %v597 = vsel %vm587, %v572, %v596
    %v598 = vsel %vm589, %v575, %v597
    %v599 = vsel %vm591, %v578, %v598
    %vm602 = vcmask 130048
    %603 = vst.msk [vmem:[#allocation2] sm:$0xff] %vm602, %v592
    %604 = vst.msk [vmem:[#allocation2 + $0x8] sm:$0xff] %vm602, %v599
    %v605 = vld [vmem:[#allocation2] sm:$0xff]
    %v606 = vld [vmem:[#allocation2 + $0x8] sm:$0xff]
    %v607 = vld [vmem:[%s1] sm:$0xf]
    %v608 = vld [vmem:[%s1 + $0x4] sm:$0xf]
    %v609 = vunpack.c.l.bf16 %v607
    %v610 = vunpack.c.l.bf16 %v608
    %v611 = vadd.f32 %v605, %v609
    %v612 = vadd.f32 %v606, %v610
    %v613 = vsel %vm602, %v611, -inf
    %614 = vmax.xlane.f32.xlu0 %v613
    %v615 = vpop.xlane.xlu0 %614
    %v616 = vsel %vm602, %v612, -inf
    %617 = vmax.xlane.f32.xlu0 %v616
    %v618 = vpop.xlane.xlu0 %617
    %v619 = vsub.f32 %v611, %v615
    %v620 = vsub.f32 %v612, %v618
    %v621 = vmul.f32 %v619, 1.442695
    %v622 = vpow.pop %v621
    %v623 = vmul.f32 %v620, 1.442695
    %v624 = vpow.pop %v623
    %v625 = vsel %vm602, %v622, 0.0
    %626 = vadd.xlane.f32.xlu0 %v625
    %v627 = vpop.xlane.xlu0 %626
    %v628 = vsel %vm602, %v624, 0.0
    %629 = vadd.xlane.f32.xlu0 %v628
    %v630 = vpop.xlane.xlu0 %629
    %v631 = vrcp.pop %v627
    %v632 = vrcp.pop %v630
    %v633 = vmul.f32 %v622, %v631
    %v634 = vmul.f32 %v624, %v632
    %v635 = vpack.c.bf16 %v634, %v633
    %v636 = vpack.c.bf16 %v169, %v167
    %v637 = vld [vmem:[%s8] sm:$0x1]
    %v639 = vperm.slane %v637, 0
    %v642 = vsel %vm602, %v635, 0
    %644 = vmatpush.bf16.msra.mxu0 0
    %645 = vmatpush.bf16.msra.mxu0 0
    %646 = vmatpush.bf16.msra.mxu0 0
    %647 = vmatpush.bf16.msra.mxu0 0
    %648 = vmatpush.bf16.msra.mxu0 0
    %649 = vmatpush.bf16.msra.mxu0 0
    %650 = vmatpush.bf16.msra.mxu0 0
    %651 = vmatpush.bf16.msra.mxu0 %v636
    %652 = vmatmul.bf16.gmra.mxu0 %v642
    %v653 = vpop.f32.mrf.mxu0
    %v654 = vadd.f32 %v639, %v653
    %v655 = vpop.f32.mrf.mxu0
    %v656 = vadd.f32 %v639, %v655
    %657 = vdwg.mxu0
    %v658 = vadd.f32 %v654, %v120
    %v659 = vadd.f32 %v656, %v121
    %v660 = vld [vmem:[%s15] sm:$0x1]
    %v662 = vperm.slane %v660, 0
    %v664 = vmul.f32 %v658, %v662
    %v665 = vmul.f32 %v659, %v662
    %v666 = vld [vmem:[%s16] sm:$0x1]
    %v668 = vperm.slane %v666, 0
    %v670 = vadd.f32 %v664, %v668
    %v671 = vadd.f32 %v665, %v668
    %v672 = vld [vmem:[%s2] sm:$0xf]
    %v673 = vld [vmem:[%s2 + $0x4] sm:$0xf]
    %v674 = vunpack.c.l.bf16 %v672
    %v675 = vunpack.c.l.bf16 %v673
    %v676 = vld [vmem:[#allocation6] sm:$0xff]
    %v677 = vld [vmem:[#allocation6 + $0x8] sm:$0xff]
    %v678 = vld [vmem:[#allocation6 + $0x10] sm:$0xff]
    %v679 = vld [vmem:[#allocation6 + $0x18] sm:$0xff]
    %v680 = vld [vmem:[#allocation6 + $0x20] sm:$0xff]
    %v681 = vld [vmem:[#allocation6 + $0x28] sm:$0xff]
    %v682 = vld [vmem:[#allocation6 + $0x30] sm:$0xff]
    %v683 = vld [vmem:[#allocation6 + $0x38] sm:$0xff]
    %684 = vst.msk [vmem:[#allocation3] sm:$0xff] %vm153, 0.0
    %685 = vst.msk [vmem:[#allocation3 + $0x8] sm:$0xff] %vm153, 0.0
    %v686 = vpack.c.bf16 %v217, %v215
    %688 = vrot.lane.b32.xlu0 %v686, 64
    %v689 = vpop.permute.xlu0 %688
    %691 = vrot.lane.b32.xlu0 %v636, 64
    %v692 = vpop.permute.xlu0 %691
    %v694 = vsel %vm602, %v689, 0
    %v697 = vsel %vm602, %v692, 0
    %699 = vmatpush.bf16.xpose.msra.mxu0 0
    %700 = vmatpush.bf16.xpose.msra.mxu0 0
    %701 = vmatpush.bf16.xpose.msra.mxu0 0
    %702 = vmatpush.bf16.xpose.msra.mxu0 0
    %703 = vmatpush.bf16.xpose.msra.mxu0 0
    %704 = vmatpush.bf16.xpose.msra.mxu0 0
    %705 = vmatpush.bf16.xpose.msra.mxu0 0
    %706 = vmatpush.bf16.xpose.msra.mxu0 %v697
    %707 = vmatmul.bf16.gmra.mxu0 %v694
    %v708 = vpop.f32.mrf.mxu0
    %v709 = vadd.f32 0.0, %v708
    %v710 = vpop.f32.mrf.mxu0
    %v711 = vadd.f32 0.0, %v710
    %712 = vdwg.mxu0
    %v713 = vmul.f32 %v709, 0.25
    %v714 = vmul.f32 %v711, 0.25
    %v715 = vadd.f32 %v713, %v674
    %v716 = vadd.f32 %v714, %v675
    %v717 = vsel %vm602, %v715, -inf
    %718 = vmax.xlane.f32.xlu0 %v717
    %v719 = vpop.xlane.xlu0 %718
    %v720 = vsel %vm602, %v716, -inf
    %721 = vmax.xlane.f32.xlu0 %v720
    %v722 = vpop.xlane.xlu0 %721
    %v723 = vsub.f32 %v715, %v719
    %v724 = vsub.f32 %v716, %v722
    %v725 = vmul.f32 %v723, 1.442695
    %v726 = vpow.pop %v725
    %v727 = vmul.f32 %v724, 1.442695
    %v728 = vpow.pop %v727
    %v729 = vsel %vm602, %v726, 0.0
    %730 = vadd.xlane.f32.xlu0 %v729
    %v731 = vpop.xlane.xlu0 %730
    %v732 = vsel %vm602, %v728, 0.0
    %733 = vadd.xlane.f32.xlu0 %v732
    %v734 = vpop.xlane.xlu0 %733
    %v735 = vrcp.pop %v731
    %v736 = vrcp.pop %v734
    %v737 = vmul.f32 %v726, %v735
    %v738 = vmul.f32 %v728, %v736
    %v739 = vpack.c.bf16 %v738, %v737
    %v740 = vpack.c.bf16 %v183, %v181
    %v742 = vsel %vm602, %v739, 0
    %744 = vmatpush.bf16.msra.mxu0 0
    %745 = vmatpush.bf16.msra.mxu0 0
    %746 = vmatpush.bf16.msra.mxu0 0
    %747 = vmatpush.bf16.msra.mxu0 0
    %748 = vmatpush.bf16.msra.mxu0 0
    %749 = vmatpush.bf16.msra.mxu0 0
    %750 = vmatpush.bf16.msra.mxu0 0
    %751 = vmatpush.bf16.msra.mxu0 %v740
    %752 = vmatmul.bf16.gmra.mxu0 %v742
    %v753 = vpop.f32.mrf.mxu0
    %v754 = vadd.f32 0.0, %v753
    %v755 = vpop.f32.mrf.mxu0
    %v756 = vadd.f32 0.0, %v755
    %757 = vdwg.mxu0
    %v758 = vld [vmem:[#allocation3] sm:$0xff]
    %v759 = vld [vmem:[#allocation3 + $0x8] sm:$0xff]
    %v760 = vpack.c.bf16 %v756, %v754
    %v761 = vpack.c.bf16 %v677, %v676
    %v763 = vsel %vm602, %v760, 0
    %765 = vmatpush.bf16.msra.mxu0 0
    %766 = vmatpush.bf16.msra.mxu0 0
    %767 = vmatpush.bf16.msra.mxu0 0
    %768 = vmatpush.bf16.msra.mxu0 0
    %769 = vmatpush.bf16.msra.mxu0 0
    %770 = vmatpush.bf16.msra.mxu0 0
    %771 = vmatpush.bf16.msra.mxu0 0
    %772 = vmatpush.bf16.msra.mxu0 %v761
    %773 = vmatmul.bf16.gmra.mxu0 %v763
    %v774 = vpop.f32.mrf.mxu0
    %v775 = vadd.f32 0.0, %v774
    %v776 = vpop.f32.mrf.mxu0
    %v777 = vadd.f32 0.0, %v776
    %778 = vdwg.mxu0
    %v779 = vadd.f32 %v758, %v775
    %v780 = vadd.f32 %v759, %v777
    %781 = vst.msk [vmem:[#allocation3] sm:$0xff] %vm153, %v779
    %782 = vst.msk [vmem:[#allocation3 + $0x8] sm:$0xff] %vm153, %v780
    %783 = vrot.lane.b32.xlu0 %v686, 48
    %v784 = vpop.permute.xlu0 %783
    %785 = vrot.lane.b32.xlu0 %v636, 48
    %v786 = vpop.permute.xlu0 %785
    %v788 = vsel %vm602, %v784, 0
    %v791 = vsel %vm602, %v786, 0
    %793 = vmatpush.bf16.xpose.msra.mxu0 0
    %794 = vmatpush.bf16.xpose.msra.mxu0 0
    %795 = vmatpush.bf16.xpose.msra.mxu0 0
    %796 = vmatpush.bf16.xpose.msra.mxu0 0
    %797 = vmatpush.bf16.xpose.msra.mxu0 0
    %798 = vmatpush.bf16.xpose.msra.mxu0 0
    %799 = vmatpush.bf16.xpose.msra.mxu0 0
    %800 = vmatpush.bf16.xpose.msra.mxu0 %v791
    %801 = vmatmul.bf16.gmra.mxu0 %v788
    %v802 = vpop.f32.mrf.mxu0
    %v803 = vadd.f32 0.0, %v802
    %v804 = vpop.f32.mrf.mxu0
    %v805 = vadd.f32 0.0, %v804
    %806 = vdwg.mxu0
    %v807 = vmul.f32 %v803, 0.25
    %v808 = vmul.f32 %v805, 0.25
    %v809 = vadd.f32 %v807, %v674
    %v810 = vadd.f32 %v808, %v675
    %v811 = vsel %vm602, %v809, -inf
    %812 = vmax.xlane.f32.xlu0 %v811
    %v813 = vpop.xlane.xlu0 %812
    %v814 = vsel %vm602, %v810, -inf
    %815 = vmax.xlane.f32.xlu0 %v814
    %v816 = vpop.xlane.xlu0 %815
    %v817 = vsub.f32 %v809, %v813
    %v818 = vsub.f32 %v810, %v816
    %v819 = vmul.f32 %v817, 1.442695
    %v820 = vpow.pop %v819
    %v821 = vmul.f32 %v818, 1.442695
    %v822 = vpow.pop %v821
    %v823 = vsel %vm602, %v820, 0.0
    %824 = vadd.xlane.f32.xlu0 %v823
    %v825 = vpop.xlane.xlu0 %824
    %v826 = vsel %vm602, %v822, 0.0
    %827 = vadd.xlane.f32.xlu0 %v826
    %v828 = vpop.xlane.xlu0 %827
    %v829 = vrcp.pop %v825
    %v830 = vrcp.pop %v828
    %v831 = vmul.f32 %v820, %v829
    %v832 = vmul.f32 %v822, %v830
    %v833 = vpack.c.bf16 %v832, %v831
    %835 = vrot.lane.b32.xlu0 %v740, 112
    %v836 = vpop.permute.xlu0 %835
    %v839 = vsel %vm602, %v833, 0
    %841 = vmatpush.bf16.msra.mxu0 0
    %842 = vmatpush.bf16.msra.mxu0 0
    %843 = vmatpush.bf16.msra.mxu0 0
    %844 = vmatpush.bf16.msra.mxu0 0
    %845 = vmatpush.bf16.msra.mxu0 0
    %846 = vmatpush.bf16.msra.mxu0 0
    %847 = vmatpush.bf16.msra.mxu0 0
    %848 = vmatpush.bf16.msra.mxu0 %v836
    %849 = vmatmul.bf16.gmra.mxu0 %v839
    %v850 = vpop.f32.mrf.mxu0
    %v851 = vadd.f32 0.0, %v850
    %v852 = vpop.f32.mrf.mxu0
    %v853 = vadd.f32 0.0, %v852
    %854 = vdwg.mxu0
    %v855 = vld [vmem:[#allocation3] sm:$0xff]
    %v856 = vld [vmem:[#allocation3 + $0x8] sm:$0xff]
    %v857 = vpack.c.bf16 %v853, %v851
    %v858 = vpack.c.bf16 %v679, %v678
    %v860 = vsel %vm602, %v857, 0
    %862 = vmatpush.bf16.msra.mxu0 0
    %863 = vmatpush.bf16.msra.mxu0 0
    %864 = vmatpush.bf16.msra.mxu0 0
    %865 = vmatpush.bf16.msra.mxu0 0
    %866 = vmatpush.bf16.msra.mxu0 0
    %867 = vmatpush.bf16.msra.mxu0 0
    %868 = vmatpush.bf16.msra.mxu0 0
    %869 = vmatpush.bf16.msra.mxu0 %v858
    %870 = vmatmul.bf16.gmra.mxu0 %v860
    %v871 = vpop.f32.mrf.mxu0
    %v872 = vadd.f32 0.0, %v871
    %v873 = vpop.f32.mrf.mxu0
    %v874 = vadd.f32 0.0, %v873
    %875 = vdwg.mxu0
    %v876 = vadd.f32 %v855, %v872
    %v877 = vadd.f32 %v856, %v874
    %878 = vst.msk [vmem:[#allocation3] sm:$0xff] %vm153, %v876
    %879 = vst.msk [vmem:[#allocation3 + $0x8] sm:$0xff] %vm153, %v877
    %880 = vrot.lane.b32.xlu0 %v686, 32
    %v881 = vpop.permute.xlu0 %880
    %882 = vrot.lane.b32.xlu0 %v636, 32
    %v883 = vpop.permute.xlu0 %882
    %v885 = vsel %vm602, %v881, 0
    %v888 = vsel %vm602, %v883, 0
    %890 = vmatpush.bf16.xpose.msra.mxu0 0
    %891 = vmatpush.bf16.xpose.msra.mxu0 0
    %892 = vmatpush.bf16.xpose.msra.mxu0 0
    %893 = vmatpush.bf16.xpose.msra.mxu0 0
    %894 = vmatpush.bf16.xpose.msra.mxu0 0
    %895 = vmatpush.bf16.xpose.msra.mxu0 0
    %896 = vmatpush.bf16.xpose.msra.mxu0 0
    %897 = vmatpush.bf16.xpose.msra.mxu0 %v888
    %898 = vmatmul.bf16.gmra.mxu0 %v885
    %v899 = vpop.f32.mrf.mxu0
    %v900 = vadd.f32 0.0, %v899
    %v901 = vpop.f32.mrf.mxu0
    %v902 = vadd.f32 0.0, %v901
    %903 = vdwg.mxu0
    %v904 = vmul.f32 %v900, 0.25
    %v905 = vmul.f32 %v902, 0.25
    %v906 = vadd.f32 %v904, %v674
    %v907 = vadd.f32 %v905, %v675
    %v908 = vsel %vm602, %v906, -inf
    %909 = vmax.xlane.f32.xlu0 %v908
    %v910 = vpop.xlane.xlu0 %909
    %v911 = vsel %vm602, %v907, -inf
    %912 = vmax.xlane.f32.xlu0 %v911
    %v913 = vpop.xlane.xlu0 %912
    %v914 = vsub.f32 %v906, %v910
    %v915 = vsub.f32 %v907, %v913
    %v916 = vmul.f32 %v914, 1.442695
    %v917 = vpow.pop %v916
    %v918 = vmul.f32 %v915, 1.442695
    %v919 = vpow.pop %v918
    %v920 = vsel %vm602, %v917, 0.0
    %921 = vadd.xlane.f32.xlu0 %v920
    %v922 = vpop.xlane.xlu0 %921
    %v923 = vsel %vm602, %v919, 0.0
    %924 = vadd.xlane.f32.xlu0 %v923
    %v925 = vpop.xlane.xlu0 %924
    %v926 = vrcp.pop %v922
    %v927 = vrcp.pop %v925
    %v928 = vmul.f32 %v917, %v926
    %v929 = vmul.f32 %v919, %v927
    %v930 = vpack.c.bf16 %v929, %v928
    %931 = vrot.lane.b32.xlu0 %v740, 96
    %v932 = vpop.permute.xlu0 %931
    %v935 = vsel %vm602, %v930, 0
    %937 = vmatpush.bf16.msra.mxu0 0
    %938 = vmatpush.bf16.msra.mxu0 0
    %939 = vmatpush.bf16.msra.mxu0 0
    %940 = vmatpush.bf16.msra.mxu0 0
    %941 = vmatpush.bf16.msra.mxu0 0
    %942 = vmatpush.bf16.msra.mxu0 0
    %943 = vmatpush.bf16.msra.mxu0 0
    %944 = vmatpush.bf16.msra.mxu0 %v932
    %945 = vmatmul.bf16.gmra.mxu0 %v935
    %v946 = vpop.f32.mrf.mxu0
    %v947 = vadd.f32 0.0, %v946
    %v948 = vpop.f32.mrf.mxu0
    %v949 = vadd.f32 0.0, %v948
    %950 = vdwg.mxu0
    %v951 = vld [vmem:[#allocation3] sm:$0xff]
    %v952 = vld [vmem:[#allocation3 + $0x8] sm:$0xff]
    %v953 = vpack.c.bf16 %v949, %v947
    %v954 = vpack.c.bf16 %v681, %v680
    %v956 = vsel %vm602, %v953, 0
    %958 = vmatpush.bf16.msra.mxu0 0
    %959 = vmatpush.bf16.msra.mxu0 0
    %960 = vmatpush.bf16.msra.mxu0 0
    %961 = vmatpush.bf16.msra.mxu0 0
    %962 = vmatpush.bf16.msra.mxu0 0
    %963 = vmatpush.bf16.msra.mxu0 0
    %964 = vmatpush.bf16.msra.mxu0 0
    %965 = vmatpush.bf16.msra.mxu0 %v954
    %966 = vmatmul.bf16.gmra.mxu0 %v956
    %v967 = vpop.f32.mrf.mxu0
    %v968 = vadd.f32 0.0, %v967
    %v969 = vpop.f32.mrf.mxu0
    %v970 = vadd.f32 0.0, %v969
    %971 = vdwg.mxu0
    %v972 = vadd.f32 %v951, %v968
    %v973 = vadd.f32 %v952, %v970
    %974 = vst.msk [vmem:[#allocation3] sm:$0xff] %vm153, %v972
    %975 = vst.msk [vmem:[#allocation3 + $0x8] sm:$0xff] %vm153, %v973
    %976 = vrot.lane.b32.xlu0 %v686, 16
    %v977 = vpop.permute.xlu0 %976
    %978 = vrot.lane.b32.xlu0 %v636, 16
    %v979 = vpop.permute.xlu0 %978
    %v981 = vsel %vm602, %v977, 0
    %v984 = vsel %vm602, %v979, 0
    %986 = vmatpush.bf16.xpose.msra.mxu0 0
    %987 = vmatpush.bf16.xpose.msra.mxu0 0
    %988 = vmatpush.bf16.xpose.msra.mxu0 0
    %989 = vmatpush.bf16.xpose.msra.mxu0 0
    %990 = vmatpush.bf16.xpose.msra.mxu0 0
    %991 = vmatpush.bf16.xpose.msra.mxu0 0
    %992 = vmatpush.bf16.xpose.msra.mxu0 0
    %993 = vmatpush.bf16.xpose.msra.mxu0 %v984
    %994 = vmatmul.bf16.gmra.mxu0 %v981
    %v995 = vpop.f32.mrf.mxu0
    %v996 = vadd.f32 0.0, %v995
    %v997 = vpop.f32.mrf.mxu0
    %v998 = vadd.f32 0.0, %v997
    %999 = vdwg.mxu0
    %v1000 = vmul.f32 %v996, 0.25
    %v1001 = vmul.f32 %v998, 0.25
    %v1002 = vadd.f32 %v1000, %v674
    %v1003 = vadd.f32 %v1001, %v675
    %v1004 = vsel %vm602, %v1002, -inf
    %1005 = vmax.xlane.f32.xlu0 %v1004
    %v1006 = vpop.xlane.xlu0 %1005
    %v1007 = vsel %vm602, %v1003, -inf
    %1008 = vmax.xlane.f32.xlu0 %v1007
    %v1009 = vpop.xlane.xlu0 %1008
    %v1010 = vsub.f32 %v1002, %v1006
    %v1011 = vsub.f32 %v1003, %v1009
    %v1012 = vmul.f32 %v1010, 1.442695
    %v1013 = vpow.pop %v1012
    %v1014 = vmul.f32 %v1011, 1.442695
    %v1015 = vpow.pop %v1014
    %v1016 = vsel %vm602, %v1013, 0.0
    %1017 = vadd.xlane.f32.xlu0 %v1016
    %v1018 = vpop.xlane.xlu0 %1017
    %v1019 = vsel %vm602, %v1015, 0.0
    %1020 = vadd.xlane.f32.xlu0 %v1019
    %v1021 = vpop.xlane.xlu0 %1020
    %v1022 = vrcp.pop %v1018
    %v1023 = vrcp.pop %v1021
    %v1024 = vmul.f32 %v1013, %v1022
    %v1025 = vmul.f32 %v1015, %v1023
    %v1026 = vpack.c.bf16 %v1025, %v1024
    %1027 = vrot.lane.b32.xlu0 %v740, 80
    %v1028 = vpop.permute.xlu0 %1027
    %v1031 = vsel %vm602, %v1026, 0
    %1033 = vmatpush.bf16.msra.mxu0 0
    %1034 = vmatpush.bf16.msra.mxu0 0
    %1035 = vmatpush.bf16.msra.mxu0 0
    %1036 = vmatpush.bf16.msra.mxu0 0
    %1037 = vmatpush.bf16.msra.mxu0 0
    %1038 = vmatpush.bf16.msra.mxu0 0
    %1039 = vmatpush.bf16.msra.mxu0 0
    %1040 = vmatpush.bf16.msra.mxu0 %v1028
    %1041 = vmatmul.bf16.gmra.mxu0 %v1031
    %v1042 = vpop.f32.mrf.mxu0
    %v1043 = vadd.f32 0.0, %v1042
    %v1044 = vpop.f32.mrf.mxu0
    %v1045 = vadd.f32 0.0, %v1044
    %1046 = vdwg.mxu0
    %v1047 = vld [vmem:[#allocation3] sm:$0xff]
    %v1048 = vld [vmem:[#allocation3 + $0x8] sm:$0xff]
    %v1049 = vpack.c.bf16 %v1045, %v1043
    %v1050 = vpack.c.bf16 %v683, %v682
    %v1052 = vsel %vm602, %v1049, 0
    %1054 = vmatpush.bf16.msra.mxu0 0
    %1055 = vmatpush.bf16.msra.mxu0 0
    %1056 = vmatpush.bf16.msra.mxu0 0
    %1057 = vmatpush.bf16.msra.mxu0 0
    %1058 = vmatpush.bf16.msra.mxu0 0
    %1059 = vmatpush.bf16.msra.mxu0 0
    %1060 = vmatpush.bf16.msra.mxu0 0
    %1061 = vmatpush.bf16.msra.mxu0 %v1050
    %1062 = vmatmul.bf16.gmra.mxu0 %v1052
    %v1063 = vpop.f32.mrf.mxu0
    %v1064 = vadd.f32 0.0, %v1063
    %v1065 = vpop.f32.mrf.mxu0
    %v1066 = vadd.f32 0.0, %v1065
    %1067 = vdwg.mxu0
    %v1068 = vadd.f32 %v1047, %v1064
    %v1069 = vadd.f32 %v1048, %v1066
    %1070 = vst.msk [vmem:[#allocation3] sm:$0xff] %vm153, %v1068
    %1071 = vst.msk [vmem:[#allocation3 + $0x8] sm:$0xff] %vm153, %v1069
    %v1072 = vld [vmem:[#allocation3] sm:$0xff]
    %v1073 = vld [vmem:[#allocation3 + $0x8] sm:$0xff]
    %v1074 = vld [vmem:[%s10] sm:$0x1]
    %v1076 = vperm.slane %v1074, 0
    %v1078 = vadd.f32 %v1072, %v1076
    %v1079 = vadd.f32 %v1073, %v1076
    %v1080 = vadd.f32 %v1078, %v120
    %v1081 = vadd.f32 %v1079, %v121
    %v1082 = vld [vmem:[%s17] sm:$0x1]
    %v1084 = vperm.slane %v1082, 0
    %v1086 = vmul.f32 %v1080, %v1084
    %v1087 = vmul.f32 %v1081, %v1084
    %v1088 = vld [vmem:[%s18] sm:$0x1]
    %v1090 = vperm.slane %v1088, 0
    %v1092 = vadd.f32 %v1086, %v1090
    %v1093 = vadd.f32 %v1087, %v1090
    %v1094 = vadd.f32 %v670, %v1092
    %v1095 = vadd.f32 %v671, %v1093
    %v1096 = vld [vmem:[#allocation8] sm:$0xff]
    %v1097 = vld [vmem:[#allocation8 + $0x8] sm:$0xff]
    %v1098 = vld [vmem:[#allocation8 + $0x10] sm:$0xff]
    %v1099 = vld [vmem:[#allocation8 + $0x18] sm:$0xff]
    %v1100 = vld [vmem:[#allocation8 + $0x20] sm:$0xff]
    %v1101 = vld [vmem:[#allocation8 + $0x28] sm:$0xff]
    %v1102 = vld [vmem:[#allocation8 + $0x30] sm:$0xff]
    %v1103 = vld [vmem:[#allocation8 + $0x38] sm:$0xff]
    %v1104 = vpack.c.bf16 %v1095, %v1094
    %v1105 = vpack.c.bf16 %v1097, %v1096
    %v1106 = vpack.c.bf16 %v1099, %v1098
    %v1107 = vpack.c.bf16 %v1101, %v1100
    %v1108 = vpack.c.bf16 %v1103, %v1102
    %v1109 = vld [vmem:[%s12] sm:$0x1]
    %v1111 = vperm.slane %v1109, 0
    %v1114 = vsel %vm153, %v1104, 0
    %1116 = vmatpush.bf16.msra.mxu0 0
    %1117 = vmatpush.bf16.msra.mxu0 0
    %1118 = vmatpush.bf16.msra.mxu0 0
    %1119 = vmatpush.bf16.msra.mxu0 0
    %1120 = vmatpush.bf16.msra.mxu0 %v1108
    %1121 = vmatpush.bf16.msra.mxu0 %v1107
    %1122 = vmatpush.bf16.msra.mxu0 %v1106
    %1123 = vmatpush.bf16.msra.mxu0 %v1105
    %1124 = vmatmul.bf16.gmra.mxu0 %v1114
    %v1125 = vpop.f32.mrf.mxu0
    %v1126 = vadd.f32 %v1111, %v1125
    %v1127 = vpop.f32.mrf.mxu0
    %v1128 = vadd.f32 %v1111, %v1127
    %1129 = vdwg.mxu0
    %v1130 = vmax.f32 %v1126, 0.0
    %v1131 = vmax.f32 %v1128, 0.0
    %v1132 = vld [vmem:[%s13] sm:$0xff]
    %v1133 = vld [vmem:[%s13 + $0x8] sm:$0xff]
    %v1134 = vld [vmem:[%s13 + $0x10] sm:$0xff]
    %v1135 = vld [vmem:[%s13 + $0x18] sm:$0xff]
    %v1136 = vld [vmem:[%s13 + $0x20] sm:$0xff]
    %v1137 = vld [vmem:[%s13 + $0x28] sm:$0xff]
    %v1138 = vld [vmem:[%s13 + $0x30] sm:$0xff]
    %v1139 = vld [vmem:[%s13 + $0x38] sm:$0xff]
    %v1140 = vld [vmem:[%s13 + $0x40] sm:$0xff]
    %v1141 = vld [vmem:[%s13 + $0x48] sm:$0xff]
    %v1142 = vld [vmem:[%s13 + $0x50] sm:$0xff]
    %v1143 = vld [vmem:[%s13 + $0x58] sm:$0xff]
    %v1144 = vld [vmem:[%s13 + $0x60] sm:$0xff]
    %v1145 = vld [vmem:[%s13 + $0x68] sm:$0xff]
    %v1146 = vld [vmem:[%s13 + $0x70] sm:$0xff]
    %v1147 = vld [vmem:[%s13 + $0x78] sm:$0xff]
    %v1148 = vpack.c.bf16 %v1131, %v1130
    %v1149 = vpack.c.bf16 %v1133, %v1132
    %v1150 = vpack.c.bf16 %v1135, %v1134
    %v1151 = vpack.c.bf16 %v1137, %v1136
    %v1152 = vpack.c.bf16 %v1139, %v1138
    %v1153 = vpack.c.bf16 %v1141, %v1140
    %v1154 = vpack.c.bf16 %v1143, %v1142
    %v1155 = vpack.c.bf16 %v1145, %v1144
    %v1156 = vpack.c.bf16 %v1147, %v1146
    %v1157 = vld [vmem:[%s14] sm:$0x1]
    %v1159 = vperm.slane %v1157, 0
    %1161 = vmatpush.bf16.msra.mxu0 %v1156
    %1162 = vmatpush.bf16.msra.mxu0 %v1155
    %1163 = vmatpush.bf16.msra.mxu0 %v1154
    %1164 = vmatpush.bf16.msra.mxu0 %v1153
    %1165 = vmatpush.bf16.msra.mxu0 %v1152
    %1166 = vmatpush.bf16.msra.mxu0 %v1151
    %1167 = vmatpush.bf16.msra.mxu0 %v1150
    %1168 = vmatpush.bf16.msra.mxu0 %v1149
    %1169 = vmatmul.bf16.gmra.mxu0 %v1148
    %v1170 = vpop.f32.mrf.mxu0
    %v1171 = vadd.f32 %v1159, %v1170
    %v1172 = vpop.f32.mrf.mxu0
    %v1173 = vadd.f32 %v1159, %v1172
    %1174 = vdwg.mxu0
    %v1175 = vadd.f32 %v1094, %v1171
    %v1176 = vadd.f32 %v1095, %v1173
    %v1177 = vld [vmem:[%s19] sm:$0x1]
    %v1179 = vperm.slane %v1177, 0
    %v1181 = vmul.f32 %v1175, %v1179
    %v1182 = vmul.f32 %v1176, %v1179
    %v1183 = vld [vmem:[%s20] sm:$0x1]
    %v1185 = vperm.slane %v1183, 0
    %v1187 = vadd.f32 %v1181, %v1185
    %v1188 = vadd.f32 %v1182, %v1185
    %v1189 = vmax.f32 %v1187, 0.0
    %v1190 = vmax.f32 %v1188, 0.0
    %1191 = vst.msk [vmem:[%s21] sm:$0xff] %vm153, %v1189
    %1192 = vst.msk [vmem:[%s21 + $0x8] sm:$0xff] %vm153, %v1190
    // Predicated region
    $region98: #{gps_conv_net_forward.8} parent=1 // pred_check
      _
    $region99: #{gps_conv_net_forward.8} parent=1 // pred_check_branch
      %1194 = sbr.rel (0) target = $region101
    $region100: #{gps_conv_net_forward.8} parent=1 // pred_region
      _
    $region101: #{gps_conv_net_forward.8} parent=1 // pred_fallthru
      _
    // Predicated region
    $region102: #{gps_conv_net_forward.8} parent=1 // pred_check
      _
    $region103: #{gps_conv_net_forward.8} parent=1 // pred_check_branch
      %1196 = sbr.rel (0) target = $region105
    $region104: #{gps_conv_net_forward.8} parent=1 // pred_region
      _
    $region105: #{gps_conv_net_forward.8} parent=1 // pred_fallthru
      _
    %1197 = vsyncpa [#allocation5], 1
    %1198 = vsyncpa [#allocation7], 1

// kernel: gps_conv_net_forward.6
$region0: #{gps_conv_net_forward.6}
  #allocation0 [shape = 'u32[]', space=smem, size = 0x4, offset = 0x4, fixed_abs, tag = 'smem constant byte address 0x4 - core index']
  #allocation1 [shape = 'u32[72,128]{1,0:T(1,128)}', space=vmem, size = 0x9000, scoped, tag = 'internal scratch']
  #allocation2 [shape = 'f32[16,16]{1,0:T(8,128)}', space=vmem, size = 0x2000, scoped, tag = 'scratch operand']
  #allocation3 [shape = 'f32[16,64]{1,0:T(8,128)}', space=vmem, size = 0x2000, scoped, tag = 'scratch operand']
  %s0 = inlined_call_operand.vmem [shape: f32[16,64], index: 0, kind: input, shape index: {}]
  %s1 = inlined_call_operand.vmem [shape: bf16[16,16], index: 1, kind: input, shape index: {}]
  %s2 = inlined_call_operand.vmem [shape: bf16[16,16], index: 2, kind: input, shape index: {}]
  %s3 = inlined_call_operand.vmem [shape: f32[64,192], index: 3, kind: input, shape index: {}]
  %s4 = inlined_call_operand.vmem [shape: f32[1,192], index: 4, kind: input, shape index: {}]
  %s5 = inlined_call_operand.vmem [shape: f32[64,128], index: 5, kind: input, shape index: {}]
  %s6 = inlined_call_operand.vmem [shape: f32[1,128], index: 6, kind: input, shape index: {}]
  %s7 = inlined_call_operand.vmem [shape: f32[1,64], index: 7, kind: input, shape index: {}]
  %s8 = inlined_call_operand.vmem [shape: f32[1,64], index: 8, kind: input, shape index: {}]
  %s9 = inlined_call_operand.vmem [shape: f32[64,64], index: 9, kind: input, shape index: {}]
  %s10 = inlined_call_operand.vmem [shape: f32[1,64], index: 10, kind: input, shape index: {}]
  %s11 = inlined_call_operand.hbm [shape: f32[64,128], index: 11, kind: input, shape index: {}]
  %s12 = inlined_call_operand.vmem [shape: f32[1,128], index: 12, kind: input, shape index: {}]
  %s13 = inlined_call_operand.vmem [shape: f32[128,64], index: 13, kind: input, shape index: {}]
  %s14 = inlined_call_operand.vmem [shape: f32[1,64], index: 14, kind: input, shape index: {}]
  %s15 = inlined_call_operand.vmem [shape: f32[1,64], index: 15, kind: input, shape index: {}]
  %s16 = inlined_call_operand.vmem [shape: f32[1,64], index: 16, kind: input, shape index: {}]
  %s17 = inlined_call_operand.vmem [shape: f32[1,64], index: 17, kind: input, shape index: {}]
  %s18 = inlined_call_operand.vmem [shape: f32[1,64], index: 18, kind: input, shape index: {}]
  %s19 = inlined_call_operand.vmem [shape: f32[1,64], index: 19, kind: input, shape index: {}]
  %s20 = inlined_call_operand.vmem [shape: f32[1,64], index: 20, kind: input, shape index: {}]
  %s21 = inlined_call_operand.vmem [shape: f32[16,64], index: 21, kind: output, shape index: {}]
  %s22 = sld [smem:[#allocation0]]
  $region98: #{gps_conv_net_forward.6} parent=0
    _
  %s24 = ssub.s32 1, %s22
  %s25 = scalar_select 0, %s24, %s22
  $region1: #{gps_conv_net_forward.6} parent=0
    #allocation4 [shape = 'u8[32768]{0}', space=vmem, size = 0x8000, scoped, tag = 'input window, operand 11, single buffered']
    #allocation5 [shape = 's32[1]{0}', space=sflag, size = 0x4, scoped, tag = 'scoped memory for gps_conv_net_forward.6']
    %26 = vsyncpa [#allocation5], 0
    // Predicated region
    $region2: #{gps_conv_net_forward.6} parent=1 // pred_check
      _
    $region3: #{gps_conv_net_forward.6} parent=1 // pred_check_branch
      %28 = sbr.rel (0) target = $region5
    $region4: #{gps_conv_net_forward.6} parent=1 // pred_region
      _
    $region5: #{gps_conv_net_forward.6} parent=1 // pred_fallthru
      _
    // Predicated region
    $region6: #{gps_conv_net_forward.6} parent=1 // pred_check
      _
    $region7: #{gps_conv_net_forward.6} parent=1 // pred_check_branch
      %30 = sbr.rel (0) target = $region9
    $region8: #{gps_conv_net_forward.6} parent=1 // pred_region
      _
    $region9: #{gps_conv_net_forward.6} parent=1 // pred_fallthru
      _
    // Predicated region
    $region10: #{gps_conv_net_forward.6} parent=1 // pred_check
      _
    $region11: #{gps_conv_net_forward.6} parent=1 // pred_check_branch
      %32 = sbr.rel (0) target = $region13
    $region12: #{gps_conv_net_forward.6} parent=1 // pred_region
      _
    $region13: #{gps_conv_net_forward.6} parent=1 // pred_fallthru
      _
    // Predicated region
    $region14: #{gps_conv_net_forward.6} parent=1 // pred_check
      _
    $region15: #{gps_conv_net_forward.6} parent=1 // pred_check_branch
      %34 = sbr.rel (0) target = $region17
    $region16: #{gps_conv_net_forward.6} parent=1 // pred_region
      _
    $region17: #{gps_conv_net_forward.6} parent=1 // pred_fallthru
      _
    // Predicated region
    $region18: #{gps_conv_net_forward.6} parent=1 // pred_check
      _
    $region19: #{gps_conv_net_forward.6} parent=1 // pred_check_branch
      %36 = sbr.rel (0) target = $region21
    $region20: #{gps_conv_net_forward.6} parent=1 // pred_region
      _
    $region21: #{gps_conv_net_forward.6} parent=1 // pred_fallthru
      _
    // Predicated region
    $region22: #{gps_conv_net_forward.6} parent=1 // pred_check
      _
    $region23: #{gps_conv_net_forward.6} parent=1 // pred_check_branch
      %38 = sbr.rel (0) target = $region25
    $region24: #{gps_conv_net_forward.6} parent=1 // pred_region
      _
    $region25: #{gps_conv_net_forward.6} parent=1 // pred_fallthru
      _
    // Predicated region
    $region26: #{gps_conv_net_forward.6} parent=1 // pred_check
      _
    $region27: #{gps_conv_net_forward.6} parent=1 // pred_check_branch
      %40 = sbr.rel (0) target = $region29
    $region28: #{gps_conv_net_forward.6} parent=1 // pred_region
      _
    $region29: #{gps_conv_net_forward.6} parent=1 // pred_fallthru
      _
    // Predicated region
    $region30: #{gps_conv_net_forward.6} parent=1 // pred_check
      _
    $region31: #{gps_conv_net_forward.6} parent=1 // pred_check_branch
      %42 = sbr.rel (0) target = $region33
    $region32: #{gps_conv_net_forward.6} parent=1 // pred_region
      _
    $region33: #{gps_conv_net_forward.6} parent=1 // pred_fallthru
      _
    // Predicated region
    $region34: #{gps_conv_net_forward.6} parent=1 // pred_check
      _
    $region35: #{gps_conv_net_forward.6} parent=1 // pred_check_branch
      %44 = sbr.rel (0) target = $region37
    $region36: #{gps_conv_net_forward.6} parent=1 // pred_region
      _
    $region37: #{gps_conv_net_forward.6} parent=1 // pred_fallthru
      _
    // Predicated region
    $region38: #{gps_conv_net_forward.6} parent=1 // pred_check
      _
    $region39: #{gps_conv_net_forward.6} parent=1 // pred_check_branch
      %46 = sbr.rel (0) target = $region41
    $region40: #{gps_conv_net_forward.6} parent=1 // pred_region
      _
    $region41: #{gps_conv_net_forward.6} parent=1 // pred_fallthru
      _
    // Predicated region
    $region42: #{gps_conv_net_forward.6} parent=1 // pred_check
      _
    $region43: #{gps_conv_net_forward.6} parent=1 // pred_check_branch
      %48 = sbr.rel (0) target = $region45
    $region44: #{gps_conv_net_forward.6} parent=1 // pred_region
      _
    $region45: #{gps_conv_net_forward.6} parent=1 // pred_fallthru
      _
    // Predicated region
    $region46: #{gps_conv_net_forward.6} parent=1 // pred_check
      _
    $region47: #{gps_conv_net_forward.6} parent=1 // pred_check_branch
      %50 = sbr.rel (0) target = $region49
    $region48: #{gps_conv_net_forward.6} parent=1 // pred_region
      %52 = vsyncadd [#allocation5], 0
      %s53 = sshll.u32 %s11, 4
      %s54 = int_to_ptr.hbm [resolvable:$true] %s53
      %s55 = sshll.u32 [#allocation4], 4
      %s56 = int_to_ptr.vmem [resolvable:$true] %s55
      %61 = dma.hbm_to_vmem [thread:$0]  %s54, 1024, %s56, [#allocation5], 128, 128, 8
    $region49: #{gps_conv_net_forward.6} parent=1 // pred_fallthru
      _
    // Predicated region
    $region50: #{gps_conv_net_forward.6} parent=1 // pred_check
      _
    $region51: #{gps_conv_net_forward.6} parent=1 // pred_check_branch
      %63 = sbr.rel (0) target = $region53
    $region52: #{gps_conv_net_forward.6} parent=1 // pred_region
      _
    $region53: #{gps_conv_net_forward.6} parent=1 // pred_fallthru
      _
    // Predicated region
    $region54: #{gps_conv_net_forward.6} parent=1 // pred_check
      _
    $region55: #{gps_conv_net_forward.6} parent=1 // pred_check_branch
      %65 = sbr.rel (0) target = $region57
    $region56: #{gps_conv_net_forward.6} parent=1 // pred_region
      _
    $region57: #{gps_conv_net_forward.6} parent=1 // pred_fallthru
      _
    // Predicated region
    $region58: #{gps_conv_net_forward.6} parent=1 // pred_check
      _
    $region59: #{gps_conv_net_forward.6} parent=1 // pred_check_branch
      %67 = sbr.rel (0) target = $region61
    $region60: #{gps_conv_net_forward.6} parent=1 // pred_region
      _
    $region61: #{gps_conv_net_forward.6} parent=1 // pred_fallthru
      _
    // Predicated region
    $region62: #{gps_conv_net_forward.6} parent=1 // pred_check
      _
    $region63: #{gps_conv_net_forward.6} parent=1 // pred_check_branch
      %69 = sbr.rel (0) target = $region65
    $region64: #{gps_conv_net_forward.6} parent=1 // pred_region
      _
    $region65: #{gps_conv_net_forward.6} parent=1 // pred_fallthru
      _
    // Predicated region
    $region66: #{gps_conv_net_forward.6} parent=1 // pred_check
      _
    $region67: #{gps_conv_net_forward.6} parent=1 // pred_check_branch
      %71 = sbr.rel (0) target = $region69
    $region68: #{gps_conv_net_forward.6} parent=1 // pred_region
      _
    $region69: #{gps_conv_net_forward.6} parent=1 // pred_fallthru
      _
    // Predicated region
    $region70: #{gps_conv_net_forward.6} parent=1 // pred_check
      _
    $region71: #{gps_conv_net_forward.6} parent=1 // pred_check_branch
      %73 = sbr.rel (0) target = $region73
    $region72: #{gps_conv_net_forward.6} parent=1 // pred_region
      _
    $region73: #{gps_conv_net_forward.6} parent=1 // pred_fallthru
      _
    // Predicated region
    $region74: #{gps_conv_net_forward.6} parent=1 // pred_check
      _
    $region75: #{gps_conv_net_forward.6} parent=1 // pred_check_branch
      %75 = sbr.rel (0) target = $region77
    $region76: #{gps_conv_net_forward.6} parent=1 // pred_region
      _
    $region77: #{gps_conv_net_forward.6} parent=1 // pred_fallthru
      _
    // Predicated region
    $region78: #{gps_conv_net_forward.6} parent=1 // pred_check
      _
    $region79: #{gps_conv_net_forward.6} parent=1 // pred_check_branch
      %77 = sbr.rel (0) target = $region81
    $region80: #{gps_conv_net_forward.6} parent=1 // pred_region
      _
    $region81: #{gps_conv_net_forward.6} parent=1 // pred_fallthru
      _
    // Predicated region
    $region82: #{gps_conv_net_forward.6} parent=1 // pred_check
      _
    $region83: #{gps_conv_net_forward.6} parent=1 // pred_check_branch
      %79 = sbr.rel (0) target = $region85
    $region84: #{gps_conv_net_forward.6} parent=1 // pred_region
      _
    $region85: #{gps_conv_net_forward.6} parent=1 // pred_fallthru
      _
    // Predicated region
    $region86: #{gps_conv_net_forward.6} parent=1 // pred_check
      _
    $region87: #{gps_conv_net_forward.6} parent=1 // pred_check_branch
      %81 = sbr.rel (0) target = $region89
    $region88: #{gps_conv_net_forward.6} parent=1 // pred_region
      %83 = dma.done [#allocation5], 1024
    $region89: #{gps_conv_net_forward.6} parent=1 // pred_fallthru
      _
    %s85 = smul.u32 0, 16
    %v86 = vld [vmem:[%s0] sm:$0xff]
    %v87 = vld [vmem:[%s0 + $0x8] sm:$0xff]
    %s88 = scalar_lea.vmem %s0, %s85
    %v89 = vld [vmem:[%s88] sm:$0xff]
    %v90 = vld [vmem:[%s88 + $0x8] sm:$0xff]
    %v91 = vld [vmem:[%s3] sm:$0xff]
    %v92 = vld [vmem:[%s3 + $0x8] sm:$0xff]
    %v93 = vld [vmem:[%s3 + $0x10] sm:$0xff]
    %v94 = vld [vmem:[%s3 + $0x18] sm:$0xff]
    %v95 = vld [vmem:[%s3 + $0x20] sm:$0xff]
    %v96 = vld [vmem:[%s3 + $0x28] sm:$0xff]
    %v97 = vld [vmem:[%s3 + $0x30] sm:$0xff]
    %v98 = vld [vmem:[%s3 + $0x38] sm:$0xff]
    %v99 = vld [vmem:[%s3 + $0x40] sm:$0xff]
    %v100 = vld [vmem:[%s3 + $0x48] sm:$0xff]
    %v101 = vld [vmem:[%s3 + $0x50] sm:$0xff]
    %v102 = vld [vmem:[%s3 + $0x58] sm:$0xff]
    %v103 = vld [vmem:[%s3 + $0x60] sm:$0xff]
    %v104 = vld [vmem:[%s3 + $0x68] sm:$0xff]
    %v105 = vld [vmem:[%s3 + $0x70] sm:$0xff]
    %v106 = vld [vmem:[%s3 + $0x78] sm:$0xff]
    %v107 = vpack.c.bf16 %v87, %v86
    %v108 = vpack.c.bf16 %v93, %v91
    %v109 = vpack.c.bf16 %v94, %v92
    %v110 = vpack.c.bf16 %v97, %v95
    %v111 = vpack.c.bf16 %v98, %v96
    %v112 = vpack.c.bf16 %v101, %v99
    %v113 = vpack.c.bf16 %v102, %v100
    %v114 = vpack.c.bf16 %v105, %v103
    %v115 = vpack.c.bf16 %v106, %v104
    %v116 = vld [vmem:[%s4] sm:$0x3]
    %v118 = vperm.slane %v116, 0
    %v119 = vperm.slane %v116, 1
    %vm122 = vcmask 523264
    %v124 = vsel %vm122, %v107, 0
    %126 = vmatpush.bf16.msra.mxu0 0
    %127 = vmatpush.bf16.msra.mxu0 0
    %128 = vmatpush.bf16.msra.mxu0 0
    %129 = vmatpush.bf16.msra.mxu0 0
    %130 = vmatpush.bf16.msra.mxu0 %v114
    %131 = vmatpush.bf16.msra.mxu0 %v112
    %132 = vmatpush.bf16.msra.mxu0 %v110
    %133 = vmatpush.bf16.msra.mxu0 %v108
    %134 = vmatmul.bf16.gmra.mxu0 %v124
    %v135 = vpop.f32.mrf.mxu0
    %v136 = vadd.f32 %v118, %v135
    %v137 = vpop.f32.mrf.mxu0
    %v138 = vadd.f32 %v118, %v137
    %139 = vdwg.mxu0
    %140 = vmatpush.bf16.msra.mxu0 0
    %141 = vmatpush.bf16.msra.mxu0 0
    %142 = vmatpush.bf16.msra.mxu0 0
    %143 = vmatpush.bf16.msra.mxu0 0
    %144 = vmatpush.bf16.msra.mxu0 %v115
    %145 = vmatpush.bf16.msra.mxu0 %v113
    %146 = vmatpush.bf16.msra.mxu0 %v111
    %147 = vmatpush.bf16.msra.mxu0 %v109
    %148 = vmatmul.bf16.gmra.mxu0 %v124
    %v149 = vpop.f32.mrf.mxu0
    %v150 = vadd.f32 %v119, %v149
    %v151 = vpop.f32.mrf.mxu0
    %v152 = vadd.f32 %v119, %v151
    %153 = vdwg.mxu0
    %v154 = vld [vmem:[%s5] sm:$0xff]
    %v155 = vld [vmem:[%s5 + $0x8] sm:$0xff]
    %v156 = vld [vmem:[%s5 + $0x10] sm:$0xff]
    %v157 = vld [vmem:[%s5 + $0x18] sm:$0xff]
    %v158 = vld [vmem:[%s5 + $0x20] sm:$0xff]
    %v159 = vld [vmem:[%s5 + $0x28] sm:$0xff]
    %v160 = vld [vmem:[%s5 + $0x30] sm:$0xff]
    %v161 = vld [vmem:[%s5 + $0x38] sm:$0xff]
    %v162 = vpack.c.bf16 %v90, %v89
    %v163 = vpack.c.bf16 %v155, %v154
    %v164 = vpack.c.bf16 %v157, %v156
    %v165 = vpack.c.bf16 %v159, %v158
    %v166 = vpack.c.bf16 %v161, %v160
    %v167 = vld [vmem:[%s6] sm:$0x1]
    %v169 = vperm.slane %v167, 0
    %v172 = vsel %vm122, %v162, 0
    %174 = vmatpush.bf16.msra.mxu0 0
    %175 = vmatpush.bf16.msra.mxu0 0
    %176 = vmatpush.bf16.msra.mxu0 0
    %177 = vmatpush.bf16.msra.mxu0 0
    %178 = vmatpush.bf16.msra.mxu0 %v166
    %179 = vmatpush.bf16.msra.mxu0 %v165
    %180 = vmatpush.bf16.msra.mxu0 %v164
    %181 = vmatpush.bf16.msra.mxu0 %v163
    %182 = vmatmul.bf16.gmra.mxu0 %v172
    %v183 = vpop.f32.mrf.mxu0
    %v184 = vadd.f32 %v169, %v183
    %v185 = vpop.f32.mrf.mxu0
    %v186 = vadd.f32 %v169, %v185
    %187 = vdwg.mxu0
    %v188 = vld [vmem:[%s7] sm:$0x1]
    %v191 = vrot.slane %v184, 1
    %v192 = vrot.slane %v184, 2
    %v193 = vrot.slane %v184, 3
    %v194 = vrot.slane %v184, 4
    %v195 = vrot.slane %v184, 5
    %v196 = vrot.slane %v184, 6
    %v197 = vrot.slane %v184, 7
    %v198 = vrot.slane %v186, 1
    %v199 = vrot.slane %v186, 2
    %v200 = vrot.slane %v186, 3
    %v201 = vrot.slane %v186, 4
    %v202 = vrot.slane %v186, 5
    %v203 = vrot.slane %v186, 6
    %v204 = vrot.slane %v186, 7
    %v205 = vperm.slane %v184, 0
    %v206 = vperm.slane %v191, 0
    %v207 = vperm.slane %v192, 0
    %v208 = vperm.slane %v193, 0
    %v209 = vperm.slane %v194, 0
    %v210 = vperm.slane %v195, 0
    %v211 = vperm.slane %v196, 0
    %v212 = vperm.slane %v197, 0
    %v213 = vperm.slane %v186, 0
    %v214 = vperm.slane %v198, 0
    %v215 = vperm.slane %v199, 0
    %v216 = vperm.slane %v200, 0
    %v217 = vperm.slane %v201, 0
    %v218 = vperm.slane %v202, 0
    %v219 = vperm.slane %v203, 0
    %v220 = vperm.slane %v204, 0
    %v237 = vadd.f32 %v205, %v136
    %v238 = vadd.f32 %v205, %v138
    %v239 = vadd.f32 %v206, %v136
    %v240 = vadd.f32 %v206, %v138
    %v241 = vadd.f32 %v207, %v136
    %v242 = vadd.f32 %v207, %v138
    %v243 = vadd.f32 %v208, %v136
    %v244 = vadd.f32 %v208, %v138
    %v245 = vadd.f32 %v209, %v136
    %v246 = vadd.f32 %v209, %v138
    %v247 = vadd.f32 %v210, %v136
    %v248 = vadd.f32 %v210, %v138
    %v249 = vadd.f32 %v211, %v136
    %v250 = vadd.f32 %v211, %v138
    %v251 = vadd.f32 %v212, %v136
    %v252 = vadd.f32 %v212, %v138
    %v253 = vadd.f32 %v213, %v136
    %v254 = vadd.f32 %v213, %v138
    %v255 = vadd.f32 %v214, %v136
    %v256 = vadd.f32 %v214, %v138
    %v257 = vadd.f32 %v215, %v136
    %v258 = vadd.f32 %v215, %v138
    %v259 = vadd.f32 %v216, %v136
    %v260 = vadd.f32 %v216, %v138
    %v261 = vadd.f32 %v217, %v136
    %v262 = vadd.f32 %v217, %v138
    %v263 = vadd.f32 %v218, %v136
    %v264 = vadd.f32 %v218, %v138
    %v265 = vadd.f32 %v219, %v136
    %v266 = vadd.f32 %v219, %v138
    %v267 = vadd.f32 %v220, %v136
    %v268 = vadd.f32 %v220, %v138
    %v269 = vmul.f32 %v237, 0.2
    %v270 = vmul.f32 %v238, 0.2
    %v271 = vmul.f32 %v239, 0.2
    %v272 = vmul.f32 %v240, 0.2
    %v273 = vmul.f32 %v241, 0.2
    %v274 = vmul.f32 %v242, 0.2
    %v275 = vmul.f32 %v243, 0.2
    %v276 = vmul.f32 %v244, 0.2
    %v277 = vmul.f32 %v245, 0.2
    %v278 = vmul.f32 %v246, 0.2
    %v279 = vmul.f32 %v247, 0.2
    %v280 = vmul.f32 %v248, 0.2
    %v281 = vmul.f32 %v249, 0.2
    %v282 = vmul.f32 %v250, 0.2
    %v283 = vmul.f32 %v251, 0.2
    %v284 = vmul.f32 %v252, 0.2
    %v285 = vmul.f32 %v253, 0.2
    %v286 = vmul.f32 %v254, 0.2
    %v287 = vmul.f32 %v255, 0.2
    %v288 = vmul.f32 %v256, 0.2
    %v289 = vmul.f32 %v257, 0.2
    %v290 = vmul.f32 %v258, 0.2
    %v291 = vmul.f32 %v259, 0.2
    %v292 = vmul.f32 %v260, 0.2
    %v293 = vmul.f32 %v261, 0.2
    %v294 = vmul.f32 %v262, 0.2
    %v295 = vmul.f32 %v263, 0.2
    %v296 = vmul.f32 %v264, 0.2
    %v297 = vmul.f32 %v265, 0.2
    %v298 = vmul.f32 %v266, 0.2
    %v299 = vmul.f32 %v267, 0.2
    %v300 = vmul.f32 %v268, 0.2
    %v301 = vmax.f32 %v237, %v269
    %v302 = vmax.f32 %v238, %v270
    %v303 = vmax.f32 %v239, %v271
    %v304 = vmax.f32 %v240, %v272
    %v305 = vmax.f32 %v241, %v273
    %v306 = vmax.f32 %v242, %v274
    %v307 = vmax.f32 %v243, %v275
    %v308 = vmax.f32 %v244, %v276
    %v309 = vmax.f32 %v245, %v277
    %v310 = vmax.f32 %v246, %v278
    %v311 = vmax.f32 %v247, %v279
    %v312 = vmax.f32 %v248, %v280
    %v313 = vmax.f32 %v249, %v281
    %v314 = vmax.f32 %v250, %v282
    %v315 = vmax.f32 %v251, %v283
    %v316 = vmax.f32 %v252, %v284
    %v317 = vmax.f32 %v253, %v285
    %v318 = vmax.f32 %v254, %v286
    %v319 = vmax.f32 %v255, %v287
    %v320 = vmax.f32 %v256, %v288
    %v321 = vmax.f32 %v257, %v289
    %v322 = vmax.f32 %v258, %v290
    %v323 = vmax.f32 %v259, %v291
    %v324 = vmax.f32 %v260, %v292
    %v325 = vmax.f32 %v261, %v293
    %v326 = vmax.f32 %v262, %v294
    %v327 = vmax.f32 %v263, %v295
    %v328 = vmax.f32 %v264, %v296
    %v329 = vmax.f32 %v265, %v297
    %v330 = vmax.f32 %v266, %v298
    %v331 = vmax.f32 %v267, %v299
    %v332 = vmax.f32 %v268, %v300
    %v334 = vperm.slane %v188, 0
    %v336 = vmul.f32 %v301, %v334
    %v337 = vmul.f32 %v302, %v334
    %v338 = vmul.f32 %v303, %v334
    %v339 = vmul.f32 %v304, %v334
    %v340 = vmul.f32 %v305, %v334
    %v341 = vmul.f32 %v306, %v334
    %v342 = vmul.f32 %v307, %v334
    %v343 = vmul.f32 %v308, %v334
    %v344 = vmul.f32 %v309, %v334
    %v345 = vmul.f32 %v310, %v334
    %v346 = vmul.f32 %v311, %v334
    %v347 = vmul.f32 %v312, %v334
    %v348 = vmul.f32 %v313, %v334
    %v349 = vmul.f32 %v314, %v334
    %v350 = vmul.f32 %v315, %v334
    %v351 = vmul.f32 %v316, %v334
    %v352 = vmul.f32 %v317, %v334
    %v353 = vmul.f32 %v318, %v334
    %v354 = vmul.f32 %v319, %v334
    %v355 = vmul.f32 %v320, %v334
    %v356 = vmul.f32 %v321, %v334
    %v357 = vmul.f32 %v322, %v334
    %v358 = vmul.f32 %v323, %v334
    %v359 = vmul.f32 %v324, %v334
    %v360 = vmul.f32 %v325, %v334
    %v361 = vmul.f32 %v326, %v334
    %v362 = vmul.f32 %v327, %v334
    %v363 = vmul.f32 %v328, %v334
    %v364 = vmul.f32 %v329, %v334
    %v365 = vmul.f32 %v330, %v334
    %v366 = vmul.f32 %v331, %v334
    %v367 = vmul.f32 %v332, %v334
    %v368 = vsel %vm122, %v336, 0.0
    %369 = vadd.xlane.f32.xlu0 %v368
    %v370 = vpop.xlane.xlu0 %369
    %v371 = vsel %vm122, %v337, 0.0
    %372 = vadd.xlane.f32.xlu0 %v371
    %v373 = vpop.xlane.xlu0 %372
    %v374 = vsel %vm122, %v338, 0.0
    %375 = vadd.xlane.f32.xlu0 %v374
    %v376 = vpop.xlane.xlu0 %375
    %v377 = vsel %vm122, %v339, 0.0
    %378 = vadd.xlane.f32.xlu0 %v377
    %v379 = vpop.xlane.xlu0 %378
    %v380 = vsel %vm122, %v340, 0.0
    %381 = vadd.xlane.f32.xlu0 %v380
    %v382 = vpop.xlane.xlu0 %381
    %v383 = vsel %vm122, %v341, 0.0
    %384 = vadd.xlane.f32.xlu0 %v383
    %v385 = vpop.xlane.xlu0 %384
    %v386 = vsel %vm122, %v342, 0.0
    %387 = vadd.xlane.f32.xlu0 %v386
    %v388 = vpop.xlane.xlu0 %387
    %v389 = vsel %vm122, %v343, 0.0
    %390 = vadd.xlane.f32.xlu0 %v389
    %v391 = vpop.xlane.xlu0 %390
    %v392 = vsel %vm122, %v344, 0.0
    %393 = vadd.xlane.f32.xlu0 %v392
    %v394 = vpop.xlane.xlu0 %393
    %v395 = vsel %vm122, %v345, 0.0
    %396 = vadd.xlane.f32.xlu0 %v395
    %v397 = vpop.xlane.xlu0 %396
    %v398 = vsel %vm122, %v346, 0.0
    %399 = vadd.xlane.f32.xlu0 %v398
    %v400 = vpop.xlane.xlu0 %399
    %v401 = vsel %vm122, %v347, 0.0
    %402 = vadd.xlane.f32.xlu0 %v401
    %v403 = vpop.xlane.xlu0 %402
    %v404 = vsel %vm122, %v348, 0.0
    %405 = vadd.xlane.f32.xlu0 %v404
    %v406 = vpop.xlane.xlu0 %405
    %v407 = vsel %vm122, %v349, 0.0
    %408 = vadd.xlane.f32.xlu0 %v407
    %v409 = vpop.xlane.xlu0 %408
    %v410 = vsel %vm122, %v350, 0.0
    %411 = vadd.xlane.f32.xlu0 %v410
    %v412 = vpop.xlane.xlu0 %411
    %v413 = vsel %vm122, %v351, 0.0
    %414 = vadd.xlane.f32.xlu0 %v413
    %v415 = vpop.xlane.xlu0 %414
    %v416 = vsel %vm122, %v352, 0.0
    %417 = vadd.xlane.f32.xlu0 %v416
    %v418 = vpop.xlane.xlu0 %417
    %v419 = vsel %vm122, %v353, 0.0
    %420 = vadd.xlane.f32.xlu0 %v419
    %v421 = vpop.xlane.xlu0 %420
    %v422 = vsel %vm122, %v354, 0.0
    %423 = vadd.xlane.f32.xlu0 %v422
    %v424 = vpop.xlane.xlu0 %423
    %v425 = vsel %vm122, %v355, 0.0
    %426 = vadd.xlane.f32.xlu0 %v425
    %v427 = vpop.xlane.xlu0 %426
    %v428 = vsel %vm122, %v356, 0.0
    %429 = vadd.xlane.f32.xlu0 %v428
    %v430 = vpop.xlane.xlu0 %429
    %v431 = vsel %vm122, %v357, 0.0
    %432 = vadd.xlane.f32.xlu0 %v431
    %v433 = vpop.xlane.xlu0 %432
    %v434 = vsel %vm122, %v358, 0.0
    %435 = vadd.xlane.f32.xlu0 %v434
    %v436 = vpop.xlane.xlu0 %435
    %v437 = vsel %vm122, %v359, 0.0
    %438 = vadd.xlane.f32.xlu0 %v437
    %v439 = vpop.xlane.xlu0 %438
    %v440 = vsel %vm122, %v360, 0.0
    %441 = vadd.xlane.f32.xlu0 %v440
    %v442 = vpop.xlane.xlu0 %441
    %v443 = vsel %vm122, %v361, 0.0
    %444 = vadd.xlane.f32.xlu0 %v443
    %v445 = vpop.xlane.xlu0 %444
    %v446 = vsel %vm122, %v362, 0.0
    %447 = vadd.xlane.f32.xlu0 %v446
    %v448 = vpop.xlane.xlu0 %447
    %v449 = vsel %vm122, %v363, 0.0
    %450 = vadd.xlane.f32.xlu0 %v449
    %v451 = vpop.xlane.xlu0 %450
    %v452 = vsel %vm122, %v364, 0.0
    %453 = vadd.xlane.f32.xlu0 %v452
    %v454 = vpop.xlane.xlu0 %453
    %v455 = vsel %vm122, %v365, 0.0
    %456 = vadd.xlane.f32.xlu0 %v455
    %v457 = vpop.xlane.xlu0 %456
    %v458 = vsel %vm122, %v366, 0.0
    %459 = vadd.xlane.f32.xlu0 %v458
    %v460 = vpop.xlane.xlu0 %459
    %v461 = vsel %vm122, %v367, 0.0
    %462 = vadd.xlane.f32.xlu0 %v461
    %v463 = vpop.xlane.xlu0 %462
    %v496 = vlaneseq
    %v497 = vand.u32 %v496, 127
    %v498 = vperm.slane %v370, %v497
    %v499 = vadd.s32 %v497, 4294967288
    %v500 = vperm.slane %v373, %v499
    %vm501 = vcmask 130112
    %v502 = vsel %vm501, %v500, %v498
    %v503 = vperm.slane %v376, %v497
    %v504 = vperm.slane %v379, %v499
    %v505 = vsel %vm501, %v504, %v503
    %v506 = vperm.slane %v382, %v497
    %v507 = vperm.slane %v385, %v499
    %v508 = vsel %vm501, %v507, %v506
    %v509 = vperm.slane %v388, %v497
    %v510 = vperm.slane %v391, %v499
    %v511 = vsel %vm501, %v510, %v509
    %v512 = vperm.slane %v394, %v497
    %v513 = vperm.slane %v397, %v499
    %v514 = vsel %vm501, %v513, %v512
    %v515 = vperm.slane %v400, %v497
    %v516 = vperm.slane %v403, %v499
    %v517 = vsel %vm501, %v516, %v515
    %v518 = vperm.slane %v406, %v497
    %v519 = vperm.slane %v409, %v499
    %v520 = vsel %vm501, %v519, %v518
    %v521 = vperm.slane %v412, %v497
    %v522 = vperm.slane %v415, %v499
    %v523 = vsel %vm501, %v522, %v521
    %v524 = vperm.slane %v418, %v497
    %v525 = vperm.slane %v421, %v499
    %v526 = vsel %vm501, %v525, %v524
    %v527 = vperm.slane %v424, %v497
    %v528 = vperm.slane %v427, %v499
    %v529 = vsel %vm501, %v528, %v527
    %v530 = vperm.slane %v430, %v497
    %v531 = vperm.slane %v433, %v499
    %v532 = vsel %vm501, %v531, %v530
    %v533 = vperm.slane %v436, %v497
    %v534 = vperm.slane %v439, %v499
    %v535 = vsel %vm501, %v534, %v533
    %v536 = vperm.slane %v442, %v497
    %v537 = vperm.slane %v445, %v499
    %v538 = vsel %vm501, %v537, %v536
    %v539 = vperm.slane %v448, %v497
    %v540 = vperm.slane %v451, %v499
    %v541 = vsel %vm501, %v540, %v539
    %v542 = vperm.slane %v454, %v497
    %v543 = vperm.slane %v457, %v499
    %v544 = vsel %vm501, %v543, %v542
    %v545 = vperm.slane %v460, %v497
    %v546 = vperm.slane %v463, %v499
    %v547 = vsel %vm501, %v546, %v545
    %vm548 = vcmask 1041409
    %v549 = vsel %vm548, %v505, %v502
    %vm550 = vcmask 1042434
    %v551 = vsel %vm550, %v508, %v549
    %vm552 = vcmask 1043459
    %v553 = vsel %vm552, %v511, %v551
    %vm554 = vcmask 1044484
    %v555 = vsel %vm554, %v514, %v553
    %vm556 = vcmask 1045509
    %v557 = vsel %vm556, %v517, %v555
    %vm558 = vcmask 1046534
    %v559 = vsel %vm558, %v520, %v557
    %vm560 = vcmask 1047559
    %v561 = vsel %vm560, %v523, %v559
    %v562 = vsel %vm548, %v529, %v526
    %v563 = vsel %vm550, %v532, %v562
    %v564 = vsel %vm552, %v535, %v563
    %v565 = vsel %vm554, %v538, %v564
    %v566 = vsel %vm556, %v541, %v565
    %v567 = vsel %vm558, %v544, %v566
    %v568 = vsel %vm560, %v547, %v567
    %vm571 = vcmask 130048
    %572 = vst.msk [vmem:[#allocation2] sm:$0xff] %vm571, %v561
    %573 = vst.msk [vmem:[#allocation2 + $0x8] sm:$0xff] %vm571, %v568
    %v574 = vld [vmem:[#allocation2] sm:$0xff]
    %v575 = vld [vmem:[#allocation2 + $0x8] sm:$0xff]
    %v576 = vld [vmem:[%s1] sm:$0xf]
    %v577 = vld [vmem:[%s1 + $0x4] sm:$0xf]
    %v578 = vunpack.c.l.bf16 %v576
    %v579 = vunpack.c.l.bf16 %v577
    %v580 = vadd.f32 %v574, %v578
    %v581 = vadd.f32 %v575, %v579
    %v582 = vsel %vm571, %v580, -inf
    %583 = vmax.xlane.f32.xlu0 %v582
    %v584 = vpop.xlane.xlu0 %583
    %v585 = vsel %vm571, %v581, -inf
    %586 = vmax.xlane.f32.xlu0 %v585
    %v587 = vpop.xlane.xlu0 %586
    %v588 = vsub.f32 %v580, %v584
    %v589 = vsub.f32 %v581, %v587
    %v590 = vmul.f32 %v588, 1.442695
    %v591 = vpow.pop %v590
    %v592 = vmul.f32 %v589, 1.442695
    %v593 = vpow.pop %v592
    %v594 = vsel %vm571, %v591, 0.0
    %595 = vadd.xlane.f32.xlu0 %v594
    %v596 = vpop.xlane.xlu0 %595
    %v597 = vsel %vm571, %v593, 0.0
    %598 = vadd.xlane.f32.xlu0 %v597
    %v599 = vpop.xlane.xlu0 %598
    %v600 = vrcp.pop %v596
    %v601 = vrcp.pop %v599
    %v602 = vmul.f32 %v591, %v600
    %v603 = vmul.f32 %v593, %v601
    %v604 = vpack.c.bf16 %v603, %v602
    %v605 = vpack.c.bf16 %v138, %v136
    %v606 = vld [vmem:[%s8] sm:$0x1]
    %v608 = vperm.slane %v606, 0
    %v611 = vsel %vm571, %v604, 0
    %613 = vmatpush.bf16.msra.mxu0 0
    %614 = vmatpush.bf16.msra.mxu0 0
    %615 = vmatpush.bf16.msra.mxu0 0
    %616 = vmatpush.bf16.msra.mxu0 0
    %617 = vmatpush.bf16.msra.mxu0 0
    %618 = vmatpush.bf16.msra.mxu0 0
    %619 = vmatpush.bf16.msra.mxu0 0
    %620 = vmatpush.bf16.msra.mxu0 %v605
    %621 = vmatmul.bf16.gmra.mxu0 %v611
    %v622 = vpop.f32.mrf.mxu0
    %v623 = vadd.f32 %v608, %v622
    %v624 = vpop.f32.mrf.mxu0
    %v625 = vadd.f32 %v608, %v624
    %626 = vdwg.mxu0
    %v627 = vadd.f32 %v623, %v89
    %v628 = vadd.f32 %v625, %v90
    %v629 = vld [vmem:[%s15] sm:$0x1]
    %v631 = vperm.slane %v629, 0
    %v633 = vmul.f32 %v627, %v631
    %v634 = vmul.f32 %v628, %v631
    %v635 = vld [vmem:[%s16] sm:$0x1]
    %v637 = vperm.slane %v635, 0
    %v639 = vadd.f32 %v633, %v637
    %v640 = vadd.f32 %v634, %v637
    %v641 = vld [vmem:[%s2] sm:$0xf]
    %v642 = vld [vmem:[%s2 + $0x4] sm:$0xf]
    %v643 = vunpack.c.l.bf16 %v641
    %v644 = vunpack.c.l.bf16 %v642
    %v645 = vld [vmem:[%s9] sm:$0xff]
    %v646 = vld [vmem:[%s9 + $0x8] sm:$0xff]
    %v647 = vld [vmem:[%s9 + $0x10] sm:$0xff]
    %v648 = vld [vmem:[%s9 + $0x18] sm:$0xff]
    %v649 = vld [vmem:[%s9 + $0x20] sm:$0xff]
    %v650 = vld [vmem:[%s9 + $0x28] sm:$0xff]
    %v651 = vld [vmem:[%s9 + $0x30] sm:$0xff]
    %v652 = vld [vmem:[%s9 + $0x38] sm:$0xff]
    %653 = vst.msk [vmem:[#allocation3] sm:$0xff] %vm122, 0.0
    %654 = vst.msk [vmem:[#allocation3 + $0x8] sm:$0xff] %vm122, 0.0
    %v655 = vpack.c.bf16 %v186, %v184
    %657 = vrot.lane.b32.xlu0 %v655, 64
    %v658 = vpop.permute.xlu0 %657
    %660 = vrot.lane.b32.xlu0 %v605, 64
    %v661 = vpop.permute.xlu0 %660
    %v663 = vsel %vm571, %v658, 0
    %v666 = vsel %vm571, %v661, 0
    %668 = vmatpush.bf16.xpose.msra.mxu0 0
    %669 = vmatpush.bf16.xpose.msra.mxu0 0
    %670 = vmatpush.bf16.xpose.msra.mxu0 0
    %671 = vmatpush.bf16.xpose.msra.mxu0 0
    %672 = vmatpush.bf16.xpose.msra.mxu0 0
    %673 = vmatpush.bf16.xpose.msra.mxu0 0
    %674 = vmatpush.bf16.xpose.msra.mxu0 0
    %675 = vmatpush.bf16.xpose.msra.mxu0 %v666
    %676 = vmatmul.bf16.gmra.mxu0 %v663
    %v677 = vpop.f32.mrf.mxu0
    %v678 = vadd.f32 0.0, %v677
    %v679 = vpop.f32.mrf.mxu0
    %v680 = vadd.f32 0.0, %v679
    %681 = vdwg.mxu0
    %v682 = vmul.f32 %v678, 0.25
    %v683 = vmul.f32 %v680, 0.25
    %v684 = vadd.f32 %v682, %v643
    %v685 = vadd.f32 %v683, %v644
    %v686 = vsel %vm571, %v684, -inf
    %687 = vmax.xlane.f32.xlu0 %v686
    %v688 = vpop.xlane.xlu0 %687
    %v689 = vsel %vm571, %v685, -inf
    %690 = vmax.xlane.f32.xlu0 %v689
    %v691 = vpop.xlane.xlu0 %690
    %v692 = vsub.f32 %v684, %v688
    %v693 = vsub.f32 %v685, %v691
    %v694 = vmul.f32 %v692, 1.442695
    %v695 = vpow.pop %v694
    %v696 = vmul.f32 %v693, 1.442695
    %v697 = vpow.pop %v696
    %v698 = vsel %vm571, %v695, 0.0
    %699 = vadd.xlane.f32.xlu0 %v698
    %v700 = vpop.xlane.xlu0 %699
    %v701 = vsel %vm571, %v697, 0.0
    %702 = vadd.xlane.f32.xlu0 %v701
    %v703 = vpop.xlane.xlu0 %702
    %v704 = vrcp.pop %v700
    %v705 = vrcp.pop %v703
    %v706 = vmul.f32 %v695, %v704
    %v707 = vmul.f32 %v697, %v705
    %v708 = vpack.c.bf16 %v707, %v706
    %v709 = vpack.c.bf16 %v152, %v150
    %v711 = vsel %vm571, %v708, 0
    %713 = vmatpush.bf16.msra.mxu0 0
    %714 = vmatpush.bf16.msra.mxu0 0
    %715 = vmatpush.bf16.msra.mxu0 0
    %716 = vmatpush.bf16.msra.mxu0 0
    %717 = vmatpush.bf16.msra.mxu0 0
    %718 = vmatpush.bf16.msra.mxu0 0
    %719 = vmatpush.bf16.msra.mxu0 0
    %720 = vmatpush.bf16.msra.mxu0 %v709
    %721 = vmatmul.bf16.gmra.mxu0 %v711
    %v722 = vpop.f32.mrf.mxu0
    %v723 = vadd.f32 0.0, %v722
    %v724 = vpop.f32.mrf.mxu0
    %v725 = vadd.f32 0.0, %v724
    %726 = vdwg.mxu0
    %v727 = vld [vmem:[#allocation3] sm:$0xff]
    %v728 = vld [vmem:[#allocation3 + $0x8] sm:$0xff]
    %v729 = vpack.c.bf16 %v725, %v723
    %v730 = vpack.c.bf16 %v646, %v645
    %v732 = vsel %vm571, %v729, 0
    %734 = vmatpush.bf16.msra.mxu0 0
    %735 = vmatpush.bf16.msra.mxu0 0
    %736 = vmatpush.bf16.msra.mxu0 0
    %737 = vmatpush.bf16.msra.mxu0 0
    %738 = vmatpush.bf16.msra.mxu0 0
    %739 = vmatpush.bf16.msra.mxu0 0
    %740 = vmatpush.bf16.msra.mxu0 0
    %741 = vmatpush.bf16.msra.mxu0 %v730
    %742 = vmatmul.bf16.gmra.mxu0 %v732
    %v743 = vpop.f32.mrf.mxu0
    %v744 = vadd.f32 0.0, %v743
    %v745 = vpop.f32.mrf.mxu0
    %v746 = vadd.f32 0.0, %v745
    %747 = vdwg.mxu0
    %v748 = vadd.f32 %v727, %v744
    %v749 = vadd.f32 %v728, %v746
    %750 = vst.msk [vmem:[#allocation3] sm:$0xff] %vm122, %v748
    %751 = vst.msk [vmem:[#allocation3 + $0x8] sm:$0xff] %vm122, %v749
    %752 = vrot.lane.b32.xlu0 %v655, 48
    %v753 = vpop.permute.xlu0 %752
    %754 = vrot.lane.b32.xlu0 %v605, 48
    %v755 = vpop.permute.xlu0 %754
    %v757 = vsel %vm571, %v753, 0
    %v760 = vsel %vm571, %v755, 0
    %762 = vmatpush.bf16.xpose.msra.mxu0 0
    %763 = vmatpush.bf16.xpose.msra.mxu0 0
    %764 = vmatpush.bf16.xpose.msra.mxu0 0
    %765 = vmatpush.bf16.xpose.msra.mxu0 0
    %766 = vmatpush.bf16.xpose.msra.mxu0 0
    %767 = vmatpush.bf16.xpose.msra.mxu0 0
    %768 = vmatpush.bf16.xpose.msra.mxu0 0
    %769 = vmatpush.bf16.xpose.msra.mxu0 %v760
    %770 = vmatmul.bf16.gmra.mxu0 %v757
    %v771 = vpop.f32.mrf.mxu0
    %v772 = vadd.f32 0.0, %v771
    %v773 = vpop.f32.mrf.mxu0
    %v774 = vadd.f32 0.0, %v773
    %775 = vdwg.mxu0
    %v776 = vmul.f32 %v772, 0.25
    %v777 = vmul.f32 %v774, 0.25
    %v778 = vadd.f32 %v776, %v643
    %v779 = vadd.f32 %v777, %v644
    %v780 = vsel %vm571, %v778, -inf
    %781 = vmax.xlane.f32.xlu0 %v780
    %v782 = vpop.xlane.xlu0 %781
    %v783 = vsel %vm571, %v779, -inf
    %784 = vmax.xlane.f32.xlu0 %v783
    %v785 = vpop.xlane.xlu0 %784
    %v786 = vsub.f32 %v778, %v782
    %v787 = vsub.f32 %v779, %v785
    %v788 = vmul.f32 %v786, 1.442695
    %v789 = vpow.pop %v788
    %v790 = vmul.f32 %v787, 1.442695
    %v791 = vpow.pop %v790
    %v792 = vsel %vm571, %v789, 0.0
    %793 = vadd.xlane.f32.xlu0 %v792
    %v794 = vpop.xlane.xlu0 %793
    %v795 = vsel %vm571, %v791, 0.0
    %796 = vadd.xlane.f32.xlu0 %v795
    %v797 = vpop.xlane.xlu0 %796
    %v798 = vrcp.pop %v794
    %v799 = vrcp.pop %v797
    %v800 = vmul.f32 %v789, %v798
    %v801 = vmul.f32 %v791, %v799
    %v802 = vpack.c.bf16 %v801, %v800
    %804 = vrot.lane.b32.xlu0 %v709, 112
    %v805 = vpop.permute.xlu0 %804
    %v808 = vsel %vm571, %v802, 0
    %810 = vmatpush.bf16.msra.mxu0 0
    %811 = vmatpush.bf16.msra.mxu0 0
    %812 = vmatpush.bf16.msra.mxu0 0
    %813 = vmatpush.bf16.msra.mxu0 0
    %814 = vmatpush.bf16.msra.mxu0 0
    %815 = vmatpush.bf16.msra.mxu0 0
    %816 = vmatpush.bf16.msra.mxu0 0
    %817 = vmatpush.bf16.msra.mxu0 %v805
    %818 = vmatmul.bf16.gmra.mxu0 %v808
    %v819 = vpop.f32.mrf.mxu0
    %v820 = vadd.f32 0.0, %v819
    %v821 = vpop.f32.mrf.mxu0
    %v822 = vadd.f32 0.0, %v821
    %823 = vdwg.mxu0
    %v824 = vld [vmem:[#allocation3] sm:$0xff]
    %v825 = vld [vmem:[#allocation3 + $0x8] sm:$0xff]
    %v826 = vpack.c.bf16 %v822, %v820
    %v827 = vpack.c.bf16 %v648, %v647
    %v829 = vsel %vm571, %v826, 0
    %831 = vmatpush.bf16.msra.mxu0 0
    %832 = vmatpush.bf16.msra.mxu0 0
    %833 = vmatpush.bf16.msra.mxu0 0
    %834 = vmatpush.bf16.msra.mxu0 0
    %835 = vmatpush.bf16.msra.mxu0 0
    %836 = vmatpush.bf16.msra.mxu0 0
    %837 = vmatpush.bf16.msra.mxu0 0
    %838 = vmatpush.bf16.msra.mxu0 %v827
    %839 = vmatmul.bf16.gmra.mxu0 %v829
    %v840 = vpop.f32.mrf.mxu0
    %v841 = vadd.f32 0.0, %v840
    %v842 = vpop.f32.mrf.mxu0
    %v843 = vadd.f32 0.0, %v842
    %844 = vdwg.mxu0
    %v845 = vadd.f32 %v824, %v841
    %v846 = vadd.f32 %v825, %v843
    %847 = vst.msk [vmem:[#allocation3] sm:$0xff] %vm122, %v845
    %848 = vst.msk [vmem:[#allocation3 + $0x8] sm:$0xff] %vm122, %v846
    %849 = vrot.lane.b32.xlu0 %v655, 32
    %v850 = vpop.permute.xlu0 %849
    %851 = vrot.lane.b32.xlu0 %v605, 32
    %v852 = vpop.permute.xlu0 %851
    %v854 = vsel %vm571, %v850, 0
    %v857 = vsel %vm571, %v852, 0
    %859 = vmatpush.bf16.xpose.msra.mxu0 0
    %860 = vmatpush.bf16.xpose.msra.mxu0 0
    %861 = vmatpush.bf16.xpose.msra.mxu0 0
    %862 = vmatpush.bf16.xpose.msra.mxu0 0
    %863 = vmatpush.bf16.xpose.msra.mxu0 0
    %864 = vmatpush.bf16.xpose.msra.mxu0 0
    %865 = vmatpush.bf16.xpose.msra.mxu0 0
    %866 = vmatpush.bf16.xpose.msra.mxu0 %v857
    %867 = vmatmul.bf16.gmra.mxu0 %v854
    %v868 = vpop.f32.mrf.mxu0
    %v869 = vadd.f32 0.0, %v868
    %v870 = vpop.f32.mrf.mxu0
    %v871 = vadd.f32 0.0, %v870
    %872 = vdwg.mxu0
    %v873 = vmul.f32 %v869, 0.25
    %v874 = vmul.f32 %v871, 0.25
    %v875 = vadd.f32 %v873, %v643
    %v876 = vadd.f32 %v874, %v644
    %v877 = vsel %vm571, %v875, -inf
    %878 = vmax.xlane.f32.xlu0 %v877
    %v879 = vpop.xlane.xlu0 %878
    %v880 = vsel %vm571, %v876, -inf
    %881 = vmax.xlane.f32.xlu0 %v880
    %v882 = vpop.xlane.xlu0 %881
    %v883 = vsub.f32 %v875, %v879
    %v884 = vsub.f32 %v876, %v882
    %v885 = vmul.f32 %v883, 1.442695
    %v886 = vpow.pop %v885
    %v887 = vmul.f32 %v884, 1.442695
    %v888 = vpow.pop %v887
    %v889 = vsel %vm571, %v886, 0.0
    %890 = vadd.xlane.f32.xlu0 %v889
    %v891 = vpop.xlane.xlu0 %890
    %v892 = vsel %vm571, %v888, 0.0
    %893 = vadd.xlane.f32.xlu0 %v892
    %v894 = vpop.xlane.xlu0 %893
    %v895 = vrcp.pop %v891
    %v896 = vrcp.pop %v894
    %v897 = vmul.f32 %v886, %v895
    %v898 = vmul.f32 %v888, %v896
    %v899 = vpack.c.bf16 %v898, %v897
    %900 = vrot.lane.b32.xlu0 %v709, 96
    %v901 = vpop.permute.xlu0 %900
    %v904 = vsel %vm571, %v899, 0
    %906 = vmatpush.bf16.msra.mxu0 0
    %907 = vmatpush.bf16.msra.mxu0 0
    %908 = vmatpush.bf16.msra.mxu0 0
    %909 = vmatpush.bf16.msra.mxu0 0
    %910 = vmatpush.bf16.msra.mxu0 0
    %911 = vmatpush.bf16.msra.mxu0 0
    %912 = vmatpush.bf16.msra.mxu0 0
    %913 = vmatpush.bf16.msra.mxu0 %v901
    %914 = vmatmul.bf16.gmra.mxu0 %v904
    %v915 = vpop.f32.mrf.mxu0
    %v916 = vadd.f32 0.0, %v915
    %v917 = vpop.f32.mrf.mxu0
    %v918 = vadd.f32 0.0, %v917
    %919 = vdwg.mxu0
    %v920 = vld [vmem:[#allocation3] sm:$0xff]
    %v921 = vld [vmem:[#allocation3 + $0x8] sm:$0xff]
    %v922 = vpack.c.bf16 %v918, %v916
    %v923 = vpack.c.bf16 %v650, %v649
    %v925 = vsel %vm571, %v922, 0
    %927 = vmatpush.bf16.msra.mxu0 0
    %928 = vmatpush.bf16.msra.mxu0 0
    %929 = vmatpush.bf16.msra.mxu0 0
    %930 = vmatpush.bf16.msra.mxu0 0
    %931 = vmatpush.bf16.msra.mxu0 0
    %932 = vmatpush.bf16.msra.mxu0 0
    %933 = vmatpush.bf16.msra.mxu0 0
    %934 = vmatpush.bf16.msra.mxu0 %v923
    %935 = vmatmul.bf16.gmra.mxu0 %v925
    %v936 = vpop.f32.mrf.mxu0
    %v937 = vadd.f32 0.0, %v936
    %v938 = vpop.f32.mrf.mxu0
    %v939 = vadd.f32 0.0, %v938
    %940 = vdwg.mxu0
    %v941 = vadd.f32 %v920, %v937
    %v942 = vadd.f32 %v921, %v939
    %943 = vst.msk [vmem:[#allocation3] sm:$0xff] %vm122, %v941
    %944 = vst.msk [vmem:[#allocation3 + $0x8] sm:$0xff] %vm122, %v942
    %945 = vrot.lane.b32.xlu0 %v655, 16
    %v946 = vpop.permute.xlu0 %945
    %947 = vrot.lane.b32.xlu0 %v605, 16
    %v948 = vpop.permute.xlu0 %947
    %v950 = vsel %vm571, %v946, 0
    %v953 = vsel %vm571, %v948, 0
    %955 = vmatpush.bf16.xpose.msra.mxu0 0
    %956 = vmatpush.bf16.xpose.msra.mxu0 0
    %957 = vmatpush.bf16.xpose.msra.mxu0 0
    %958 = vmatpush.bf16.xpose.msra.mxu0 0
    %959 = vmatpush.bf16.xpose.msra.mxu0 0
    %960 = vmatpush.bf16.xpose.msra.mxu0 0
    %961 = vmatpush.bf16.xpose.msra.mxu0 0
    %962 = vmatpush.bf16.xpose.msra.mxu0 %v953
    %963 = vmatmul.bf16.gmra.mxu0 %v950
    %v964 = vpop.f32.mrf.mxu0
    %v965 = vadd.f32 0.0, %v964
    %v966 = vpop.f32.mrf.mxu0
    %v967 = vadd.f32 0.0, %v966
    %968 = vdwg.mxu0
    %v969 = vmul.f32 %v965, 0.25
    %v970 = vmul.f32 %v967, 0.25
    %v971 = vadd.f32 %v969, %v643
    %v972 = vadd.f32 %v970, %v644
    %v973 = vsel %vm571, %v971, -inf
    %974 = vmax.xlane.f32.xlu0 %v973
    %v975 = vpop.xlane.xlu0 %974
    %v976 = vsel %vm571, %v972, -inf
    %977 = vmax.xlane.f32.xlu0 %v976
    %v978 = vpop.xlane.xlu0 %977
    %v979 = vsub.f32 %v971, %v975
    %v980 = vsub.f32 %v972, %v978
    %v981 = vmul.f32 %v979, 1.442695
    %v982 = vpow.pop %v981
    %v983 = vmul.f32 %v980, 1.442695
    %v984 = vpow.pop %v983
    %v985 = vsel %vm571, %v982, 0.0
    %986 = vadd.xlane.f32.xlu0 %v985
    %v987 = vpop.xlane.xlu0 %986
    %v988 = vsel %vm571, %v984, 0.0
    %989 = vadd.xlane.f32.xlu0 %v988
    %v990 = vpop.xlane.xlu0 %989
    %v991 = vrcp.pop %v987
    %v992 = vrcp.pop %v990
    %v993 = vmul.f32 %v982, %v991
    %v994 = vmul.f32 %v984, %v992
    %v995 = vpack.c.bf16 %v994, %v993
    %996 = vrot.lane.b32.xlu0 %v709, 80
    %v997 = vpop.permute.xlu0 %996
    %v1000 = vsel %vm571, %v995, 0
    %1002 = vmatpush.bf16.msra.mxu0 0
    %1003 = vmatpush.bf16.msra.mxu0 0
    %1004 = vmatpush.bf16.msra.mxu0 0
    %1005 = vmatpush.bf16.msra.mxu0 0
    %1006 = vmatpush.bf16.msra.mxu0 0
    %1007 = vmatpush.bf16.msra.mxu0 0
    %1008 = vmatpush.bf16.msra.mxu0 0
    %1009 = vmatpush.bf16.msra.mxu0 %v997
    %1010 = vmatmul.bf16.gmra.mxu0 %v1000
    %v1011 = vpop.f32.mrf.mxu0
    %v1012 = vadd.f32 0.0, %v1011
    %v1013 = vpop.f32.mrf.mxu0
    %v1014 = vadd.f32 0.0, %v1013
    %1015 = vdwg.mxu0
    %v1016 = vld [vmem:[#allocation3] sm:$0xff]
    %v1017 = vld [vmem:[#allocation3 + $0x8] sm:$0xff]
    %v1018 = vpack.c.bf16 %v1014, %v1012
    %v1019 = vpack.c.bf16 %v652, %v651
    %v1021 = vsel %vm571, %v1018, 0
    %1023 = vmatpush.bf16.msra.mxu0 0
    %1024 = vmatpush.bf16.msra.mxu0 0
    %1025 = vmatpush.bf16.msra.mxu0 0
    %1026 = vmatpush.bf16.msra.mxu0 0
    %1027 = vmatpush.bf16.msra.mxu0 0
    %1028 = vmatpush.bf16.msra.mxu0 0
    %1029 = vmatpush.bf16.msra.mxu0 0
    %1030 = vmatpush.bf16.msra.mxu0 %v1019
    %1031 = vmatmul.bf16.gmra.mxu0 %v1021
    %v1032 = vpop.f32.mrf.mxu0
    %v1033 = vadd.f32 0.0, %v1032
    %v1034 = vpop.f32.mrf.mxu0
    %v1035 = vadd.f32 0.0, %v1034
    %1036 = vdwg.mxu0
    %v1037 = vadd.f32 %v1016, %v1033
    %v1038 = vadd.f32 %v1017, %v1035
    %1039 = vst.msk [vmem:[#allocation3] sm:$0xff] %vm122, %v1037
    %1040 = vst.msk [vmem:[#allocation3 + $0x8] sm:$0xff] %vm122, %v1038
    %v1041 = vld [vmem:[#allocation3] sm:$0xff]
    %v1042 = vld [vmem:[#allocation3 + $0x8] sm:$0xff]
    %v1043 = vld [vmem:[%s10] sm:$0x1]
    %v1045 = vperm.slane %v1043, 0
    %v1047 = vadd.f32 %v1041, %v1045
    %v1048 = vadd.f32 %v1042, %v1045
    %v1049 = vadd.f32 %v1047, %v89
    %v1050 = vadd.f32 %v1048, %v90
    %v1051 = vld [vmem:[%s17] sm:$0x1]
    %v1053 = vperm.slane %v1051, 0
    %v1055 = vmul.f32 %v1049, %v1053
    %v1056 = vmul.f32 %v1050, %v1053
    %v1057 = vld [vmem:[%s18] sm:$0x1]
    %v1059 = vperm.slane %v1057, 0
    %v1061 = vadd.f32 %v1055, %v1059
    %v1062 = vadd.f32 %v1056, %v1059
    %v1063 = vadd.f32 %v639, %v1061
    %v1064 = vadd.f32 %v640, %v1062
    %v1065 = vld [vmem:[#allocation4] sm:$0xff]
    %v1066 = vld [vmem:[#allocation4 + $0x8] sm:$0xff]
    %v1067 = vld [vmem:[#allocation4 + $0x10] sm:$0xff]
    %v1068 = vld [vmem:[#allocation4 + $0x18] sm:$0xff]
    %v1069 = vld [vmem:[#allocation4 + $0x20] sm:$0xff]
    %v1070 = vld [vmem:[#allocation4 + $0x28] sm:$0xff]
    %v1071 = vld [vmem:[#allocation4 + $0x30] sm:$0xff]
    %v1072 = vld [vmem:[#allocation4 + $0x38] sm:$0xff]
    %v1073 = vpack.c.bf16 %v1064, %v1063
    %v1074 = vpack.c.bf16 %v1066, %v1065
    %v1075 = vpack.c.bf16 %v1068, %v1067
    %v1076 = vpack.c.bf16 %v1070, %v1069
    %v1077 = vpack.c.bf16 %v1072, %v1071
    %v1078 = vld [vmem:[%s12] sm:$0x1]
    %v1080 = vperm.slane %v1078, 0
    %v1083 = vsel %vm122, %v1073, 0
    %1085 = vmatpush.bf16.msra.mxu0 0
    %1086 = vmatpush.bf16.msra.mxu0 0
    %1087 = vmatpush.bf16.msra.mxu0 0
    %1088 = vmatpush.bf16.msra.mxu0 0
    %1089 = vmatpush.bf16.msra.mxu0 %v1077
    %1090 = vmatpush.bf16.msra.mxu0 %v1076
    %1091 = vmatpush.bf16.msra.mxu0 %v1075
    %1092 = vmatpush.bf16.msra.mxu0 %v1074
    %1093 = vmatmul.bf16.gmra.mxu0 %v1083
    %v1094 = vpop.f32.mrf.mxu0
    %v1095 = vadd.f32 %v1080, %v1094
    %v1096 = vpop.f32.mrf.mxu0
    %v1097 = vadd.f32 %v1080, %v1096
    %1098 = vdwg.mxu0
    %v1099 = vmax.f32 %v1095, 0.0
    %v1100 = vmax.f32 %v1097, 0.0
    %v1101 = vld [vmem:[%s13] sm:$0xff]
    %v1102 = vld [vmem:[%s13 + $0x8] sm:$0xff]
    %v1103 = vld [vmem:[%s13 + $0x10] sm:$0xff]
    %v1104 = vld [vmem:[%s13 + $0x18] sm:$0xff]
    %v1105 = vld [vmem:[%s13 + $0x20] sm:$0xff]
    %v1106 = vld [vmem:[%s13 + $0x28] sm:$0xff]
    %v1107 = vld [vmem:[%s13 + $0x30] sm:$0xff]
    %v1108 = vld [vmem:[%s13 + $0x38] sm:$0xff]
    %v1109 = vld [vmem:[%s13 + $0x40] sm:$0xff]
    %v1110 = vld [vmem:[%s13 + $0x48] sm:$0xff]
    %v1111 = vld [vmem:[%s13 + $0x50] sm:$0xff]
    %v1112 = vld [vmem:[%s13 + $0x58] sm:$0xff]
    %v1113 = vld [vmem:[%s13 + $0x60] sm:$0xff]
    %v1114 = vld [vmem:[%s13 + $0x68] sm:$0xff]
    %v1115 = vld [vmem:[%s13 + $0x70] sm:$0xff]
    %v1116 = vld [vmem:[%s13 + $0x78] sm:$0xff]
    %v1117 = vpack.c.bf16 %v1100, %v1099
    %v1118 = vpack.c.bf16 %v1102, %v1101
    %v1119 = vpack.c.bf16 %v1104, %v1103
    %v1120 = vpack.c.bf16 %v1106, %v1105
    %v1121 = vpack.c.bf16 %v1108, %v1107
    %v1122 = vpack.c.bf16 %v1110, %v1109
    %v1123 = vpack.c.bf16 %v1112, %v1111
    %v1124 = vpack.c.bf16 %v1114, %v1113
    %v1125 = vpack.c.bf16 %v1116, %v1115
    %v1126 = vld [vmem:[%s14] sm:$0x1]
    %v1128 = vperm.slane %v1126, 0
    %1130 = vmatpush.bf16.msra.mxu0 %v1125
    %1131 = vmatpush.bf16.msra.mxu0 %v1124
    %1132 = vmatpush.bf16.msra.mxu0 %v1123
    %1133 = vmatpush.bf16.msra.mxu0 %v1122
    %1134 = vmatpush.bf16.msra.mxu0 %v1121
    %1135 = vmatpush.bf16.msra.mxu0 %v1120
    %1136 = vmatpush.bf16.msra.mxu0 %v1119
    %1137 = vmatpush.bf16.msra.mxu0 %v1118
    %1138 = vmatmul.bf16.gmra.mxu0 %v1117
    %v1139 = vpop.f32.mrf.mxu0
    %v1140 = vadd.f32 %v1128, %v1139
    %v1141 = vpop.f32.mrf.mxu0
    %v1142 = vadd.f32 %v1128, %v1141
    %1143 = vdwg.mxu0
    %v1144 = vadd.f32 %v1063, %v1140
    %v1145 = vadd.f32 %v1064, %v1142
    %v1146 = vld [vmem:[%s19] sm:$0x1]
    %v1148 = vperm.slane %v1146, 0
    %v1150 = vmul.f32 %v1144, %v1148
    %v1151 = vmul.f32 %v1145, %v1148
    %v1152 = vld [vmem:[%s20] sm:$0x1]
    %v1154 = vperm.slane %v1152, 0
    %v1156 = vadd.f32 %v1150, %v1154
    %v1157 = vadd.f32 %v1151, %v1154
    %v1158 = vmax.f32 %v1156, 0.0
    %v1159 = vmax.f32 %v1157, 0.0
    %1160 = vst.msk [vmem:[%s21] sm:$0xff] %vm122, %v1158
    %1161 = vst.msk [vmem:[%s21 + $0x8] sm:$0xff] %vm122, %v1159
    // Predicated region
    $region90: #{gps_conv_net_forward.6} parent=1 // pred_check
      _
    $region91: #{gps_conv_net_forward.6} parent=1 // pred_check_branch
      %1163 = sbr.rel (0) target = $region93
    $region92: #{gps_conv_net_forward.6} parent=1 // pred_region
      _
    $region93: #{gps_conv_net_forward.6} parent=1 // pred_fallthru
      _
    // Predicated region
    $region94: #{gps_conv_net_forward.6} parent=1 // pred_check
      _
    $region95: #{gps_conv_net_forward.6} parent=1 // pred_check_branch
      %1165 = sbr.rel (0) target = $region97
    $region96: #{gps_conv_net_forward.6} parent=1 // pred_region
      _
    $region97: #{gps_conv_net_forward.6} parent=1 // pred_fallthru
      _
    %1166 = vsyncpa [#allocation5], 1

</llo_original>
